<compile_context>
chip_gen: v7x
topology: tpu7x:2x2x1
jax: 0.10.0
libtpu: 0.0.40
codegen_flags: <defaults>
</compile_context>

<pallas_src>
import functools

import jax
import jax.numpy as jnp
from jax.experimental import pallas as pl
from jax.experimental.pallas import tpu as pltpu


# ----------------------------------------------------------------------------
# Exact GELU (erf-based, matches PyTorch nn.GELU default) built from ops that
# lower on TPU (abs / exp / mul / add / where).  |erf error| < 1.5e-7.
# ----------------------------------------------------------------------------
def _gelu_exact(x):
    z = x * 0.7071067811865476          # x / sqrt(2)
    a = jnp.abs(z)
    t = 1.0 / (1.0 + 0.3275911 * a)
    poly = t * (0.254829592 + t * (-0.284496736 + t * (1.421413741
             + t * (-1.453152027 + t * 1.061405429))))
    erf_abs = 1.0 - poly * jnp.exp(-a * a)
    erf = jnp.where(z >= 0.0, erf_abs, -erf_abs)
    return 0.5 * x * (1.0 + erf)


# ----------------------------------------------------------------------------
# Fused kernel: one AoA block for ONE batch element (grid iterates batches).
# x_ref block: (1, L, D).  All weights are VMEM-resident across grid steps.
# ----------------------------------------------------------------------------
def _aoa_fused_kernel(
    x_ref,
    wq_ref, bq_ref, wk_ref, bk_ref, wv_ref, bv_ref,          # q/k/v projections
    wiq_ref, biq_ref, wik_ref, bik_ref, wiv_ref, biv_ref,    # MHA in_proj, per-head
    wo_ref, bo_ref,                                          # MHA out_proj (head-stacked)
    w1a_ref, w1q_ref, b1_ref, w2a_ref, w2q_ref, b2_ref,      # AoA gate proj1/proj2
    ng_ref, nb_ref,                                          # shared LayerNorm
    wf1_ref, bf1_ref, wf2_ref, bf2_ref,                      # FeedForward
    o_ref,
    *, heads, eps,
):
    xf = x_ref[0].astype(jnp.float32)                        # (L, D)
    L, D = xf.shape
    bf16 = jnp.bfloat16

    def lin(t32, w_ref, b_ref):                              # bf16 matmul, f32 accum
        return (jnp.dot(t32.astype(bf16), w_ref[...],
                        preferred_element_type=jnp.float32) + b_ref[...])

    # ---- k / v / q projections (loop-invariant in the reference) -----------
    q = lin(xf, wq_ref, bq_ref)                              # (L, D) fp32
    k = lin(xf, wk_ref, bk_ref)
    v = lin(xf, wv_ref, bv_ref)

    # ---- nn.MultiheadAttention in-projection, per-head batched -------------
    # Weights are host-stacked as (H, D, dh); 1/sqrt(dh) is folded into wiq/biq.
    qb = jnp.broadcast_to(q.astype(bf16), (heads, L, D))
    kb = jnp.broadcast_to(k.astype(bf16), (heads, L, D))
    vb = jnp.broadcast_to(v.astype(bf16), (heads, L, D))

    qh = jnp.einsum('hld,hdf->hlf', qb, wiq_ref[...],
                    preferred_element_type=jnp.float32) + biq_ref[...]   # (H, L, dh)
    kh = jnp.einsum('hld,hdf->hlf', kb, wik_ref[...],
                    preferred_element_type=jnp.float32) + bik_ref[...]
    vh = jnp.einsum('hld,hdf->hlf', vb, wiv_ref[...],
                    preferred_element_type=jnp.float32) + biv_ref[...]

    # ---- multi-head attention (no cross-batch mask needed) -----------------
    s = jnp.einsum('hqf,hkf->hqk', qh.astype(bf16), kh.astype(bf16),
                   preferred_element_type=jnp.float32)                   # (H, L, L)
    s = s - jnp.max(s, axis=-1, keepdims=True)
    p = jnp.exp(s)
    p = p / jnp.sum(p, axis=-1, keepdims=True)                           # exact softmax

    oh = jnp.einsum('hqk,hkf->hqf', p.astype(bf16), vh.astype(bf16),
                    preferred_element_type=jnp.float32)                  # (H, L, dh)

    # ---- merged out-projection: one batched einsum over heads --------------
    attn = jnp.einsum('hqf,hfd->hqd', oh.astype(bf16), wo_ref[...],
                      preferred_element_type=jnp.float32)                # (H, L, D)
    attn = jnp.sum(attn, axis=0) + bo_ref[...]                           # (L, D)

    # ---- AoA gate: sigmoid(proj1([attn, q])) * proj2([attn, q]) -------------
    attn_bf = attn.astype(bf16)
    q_bf = q.astype(bf16)
    p1 = (jnp.dot(attn_bf, w1a_ref[...], preferred_element_type=jnp.float32)
          + jnp.dot(q_bf, w1q_ref[...], preferred_element_type=jnp.float32)
          + b1_ref[...])
    p2 = (jnp.dot(attn_bf, w2a_ref[...], preferred_element_type=jnp.float32)
          + jnp.dot(q_bf, w2q_ref[...], preferred_element_type=jnp.float32)
          + b2_ref[...])
    mult = jax.nn.sigmoid(p1) * p2

    # ---- LayerNorm (shared params), FeedForward, LayerNorm ------------------
    g = ng_ref[...]
    b = nb_ref[...]

    def layernorm(t):
        mu = jnp.mean(t, axis=-1, keepdims=True)
        var = jnp.mean(jnp.square(t - mu), axis=-1, keepdims=True)
        return (t - mu) * jax.lax.rsqrt(var + eps) * g + b

    qn = layernorm(mult + xf)
    h1 = jnp.dot(qn.astype(bf16), wf1_ref[...],
                 preferred_element_type=jnp.float32) + bf1_ref[...]
    h1 = _gelu_exact(h1)
    ff = jnp.dot(h1.astype(bf16), wf2_ref[...],
                 preferred_element_type=jnp.float32) + bf2_ref[...]
    out = layernorm(ff + qn)

    # TODO(synk): with D < 128 this is a masked (partial-lane) store; a
    #             lane-dense repack is not worthwhile at these shapes.
    o_ref[0] = out.astype(o_ref.dtype)


# ----------------------------------------------------------------------------
# One-time host-side weight preparation: transpose to (in, out), split the MHA
# in_proj per head into (H, D, dh) stacks, fold the 1/sqrt(dh) scale into the
# query in-projection, split proj1/proj2 into attn-part / q-part, cast matmul
# weights to bf16 (biases / LN params stay fp32).
# ----------------------------------------------------------------------------
def prepare_params(params, dim, heads):
    dh = dim // heads
    scale = dh ** -0.5
    f32, bf16 = jnp.float32, jnp.bfloat16

    def lin_t(wb):
        w, b = wb
        return jnp.asarray(w).T.astype(bf16), jnp.asarray(b).reshape(1, -1).astype(f32)

    wq, bq = lin_t(params["q_proj"])
    wk, bk = lin_t(params["k_proj"])
    wv, bv = lin_t(params["v_proj"])

    wi, bi = params["in_proj"]                        # (3D, D), (3D,)
    wi, bi = jnp.asarray(wi), jnp.asarray(bi)

    def head_stack(w_rows, b_rows, s=1.0):
        wt = w_rows.T * s                             # (D_in, D_out)
        wt = wt.reshape(dim, heads, dh).transpose(1, 0, 2)     # (H, D, dh)
        bt = (b_rows * s).reshape(heads, 1, dh)
        return wt.astype(bf16), bt.astype(f32)

    wiq, biq = head_stack(wi[:dim], bi[:dim], scale)  # scale folded here
    wik, bik = head_stack(wi[dim:2 * dim], bi[dim:2 * dim])
    wiv, biv = head_stack(wi[2 * dim:], bi[2 * dim:])

    wo_t = jnp.asarray(params["out_proj"][0]).T       # (D_in, D_out)
    wo = wo_t.reshape(heads, dh, dim).astype(bf16)    # head h <-> rows [h*dh:(h+1)*dh]
    bo = jnp.asarray(params["out_proj"][1]).reshape(1, -1).astype(f32)

    w1, b1 = params["proj1"]                          # (D, 2D), (D,)
    w1 = jnp.asarray(w1)
    w1a = w1[:, :dim].T.astype(bf16)
    w1q = w1[:, dim:].T.astype(bf16)
    b1r = jnp.asarray(b1).reshape(1, -1).astype(f32)

    w2, b2 = params["proj2"]
    w2 = jnp.asarray(w2)
    w2a = w2[:, :dim].T.astype(bf16)
    w2q = w2[:, dim:].T.astype(bf16)
    b2r = jnp.asarray(b2).reshape(1, -1).astype(f32)

    ng = jnp.asarray(params["norm_g"]).reshape(1, -1).astype(f32)
    nb = jnp.asarray(params["norm_b"]).reshape(1, -1).astype(f32)

    wf1, bf1 = lin_t(params["ff1"])
    wf2, bf2 = lin_t(params["ff2"])

    return [wq, bq, wk, bk, wv, bv,
            wiq, biq, wik, bik, wiv, biv,
            wo, bo,
            w1a, w1q, b1r, w2a, w2q, b2r,
            ng, nb,
            wf1, bf1, wf2, bf2]


def _resident_spec(arr):
    # Full-array block with a constant index_map: fetched once, stays in VMEM
    # across all grid steps (no per-step weight re-DMA).
    nd = arr.ndim
    return pl.BlockSpec(arr.shape, lambda n: (0,) * nd)


# ----------------------------------------------------------------------------
# AoA forward (matches the PyTorch module, batch_first=False convention).
# ----------------------------------------------------------------------------
def aoa_forward(prep, x, *, heads, depth_aoa):
    # The PyTorch `for _ in range(depth_aoa)` loop recomputes an identical
    # mult_output every iteration (q/k/v never change, nothing accumulates);
    # hoisted to a single evaluation — bit-identical for any depth_aoa >= 1.
    assert depth_aoa >= 1
    L, N, D = x.shape
    xb = jnp.transpose(x, (1, 0, 2))                  # (N, L, D): batches contiguous

    out = pl.pallas_call(
        functools.partial(_aoa_fused_kernel, heads=heads, eps=1e-5),
        out_shape=jax.ShapeDtypeStruct((N, L, D), x.dtype),
        grid=(N,),
        in_specs=[pl.BlockSpec((1, L, D), lambda n: (n, 0, 0))]
                 + [_resident_spec(p) for p in prep],
        out_specs=pl.BlockSpec((1, L, D), lambda n: (n, 0, 0)),
        compiler_params=pltpu.CompilerParams(
            dimension_semantics=("parallel",),        # v7x: shard batch over 2 TCs
            vmem_limit_bytes=32 * 1024 * 1024),
    )(xb, *prep)
    return jnp.transpose(out, (1, 0, 2))              # back to (L, N, D)


def init_params(key, dim):
    ks = jax.random.split(key, 9)

    def lin(k, out_d, in_d):
        kw, kb = jax.random.split(k)
        w = jax.random.normal(kw, (out_d, in_d), jnp.float32) * 0.02
        b = jax.random.normal(kb, (out_d,), jnp.float32) * 0.02
        return w, b

    return {
        "k_proj": lin(ks[0], dim, dim),
        "v_proj": lin(ks[1], dim, dim),
        "q_proj": lin(ks[2], dim, dim),
        "in_proj": lin(ks[3], 3 * dim, dim),
        "out_proj": lin(ks[4], dim, dim),
        "proj1": lin(ks[5], dim, 2 * dim),
        "proj2": lin(ks[6], dim, 2 * dim),
        "ff1": lin(ks[7], 4 * dim, dim),
        "ff2": lin(ks[8], dim, 4 * dim),
        "norm_g": jnp.ones((dim,), jnp.float32),
        "norm_b": jnp.zeros((dim,), jnp.float32),
    }


if __name__ == "__main__":
    # small shapes: seq L=8, batch N=2, dim=32, heads=4 (head_dim=8), depth_aoa=3
    L, N, DIM, HEADS, DEPTH_AOA = 8, 2, 32, 4, 3

    key = jax.random.PRNGKey(0)
    k_x, k_p = jax.random.split(key)
    x = jax.random.normal(k_x, (L, N, DIM), jnp.float32)

    params = init_params(k_p, DIM)
    prep = prepare_params(params, DIM, HEADS)         # one-time host-side weight prep

    fwd = jax.jit(functools.partial(aoa_forward, heads=HEADS, depth_aoa=DEPTH_AOA))
    out = fwd(prep, x)
    out = jax.block_until_ready(out)

    assert out.shape == (L, N, DIM)
    assert bool(jnp.all(jnp.isfinite(out)))
    print("KERNEL_OK")
</pallas_src>

<mosaic_0001>
module attributes {stable_mosaic.version = 11 : i64} {
  func.func @_aoa_fused_kernel(%arg0: i32, %arg1: memref<1x8x32xf32, #tpu.memory_space<vmem>>, %arg2: memref<32x32xbf16, #tpu.memory_space<vmem>>, %arg3: memref<1x32xf32, #tpu.memory_space<vmem>>, %arg4: memref<32x32xbf16, #tpu.memory_space<vmem>>, %arg5: memref<1x32xf32, #tpu.memory_space<vmem>>, %arg6: memref<32x32xbf16, #tpu.memory_space<vmem>>, %arg7: memref<1x32xf32, #tpu.memory_space<vmem>>, %arg8: memref<4x32x8xbf16, #tpu.memory_space<vmem>>, %arg9: memref<4x1x8xf32, #tpu.memory_space<vmem>>, %arg10: memref<4x32x8xbf16, #tpu.memory_space<vmem>>, %arg11: memref<4x1x8xf32, #tpu.memory_space<vmem>>, %arg12: memref<4x32x8xbf16, #tpu.memory_space<vmem>>, %arg13: memref<4x1x8xf32, #tpu.memory_space<vmem>>, %arg14: memref<4x8x32xbf16, #tpu.memory_space<vmem>>, %arg15: memref<1x32xf32, #tpu.memory_space<vmem>>, %arg16: memref<32x32xbf16, #tpu.memory_space<vmem>>, %arg17: memref<32x32xbf16, #tpu.memory_space<vmem>>, %arg18: memref<1x32xf32, #tpu.memory_space<vmem>>, %arg19: memref<32x32xbf16, #tpu.memory_space<vmem>>, %arg20: memref<32x32xbf16, #tpu.memory_space<vmem>>, %arg21: memref<1x32xf32, #tpu.memory_space<vmem>>, %arg22: memref<1x32xf32, #tpu.memory_space<vmem>>, %arg23: memref<1x32xf32, #tpu.memory_space<vmem>>, %arg24: memref<32x128xbf16, #tpu.memory_space<vmem>>, %arg25: memref<1x128xf32, #tpu.memory_space<vmem>>, %arg26: memref<128x32xbf16, #tpu.memory_space<vmem>>, %arg27: memref<1x32xf32, #tpu.memory_space<vmem>>, %arg28: memref<1x8x32xf32, #tpu.memory_space<vmem>>) attributes {dimension_semantics = [#tpu.dimension_semantics<parallel>], iteration_bounds = array<i64: 2>, scalar_prefetch = 0 : i64, scratch_operands = 0 : i64, tpu.core_type = #tpu.core_type<tc>, window_params = [{transform_indices = @transform_0, window_bounds = array<i64: 1, 8, 32>}, {pipeline_mode = #tpu.pipeline_mode<synchronous>, transform_indices = @transform_1, window_bounds = array<i64: 32, 32>}, {pipeline_mode = #tpu.pipeline_mode<synchronous>, transform_indices = @transform_2, window_bounds = array<i64: 1, 32>}, {pipeline_mode = #tpu.pipeline_mode<synchronous>, transform_indices = @transform_3, window_bounds = array<i64: 32, 32>}, {pipeline_mode = #tpu.pipeline_mode<synchronous>, transform_indices = @transform_4, window_bounds = array<i64: 1, 32>}, {pipeline_mode = #tpu.pipeline_mode<synchronous>, transform_indices = @transform_5, window_bounds = array<i64: 32, 32>}, {pipeline_mode = #tpu.pipeline_mode<synchronous>, transform_indices = @transform_6, window_bounds = array<i64: 1, 32>}, {pipeline_mode = #tpu.pipeline_mode<synchronous>, transform_indices = @transform_7, window_bounds = array<i64: 4, 32, 8>}, {pipeline_mode = #tpu.pipeline_mode<synchronous>, transform_indices = @transform_8, window_bounds = array<i64: 4, 1, 8>}, {pipeline_mode = #tpu.pipeline_mode<synchronous>, transform_indices = @transform_9, window_bounds = array<i64: 4, 32, 8>}, {pipeline_mode = #tpu.pipeline_mode<synchronous>, transform_indices = @transform_10, window_bounds = array<i64: 4, 1, 8>}, {pipeline_mode = #tpu.pipeline_mode<synchronous>, transform_indices = @transform_11, window_bounds = array<i64: 4, 32, 8>}, {pipeline_mode = #tpu.pipeline_mode<synchronous>, transform_indices = @transform_12, window_bounds = array<i64: 4, 1, 8>}, {pipeline_mode = #tpu.pipeline_mode<synchronous>, transform_indices = @transform_13, window_bounds = array<i64: 4, 8, 32>}, {pipeline_mode = #tpu.pipeline_mode<synchronous>, transform_indices = @transform_14, window_bounds = array<i64: 1, 32>}, {pipeline_mode = #tpu.pipeline_mode<synchronous>, transform_indices = @transform_15, window_bounds = array<i64: 32, 32>}, {pipeline_mode = #tpu.pipeline_mode<synchronous>, transform_indices = @transform_16, window_bounds = array<i64: 32, 32>}, {pipeline_mode = #tpu.pipeline_mode<synchronous>, transform_indices = @transform_17, window_bounds = array<i64: 1, 32>}, {pipeline_mode = #tpu.pipeline_mode<synchronous>, transform_indices = @transform_18, window_bounds = array<i64: 32, 32>}, {pipeline_mode = #tpu.pipeline_mode<synchronous>, transform_indices = @transform_19, window_bounds = array<i64: 32, 32>}, {pipeline_mode = #tpu.pipeline_mode<synchronous>, transform_indices = @transform_20, window_bounds = array<i64: 1, 32>}, {pipeline_mode = #tpu.pipeline_mode<synchronous>, transform_indices = @transform_21, window_bounds = array<i64: 1, 32>}, {pipeline_mode = #tpu.pipeline_mode<synchronous>, transform_indices = @transform_22, window_bounds = array<i64: 1, 32>}, {pipeline_mode = #tpu.pipeline_mode<synchronous>, transform_indices = @transform_23, window_bounds = array<i64: 32, 128>}, {pipeline_mode = #tpu.pipeline_mode<synchronous>, transform_indices = @transform_24, window_bounds = array<i64: 1, 128>}, {pipeline_mode = #tpu.pipeline_mode<synchronous>, transform_indices = @transform_25, window_bounds = array<i64: 128, 32>}, {pipeline_mode = #tpu.pipeline_mode<synchronous>, transform_indices = @transform_26, window_bounds = array<i64: 1, 32>}, {transform_indices = @transform_27, window_bounds = array<i64: 1, 8, 32>}]} {
    %c0 = arith.constant 0 : index
    %c0_0 = arith.constant 0 : index
    %c0_1 = arith.constant 0 : index
    %0 = vector.load %arg1[%c0, %c0_0, %c0_1] : memref<1x8x32xf32, #tpu.memory_space<vmem>>, vector<1x8x32xf32>
    %1 = vector.shape_cast %0 : vector<1x8x32xf32> to vector<8x32xf32>
    %2 = arith.truncf %1 : vector<8x32xf32> to vector<8x32xbf16>
    %c0_2 = arith.constant 0 : index
    %c0_3 = arith.constant 0 : index
    %3 = vector.load %arg2[%c0_2, %c0_3] : memref<32x32xbf16, #tpu.memory_space<vmem>>, vector<32x32xbf16>
    %cst = arith.constant dense<0.000000e+00> : vector<8x32xf32>
    %4 = tpu.matmul %2, %3, %cst {dimension_numbers = #tpu.dot_dimension_numbers<[1], [0], [0], [1], [0, 0, 1, 1], [], []>} : vector<8x32xbf16>, vector<32x32xbf16>, vector<8x32xf32> -> vector<8x32xf32>
    %c0_4 = arith.constant 0 : index
    %c0_5 = arith.constant 0 : index
    %5 = vector.load %arg3[%c0_4, %c0_5] : memref<1x32xf32, #tpu.memory_space<vmem>>, vector<1x32xf32>
    %6 = vector.broadcast %5 : vector<1x32xf32> to vector<8x32xf32>
    %7 = arith.addf %4, %6 : vector<8x32xf32>
    %8 = arith.truncf %1 : vector<8x32xf32> to vector<8x32xbf16>
    %c0_6 = arith.constant 0 : index
    %c0_7 = arith.constant 0 : index
    %9 = vector.load %arg4[%c0_6, %c0_7] : memref<32x32xbf16, #tpu.memory_space<vmem>>, vector<32x32xbf16>
    %cst_8 = arith.constant dense<0.000000e+00> : vector<8x32xf32>
    %10 = tpu.matmul %8, %9, %cst_8 {dimension_numbers = #tpu.dot_dimension_numbers<[1], [0], [0], [1], [0, 0, 1, 1], [], []>} : vector<8x32xbf16>, vector<32x32xbf16>, vector<8x32xf32> -> vector<8x32xf32>
    %c0_9 = arith.constant 0 : index
    %c0_10 = arith.constant 0 : index
    %11 = vector.load %arg5[%c0_9, %c0_10] : memref<1x32xf32, #tpu.memory_space<vmem>>, vector<1x32xf32>
    %12 = vector.broadcast %11 : vector<1x32xf32> to vector<8x32xf32>
    %13 = arith.addf %10, %12 : vector<8x32xf32>
    %14 = arith.truncf %1 : vector<8x32xf32> to vector<8x32xbf16>
    %c0_11 = arith.constant 0 : index
    %c0_12 = arith.constant 0 : index
    %15 = vector.load %arg6[%c0_11, %c0_12] : memref<32x32xbf16, #tpu.memory_space<vmem>>, vector<32x32xbf16>
    %cst_13 = arith.constant dense<0.000000e+00> : vector<8x32xf32>
    %16 = tpu.matmul %14, %15, %cst_13 {dimension_numbers = #tpu.dot_dimension_numbers<[1], [0], [0], [1], [0, 0, 1, 1], [], []>} : vector<8x32xbf16>, vector<32x32xbf16>, vector<8x32xf32> -> vector<8x32xf32>
    %c0_14 = arith.constant 0 : index
    %c0_15 = arith.constant 0 : index
    %17 = vector.load %arg7[%c0_14, %c0_15] : memref<1x32xf32, #tpu.memory_space<vmem>>, vector<1x32xf32>
    %18 = vector.broadcast %17 : vector<1x32xf32> to vector<8x32xf32>
    %19 = arith.addf %16, %18 : vector<8x32xf32>
    %20 = arith.truncf %7 : vector<8x32xf32> to vector<8x32xbf16>
    %21 = vector.shape_cast %20 : vector<8x32xbf16> to vector<1x8x32xbf16>
    %22 = vector.broadcast %21 : vector<1x8x32xbf16> to vector<4x8x32xbf16>
    %23 = arith.truncf %13 : vector<8x32xf32> to vector<8x32xbf16>
    %24 = vector.shape_cast %23 : vector<8x32xbf16> to vector<1x8x32xbf16>
    %25 = vector.broadcast %24 : vector<1x8x32xbf16> to vector<4x8x32xbf16>
    %26 = arith.truncf %19 : vector<8x32xf32> to vector<8x32xbf16>
    %27 = vector.shape_cast %26 : vector<8x32xbf16> to vector<1x8x32xbf16>
    %28 = vector.broadcast %27 : vector<1x8x32xbf16> to vector<4x8x32xbf16>
    %c0_16 = arith.constant 0 : index
    %c0_17 = arith.constant 0 : index
    %c0_18 = arith.constant 0 : index
    %29 = vector.load %arg8[%c0_16, %c0_17, %c0_18] : memref<4x32x8xbf16, #tpu.memory_space<vmem>>, vector<4x32x8xbf16>
    "tpu.trace_start"() <{level = 10 : i32, message = "hld,hdf->hlf"}> : () -> ()
    %cst_19 = arith.constant dense<0.000000e+00> : vector<4x8x8xf32>
    %30 = tpu.matmul %22, %29, %cst_19 {dimension_numbers = #tpu.dot_dimension_numbers<[2], [1], [1], [2], [0, 0, 0, 1, 1, 2], [0], [0]>} : vector<4x8x32xbf16>, vector<4x32x8xbf16>, vector<4x8x8xf32> -> vector<4x8x8xf32>
    "tpu.trace_stop"() : () -> ()
    %c0_20 = arith.constant 0 : index
    %c0_21 = arith.constant 0 : index
    %c0_22 = arith.constant 0 : index
    %31 = vector.load %arg9[%c0_20, %c0_21, %c0_22] : memref<4x1x8xf32, #tpu.memory_space<vmem>>, vector<4x1x8xf32>
    %32 = vector.broadcast %31 : vector<4x1x8xf32> to vector<4x8x8xf32>
    %33 = arith.addf %30, %32 : vector<4x8x8xf32>
    %c0_23 = arith.constant 0 : index
    %c0_24 = arith.constant 0 : index
    %c0_25 = arith.constant 0 : index
    %34 = vector.load %arg10[%c0_23, %c0_24, %c0_25] : memref<4x32x8xbf16, #tpu.memory_space<vmem>>, vector<4x32x8xbf16>
    "tpu.trace_start"() <{level = 10 : i32, message = "hld,hdf->hlf"}> : () -> ()
    %cst_26 = arith.constant dense<0.000000e+00> : vector<4x8x8xf32>
    %35 = tpu.matmul %25, %34, %cst_26 {dimension_numbers = #tpu.dot_dimension_numbers<[2], [1], [1], [2], [0, 0, 0, 1, 1, 2], [0], [0]>} : vector<4x8x32xbf16>, vector<4x32x8xbf16>, vector<4x8x8xf32> -> vector<4x8x8xf32>
    "tpu.trace_stop"() : () -> ()
    %c0_27 = arith.constant 0 : index
    %c0_28 = arith.constant 0 : index
    %c0_29 = arith.constant 0 : index
    %36 = vector.load %arg11[%c0_27, %c0_28, %c0_29] : memref<4x1x8xf32, #tpu.memory_space<vmem>>, vector<4x1x8xf32>
    %37 = vector.broadcast %36 : vector<4x1x8xf32> to vector<4x8x8xf32>
    %38 = arith.addf %35, %37 : vector<4x8x8xf32>
    %c0_30 = arith.constant 0 : index
    %c0_31 = arith.constant 0 : index
    %c0_32 = arith.constant 0 : index
    %39 = vector.load %arg12[%c0_30, %c0_31, %c0_32] : memref<4x32x8xbf16, #tpu.memory_space<vmem>>, vector<4x32x8xbf16>
    "tpu.trace_start"() <{level = 10 : i32, message = "hld,hdf->hlf"}> : () -> ()
    %cst_33 = arith.constant dense<0.000000e+00> : vector<4x8x8xf32>
    %40 = tpu.matmul %28, %39, %cst_33 {dimension_numbers = #tpu.dot_dimension_numbers<[2], [1], [1], [2], [0, 0, 0, 1, 1, 2], [0], [0]>} : vector<4x8x32xbf16>, vector<4x32x8xbf16>, vector<4x8x8xf32> -> vector<4x8x8xf32>
    "tpu.trace_stop"() : () -> ()
    %c0_34 = arith.constant 0 : index
    %c0_35 = arith.constant 0 : index
    %c0_36 = arith.constant 0 : index
    %41 = vector.load %arg13[%c0_34, %c0_35, %c0_36] : memref<4x1x8xf32, #tpu.memory_space<vmem>>, vector<4x1x8xf32>
    %42 = vector.broadcast %41 : vector<4x1x8xf32> to vector<4x8x8xf32>
    %43 = arith.addf %40, %42 : vector<4x8x8xf32>
    %44 = arith.truncf %33 : vector<4x8x8xf32> to vector<4x8x8xbf16>
    %45 = arith.truncf %38 : vector<4x8x8xf32> to vector<4x8x8xbf16>
    "tpu.trace_start"() <{level = 10 : i32, message = "hqf,hkf->hqk"}> : () -> ()
    %cst_37 = arith.constant dense<0.000000e+00> : vector<4x8x8xf32>
    %46 = tpu.matmul %44, %45, %cst_37 {dimension_numbers = #tpu.dot_dimension_numbers<[2], [2], [1], [1], [0, 0, 0, 1, 1, 1], [0], [0]>} : vector<4x8x8xbf16>, vector<4x8x8xbf16>, vector<4x8x8xf32> -> vector<4x8x8xf32>
    "tpu.trace_stop"() : () -> ()
    %cst_38 = arith.constant dense<0xFF800000> : vector<4x8xf32>
    %47 = vector.multi_reduction <maximumf>, %46, %cst_38 [2] : vector<4x8x8xf32> to vector<4x8xf32>
    %48 = vector.shape_cast %47 : vector<4x8xf32> to vector<4x8x1xf32>
    %49 = vector.broadcast %48 : vector<4x8x1xf32> to vector<4x8x8xf32>
    %50 = arith.subf %46, %49 : vector<4x8x8xf32>
    %51 = math.exp %50 : vector<4x8x8xf32>
    %cst_39 = arith.constant dense<0.000000e+00> : vector<4x8xf32>
    %52 = vector.multi_reduction <add>, %51, %cst_39 [2] : vector<4x8x8xf32> to vector<4x8xf32>
    %53 = vector.shape_cast %52 : vector<4x8xf32> to vector<4x8x1xf32>
    %54 = vector.broadcast %53 : vector<4x8x1xf32> to vector<4x8x8xf32>
    %55 = arith.divf %51, %54 : vector<4x8x8xf32>
    %56 = arith.truncf %55 : vector<4x8x8xf32> to vector<4x8x8xbf16>
    %57 = arith.truncf %43 : vector<4x8x8xf32> to vector<4x8x8xbf16>
    "tpu.trace_start"() <{level = 10 : i32, message = "hqk,hkf->hqf"}> : () -> ()
    %cst_40 = arith.constant dense<0.000000e+00> : vector<4x8x8xf32>
    %58 = tpu.matmul %56, %57, %cst_40 {dimension_numbers = #tpu.dot_dimension_numbers<[2], [1], [1], [2], [0, 0, 0, 1, 1, 2], [0], [0]>} : vector<4x8x8xbf16>, vector<4x8x8xbf16>, vector<4x8x8xf32> -> vector<4x8x8xf32>
    "tpu.trace_stop"() : () -> ()
    %59 = arith.truncf %58 : vector<4x8x8xf32> to vector<4x8x8xbf16>
    %c0_41 = arith.constant 0 : index
    %c0_42 = arith.constant 0 : index
    %c0_43 = arith.constant 0 : index
    %60 = vector.load %arg14[%c0_41, %c0_42, %c0_43] : memref<4x8x32xbf16, #tpu.memory_space<vmem>>, vector<4x8x32xbf16>
    "tpu.trace_start"() <{level = 10 : i32, message = "hqf,hfd->hqd"}> : () -> ()
    %cst_44 = arith.constant dense<0.000000e+00> : vector<4x8x32xf32>
    %61 = tpu.matmul %59, %60, %cst_44 {dimension_numbers = #tpu.dot_dimension_numbers<[2], [1], [1], [2], [0, 0, 0, 1, 1, 2], [0], [0]>} : vector<4x8x8xbf16>, vector<4x8x32xbf16>, vector<4x8x32xf32> -> vector<4x8x32xf32>
    "tpu.trace_stop"() : () -> ()
    %cst_45 = arith.constant dense<0.000000e+00> : vector<8x32xf32>
    %62 = vector.multi_reduction <add>, %61, %cst_45 [0] : vector<4x8x32xf32> to vector<8x32xf32>
    %c0_46 = arith.constant 0 : index
    %c0_47 = arith.constant 0 : index
    %63 = vector.load %arg15[%c0_46, %c0_47] : memref<1x32xf32, #tpu.memory_space<vmem>>, vector<1x32xf32>
    %64 = vector.broadcast %63 : vector<1x32xf32> to vector<8x32xf32>
    %65 = arith.addf %62, %64 : vector<8x32xf32>
    %66 = arith.truncf %65 : vector<8x32xf32> to vector<8x32xbf16>
    %67 = arith.truncf %7 : vector<8x32xf32> to vector<8x32xbf16>
    %c0_48 = arith.constant 0 : index
    %c0_49 = arith.constant 0 : index
    %68 = vector.load %arg16[%c0_48, %c0_49] : memref<32x32xbf16, #tpu.memory_space<vmem>>, vector<32x32xbf16>
    %cst_50 = arith.constant dense<0.000000e+00> : vector<8x32xf32>
    %69 = tpu.matmul %66, %68, %cst_50 {dimension_numbers = #tpu.dot_dimension_numbers<[1], [0], [0], [1], [0, 0, 1, 1], [], []>} : vector<8x32xbf16>, vector<32x32xbf16>, vector<8x32xf32> -> vector<8x32xf32>
    %c0_51 = arith.constant 0 : index
    %c0_52 = arith.constant 0 : index
    %70 = vector.load %arg17[%c0_51, %c0_52] : memref<32x32xbf16, #tpu.memory_space<vmem>>, vector<32x32xbf16>
    %cst_53 = arith.constant dense<0.000000e+00> : vector<8x32xf32>
    %71 = tpu.matmul %67, %70, %cst_53 {dimension_numbers = #tpu.dot_dimension_numbers<[1], [0], [0], [1], [0, 0, 1, 1], [], []>} : vector<8x32xbf16>, vector<32x32xbf16>, vector<8x32xf32> -> vector<8x32xf32>
    %72 = arith.addf %69, %71 : vector<8x32xf32>
    %c0_54 = arith.constant 0 : index
    %c0_55 = arith.constant 0 : index
    %73 = vector.load %arg18[%c0_54, %c0_55] : memref<1x32xf32, #tpu.memory_space<vmem>>, vector<1x32xf32>
    %74 = vector.broadcast %73 : vector<1x32xf32> to vector<8x32xf32>
    %75 = arith.addf %72, %74 : vector<8x32xf32>
    %c0_56 = arith.constant 0 : index
    %c0_57 = arith.constant 0 : index
    %76 = vector.load %arg19[%c0_56, %c0_57] : memref<32x32xbf16, #tpu.memory_space<vmem>>, vector<32x32xbf16>
    %cst_58 = arith.constant dense<0.000000e+00> : vector<8x32xf32>
    %77 = tpu.matmul %66, %76, %cst_58 {dimension_numbers = #tpu.dot_dimension_numbers<[1], [0], [0], [1], [0, 0, 1, 1], [], []>} : vector<8x32xbf16>, vector<32x32xbf16>, vector<8x32xf32> -> vector<8x32xf32>
    %c0_59 = arith.constant 0 : index
    %c0_60 = arith.constant 0 : index
    %78 = vector.load %arg20[%c0_59, %c0_60] : memref<32x32xbf16, #tpu.memory_space<vmem>>, vector<32x32xbf16>
    %cst_61 = arith.constant dense<0.000000e+00> : vector<8x32xf32>
    %79 = tpu.matmul %67, %78, %cst_61 {dimension_numbers = #tpu.dot_dimension_numbers<[1], [0], [0], [1], [0, 0, 1, 1], [], []>} : vector<8x32xbf16>, vector<32x32xbf16>, vector<8x32xf32> -> vector<8x32xf32>
    %80 = arith.addf %77, %79 : vector<8x32xf32>
    %c0_62 = arith.constant 0 : index
    %c0_63 = arith.constant 0 : index
    %81 = vector.load %arg21[%c0_62, %c0_63] : memref<1x32xf32, #tpu.memory_space<vmem>>, vector<1x32xf32>
    %82 = vector.broadcast %81 : vector<1x32xf32> to vector<8x32xf32>
    %83 = arith.addf %80, %82 : vector<8x32xf32>
    %84 = arith.negf %75 : vector<8x32xf32>
    %85 = math.exp %84 : vector<8x32xf32>
    %cst_64 = arith.constant 1.000000e+00 : f32
    %86 = vector.broadcast %cst_64 : f32 to vector<8x32xf32>
    %87 = arith.addf %86, %85 : vector<8x32xf32>
    %88 = arith.divf %86, %87 : vector<8x32xf32>
    %89 = arith.mulf %88, %83 : vector<8x32xf32>
    %c0_65 = arith.constant 0 : index
    %c0_66 = arith.constant 0 : index
    %90 = vector.load %arg22[%c0_65, %c0_66] : memref<1x32xf32, #tpu.memory_space<vmem>>, vector<1x32xf32>
    %c0_67 = arith.constant 0 : index
    %c0_68 = arith.constant 0 : index
    %91 = vector.load %arg23[%c0_67, %c0_68] : memref<1x32xf32, #tpu.memory_space<vmem>>, vector<1x32xf32>
    %92 = arith.addf %89, %1 : vector<8x32xf32>
    %cst_69 = arith.constant dense<0.000000e+00> : vector<8xf32>
    %93 = vector.multi_reduction <add>, %92, %cst_69 [1] : vector<8x32xf32> to vector<8xf32>
    %94 = vector.shape_cast %93 : vector<8xf32> to vector<8x1xf32>
    %cst_70 = arith.constant 3.200000e+01 : f32
    %95 = vector.broadcast %cst_70 : f32 to vector<8x1xf32>
    %96 = arith.divf %94, %95 : vector<8x1xf32>
    %97 = vector.broadcast %96 : vector<8x1xf32> to vector<8x32xf32>
    %98 = arith.subf %92, %97 : vector<8x32xf32>
    %99 = arith.mulf %98, %98 : vector<8x32xf32>
    %cst_71 = arith.constant dense<0.000000e+00> : vector<8xf32>
    %100 = vector.multi_reduction <add>, %99, %cst_71 [1] : vector<8x32xf32> to vector<8xf32>
    %101 = vector.shape_cast %100 : vector<8xf32> to vector<8x1xf32>
    %cst_72 = arith.constant 3.200000e+01 : f32
    %102 = vector.broadcast %cst_72 : f32 to vector<8x1xf32>
    %103 = arith.divf %101, %102 : vector<8x1xf32>
    %104 = vector.broadcast %96 : vector<8x1xf32> to vector<8x32xf32>
    %105 = arith.subf %92, %104 : vector<8x32xf32>
    %cst_73 = arith.constant 9.99999974E-6 : f32
    %106 = vector.broadcast %cst_73 : f32 to vector<8x1xf32>
    %107 = arith.addf %103, %106 : vector<8x1xf32>
    %108 = math.rsqrt %107 : vector<8x1xf32>
    %109 = vector.broadcast %108 : vector<8x1xf32> to vector<8x32xf32>
    %110 = arith.mulf %105, %109 : vector<8x32xf32>
    %111 = vector.broadcast %90 : vector<1x32xf32> to vector<8x32xf32>
    %112 = arith.mulf %110, %111 : vector<8x32xf32>
    %113 = vector.broadcast %91 : vector<1x32xf32> to vector<8x32xf32>
    %114 = arith.addf %112, %113 : vector<8x32xf32>
    %115 = arith.truncf %114 : vector<8x32xf32> to vector<8x32xbf16>
    %c0_74 = arith.constant 0 : index
    %c0_75 = arith.constant 0 : index
    %116 = vector.load %arg24[%c0_74, %c0_75] : memref<32x128xbf16, #tpu.memory_space<vmem>>, vector<32x128xbf16>
    %cst_76 = arith.constant dense<0.000000e+00> : vector<8x128xf32>
    %117 = tpu.matmul %115, %116, %cst_76 {dimension_numbers = #tpu.dot_dimension_numbers<[1], [0], [0], [1], [0, 0, 1, 1], [], []>} : vector<8x32xbf16>, vector<32x128xbf16>, vector<8x128xf32> -> vector<8x128xf32>
    %c0_77 = arith.constant 0 : index
    %c0_78 = arith.constant 0 : index
    %118 = vector.load %arg25[%c0_77, %c0_78] : memref<1x128xf32, #tpu.memory_space<vmem>>, vector<1x128xf32>
    %119 = vector.broadcast %118 : vector<1x128xf32> to vector<8x128xf32>
    %120 = arith.addf %117, %119 : vector<8x128xf32>
    %cst_79 = arith.constant 0.707106769 : f32
    %121 = vector.broadcast %cst_79 : f32 to vector<8x128xf32>
    %122 = arith.mulf %120, %121 : vector<8x128xf32>
    %123 = math.absf %122 : vector<8x128xf32>
    %cst_80 = arith.constant 0.327591091 : f32
    %124 = vector.broadcast %cst_80 : f32 to vector<8x128xf32>
    %125 = arith.mulf %124, %123 : vector<8x128xf32>
    %cst_81 = arith.constant 1.000000e+00 : f32
    %126 = vector.broadcast %cst_81 : f32 to vector<8x128xf32>
    %127 = arith.addf %126, %125 : vector<8x128xf32>
    %cst_82 = arith.constant 1.000000e+00 : f32
    %128 = vector.broadcast %cst_82 : f32 to vector<8x128xf32>
    %129 = arith.divf %128, %127 : vector<8x128xf32>
    %cst_83 = arith.constant 1.06140542 : f32
    %130 = vector.broadcast %cst_83 : f32 to vector<8x128xf32>
    %131 = arith.mulf %129, %130 : vector<8x128xf32>
    %cst_84 = arith.constant -1.45315206 : f32
    %132 = vector.broadcast %cst_84 : f32 to vector<8x128xf32>
    %133 = arith.addf %132, %131 : vector<8x128xf32>
    %134 = arith.mulf %129, %133 : vector<8x128xf32>
    %cst_85 = arith.constant 1.42141378 : f32
    %135 = vector.broadcast %cst_85 : f32 to vector<8x128xf32>
    %136 = arith.addf %135, %134 : vector<8x128xf32>
    %137 = arith.mulf %129, %136 : vector<8x128xf32>
    %cst_86 = arith.constant -0.284496725 : f32
    %138 = vector.broadcast %cst_86 : f32 to vector<8x128xf32>
    %139 = arith.addf %138, %137 : vector<8x128xf32>
    %140 = arith.mulf %129, %139 : vector<8x128xf32>
    %cst_87 = arith.constant 0.254829586 : f32
    %141 = vector.broadcast %cst_87 : f32 to vector<8x128xf32>
    %142 = arith.addf %141, %140 : vector<8x128xf32>
    %143 = arith.mulf %129, %142 : vector<8x128xf32>
    %cst_88 = arith.constant 0.000000e+00 : f32
    %144 = vector.broadcast %cst_88 : f32 to vector<8x128xf32>
    %145 = arith.subf %144, %123 : vector<8x128xf32>
    %146 = arith.mulf %145, %123 : vector<8x128xf32>
    %147 = math.exp %146 : vector<8x128xf32>
    %148 = arith.mulf %143, %147 : vector<8x128xf32>
    %cst_89 = arith.constant 1.000000e+00 : f32
    %149 = vector.broadcast %cst_89 : f32 to vector<8x128xf32>
    %150 = arith.subf %149, %148 : vector<8x128xf32>
    %cst_90 = arith.constant 0.000000e+00 : f32
    %151 = vector.broadcast %cst_90 : f32 to vector<8x128xf32>
    %152 = arith.cmpf oge, %122, %151 : vector<8x128xf32>
    %cst_91 = arith.constant 0.000000e+00 : f32
    %153 = vector.broadcast %cst_91 : f32 to vector<8x128xf32>
    %154 = arith.subf %153, %150 : vector<8x128xf32>
    %155 = arith.select %152, %150, %154 : vector<8x128xi1>, vector<8x128xf32>
    %cst_92 = arith.constant 5.000000e-01 : f32
    %156 = vector.broadcast %cst_92 : f32 to vector<8x128xf32>
    %157 = arith.mulf %156, %120 : vector<8x128xf32>
    %cst_93 = arith.constant 1.000000e+00 : f32
    %158 = vector.broadcast %cst_93 : f32 to vector<8x128xf32>
    %159 = arith.addf %158, %155 : vector<8x128xf32>
    %160 = arith.mulf %157, %159 : vector<8x128xf32>
    %161 = arith.truncf %160 : vector<8x128xf32> to vector<8x128xbf16>
    %c0_94 = arith.constant 0 : index
    %c0_95 = arith.constant 0 : index
    %162 = vector.load %arg26[%c0_94, %c0_95] : memref<128x32xbf16, #tpu.memory_space<vmem>>, vector<128x32xbf16>
    %cst_96 = arith.constant dense<0.000000e+00> : vector<8x32xf32>
    %163 = tpu.matmul %161, %162, %cst_96 {dimension_numbers = #tpu.dot_dimension_numbers<[1], [0], [0], [1], [0, 0, 1, 1], [], []>} : vector<8x128xbf16>, vector<128x32xbf16>, vector<8x32xf32> -> vector<8x32xf32>
    %c0_97 = arith.constant 0 : index
    %c0_98 = arith.constant 0 : index
    %164 = vector.load %arg27[%c0_97, %c0_98] : memref<1x32xf32, #tpu.memory_space<vmem>>, vector<1x32xf32>
    %165 = vector.broadcast %164 : vector<1x32xf32> to vector<8x32xf32>
    %166 = arith.addf %163, %165 : vector<8x32xf32>
    %167 = arith.addf %166, %114 : vector<8x32xf32>
    %cst_99 = arith.constant dense<0.000000e+00> : vector<8xf32>
    %168 = vector.multi_reduction <add>, %167, %cst_99 [1] : vector<8x32xf32> to vector<8xf32>
    %169 = vector.shape_cast %168 : vector<8xf32> to vector<8x1xf32>
    %cst_100 = arith.constant 3.200000e+01 : f32
    %170 = vector.broadcast %cst_100 : f32 to vector<8x1xf32>
    %171 = arith.divf %169, %170 : vector<8x1xf32>
    %172 = vector.broadcast %171 : vector<8x1xf32> to vector<8x32xf32>
    %173 = arith.subf %167, %172 : vector<8x32xf32>
    %174 = arith.mulf %173, %173 : vector<8x32xf32>
    %cst_101 = arith.constant dense<0.000000e+00> : vector<8xf32>
    %175 = vector.multi_reduction <add>, %174, %cst_101 [1] : vector<8x32xf32> to vector<8xf32>
    %176 = vector.shape_cast %175 : vector<8xf32> to vector<8x1xf32>
    %cst_102 = arith.constant 3.200000e+01 : f32
    %177 = vector.broadcast %cst_102 : f32 to vector<8x1xf32>
    %178 = arith.divf %176, %177 : vector<8x1xf32>
    %179 = vector.broadcast %171 : vector<8x1xf32> to vector<8x32xf32>
    %180 = arith.subf %167, %179 : vector<8x32xf32>
    %cst_103 = arith.constant 9.99999974E-6 : f32
    %181 = vector.broadcast %cst_103 : f32 to vector<8x1xf32>
    %182 = arith.addf %178, %181 : vector<8x1xf32>
    %183 = math.rsqrt %182 : vector<8x1xf32>
    %184 = vector.broadcast %183 : vector<8x1xf32> to vector<8x32xf32>
    %185 = arith.mulf %180, %184 : vector<8x32xf32>
    %186 = vector.broadcast %90 : vector<1x32xf32> to vector<8x32xf32>
    %187 = arith.mulf %185, %186 : vector<8x32xf32>
    %188 = vector.broadcast %91 : vector<1x32xf32> to vector<8x32xf32>
    %189 = arith.addf %187, %188 : vector<8x32xf32>
    %c0_104 = arith.constant 0 : index
    %c0_105 = arith.constant 0 : index
    %c0_106 = arith.constant 0 : index
    %190 = vector.load %arg28[%c0_104, %c0_105, %c0_106] : memref<1x8x32xf32, #tpu.memory_space<vmem>>, vector<1x8x32xf32>
    %191 = vector.shape_cast %190 : vector<1x8x32xf32> to vector<8x32xf32>
    %192 = vector.shape_cast %189 : vector<8x32xf32> to vector<1x8x32xf32>
    tpu.vector_store %arg28[%c0_104, %c0_105, %c0_106], %192 {strides = array<i32>} : memref<1x8x32xf32, #tpu.memory_space<vmem>>, vector<1x8x32xf32>,
    return
  }
  func.func @transform_0(%arg0: i32) -> (i32, i32, i32) {
    %c0_i32 = arith.constant 0 : i32
    %c0_i32_0 = arith.constant 0 : i32
    %c0_i32_1 = arith.constant 0 : i32
    return %arg0, %c0_i32, %c0_i32_0 : i32, i32, i32
  }
  func.func @transform_1(%arg0: i32) -> (i32, i32) {
    %c0_i32 = arith.constant 0 : i32
    %c0_i32_0 = arith.constant 0 : i32
    %c0_i32_1 = arith.constant 0 : i32
    return %c0_i32, %c0_i32_0 : i32, i32
  }
  func.func @transform_2(%arg0: i32) -> (i32, i32) {
    %c0_i32 = arith.constant 0 : i32
    %c0_i32_0 = arith.constant 0 : i32
    %c0_i32_1 = arith.constant 0 : i32
    return %c0_i32, %c0_i32_0 : i32, i32
  }
  func.func @transform_3(%arg0: i32) -> (i32, i32) {
    %c0_i32 = arith.constant 0 : i32
    %c0_i32_0 = arith.constant 0 : i32
    %c0_i32_1 = arith.constant 0 : i32
    return %c0_i32, %c0_i32_0 : i32, i32
  }
  func.func @transform_4(%arg0: i32) -> (i32, i32) {
    %c0_i32 = arith.constant 0 : i32
    %c0_i32_0 = arith.constant 0 : i32
    %c0_i32_1 = arith.constant 0 : i32
    return %c0_i32, %c0_i32_0 : i32, i32
  }
  func.func @transform_5(%arg0: i32) -> (i32, i32) {
    %c0_i32 = arith.constant 0 : i32
    %c0_i32_0 = arith.constant 0 : i32
    %c0_i32_1 = arith.constant 0 : i32
    return %c0_i32, %c0_i32_0 : i32, i32
  }
  func.func @transform_6(%arg0: i32) -> (i32, i32) {
    %c0_i32 = arith.constant 0 : i32
    %c0_i32_0 = arith.constant 0 : i32
    %c0_i32_1 = arith.constant 0 : i32
    return %c0_i32, %c0_i32_0 : i32, i32
  }
  func.func @transform_7(%arg0: i32) -> (i32, i32, i32) {
    %c0_i32 = arith.constant 0 : i32
    %c0_i32_0 = arith.constant 0 : i32
    %c0_i32_1 = arith.constant 0 : i32
    %c0_i32_2 = arith.constant 0 : i32
    return %c0_i32, %c0_i32_0, %c0_i32_1 : i32, i32, i32
  }
  func.func @transform_8(%arg0: i32) -> (i32, i32, i32) {
    %c0_i32 = arith.constant 0 : i32
    %c0_i32_0 = arith.constant 0 : i32
    %c0_i32_1 = arith.constant 0 : i32
    %c0_i32_2 = arith.constant 0 : i32
    return %c0_i32, %c0_i32_0, %c0_i32_1 : i32, i32, i32
  }
  func.func @transform_9(%arg0: i32) -> (i32, i32, i32) {
    %c0_i32 = arith.constant 0 : i32
    %c0_i32_0 = arith.constant 0 : i32
    %c0_i32_1 = arith.constant 0 : i32
    %c0_i32_2 = arith.constant 0 : i32
    return %c0_i32, %c0_i32_0, %c0_i32_1 : i32, i32, i32
  }
  func.func @transform_10(%arg0: i32) -> (i32, i32, i32) {
    %c0_i32 = arith.constant 0 : i32
    %c0_i32_0 = arith.constant 0 : i32
    %c0_i32_1 = arith.constant 0 : i32
    %c0_i32_2 = arith.constant 0 : i32
    return %c0_i32, %c0_i32_0, %c0_i32_1 : i32, i32, i32
  }
  func.func @transform_11(%arg0: i32) -> (i32, i32, i32) {
    %c0_i32 = arith.constant 0 : i32
    %c0_i32_0 = arith.constant 0 : i32
    %c0_i32_1 = arith.constant 0 : i32
    %c0_i32_2 = arith.constant 0 : i32
    return %c0_i32, %c0_i32_0, %c0_i32_1 : i32, i32, i32
  }
  func.func @transform_12(%arg0: i32) -> (i32, i32, i32) {
    %c0_i32 = arith.constant 0 : i32
    %c0_i32_0 = arith.constant 0 : i32
    %c0_i32_1 = arith.constant 0 : i32
    %c0_i32_2 = arith.constant 0 : i32
    return %c0_i32, %c0_i32_0, %c0_i32_1 : i32, i32, i32
  }
  func.func @transform_13(%arg0: i32) -> (i32, i32, i32) {
    %c0_i32 = arith.constant 0 : i32
    %c0_i32_0 = arith.constant 0 : i32
    %c0_i32_1 = arith.constant 0 : i32
    %c0_i32_2 = arith.constant 0 : i32
    return %c0_i32, %c0_i32_0, %c0_i32_1 : i32, i32, i32
  }
  func.func @transform_14(%arg0: i32) -> (i32, i32) {
    %c0_i32 = arith.constant 0 : i32
    %c0_i32_0 = arith.constant 0 : i32
    %c0_i32_1 = arith.constant 0 : i32
    return %c0_i32, %c0_i32_0 : i32, i32
  }
  func.func @transform_15(%arg0: i32) -> (i32, i32) {
    %c0_i32 = arith.constant 0 : i32
    %c0_i32_0 = arith.constant 0 : i32
    %c0_i32_1 = arith.constant 0 : i32
    return %c0_i32, %c0_i32_0 : i32, i32
  }
  func.func @transform_16(%arg0: i32) -> (i32, i32) {
    %c0_i32 = arith.constant 0 : i32
    %c0_i32_0 = arith.constant 0 : i32
    %c0_i32_1 = arith.constant 0 : i32
    return %c0_i32, %c0_i32_0 : i32, i32
  }
  func.func @transform_17(%arg0: i32) -> (i32, i32) {
    %c0_i32 = arith.constant 0 : i32
    %c0_i32_0 = arith.constant 0 : i32
    %c0_i32_1 = arith.constant 0 : i32
    return %c0_i32, %c0_i32_0 : i32, i32
  }
  func.func @transform_18(%arg0: i32) -> (i32, i32) {
    %c0_i32 = arith.constant 0 : i32
    %c0_i32_0 = arith.constant 0 : i32
    %c0_i32_1 = arith.constant 0 : i32
    return %c0_i32, %c0_i32_0 : i32, i32
  }
  func.func @transform_19(%arg0: i32) -> (i32, i32) {
    %c0_i32 = arith.constant 0 : i32
    %c0_i32_0 = arith.constant 0 : i32
    %c0_i32_1 = arith.constant 0 : i32
    return %c0_i32, %c0_i32_0 : i32, i32
  }
  func.func @transform_20(%arg0: i32) -> (i32, i32) {
    %c0_i32 = arith.constant 0 : i32
    %c0_i32_0 = arith.constant 0 : i32
    %c0_i32_1 = arith.constant 0 : i32
    return %c0_i32, %c0_i32_0 : i32, i32
  }
  func.func @transform_21(%arg0: i32) -> (i32, i32) {
    %c0_i32 = arith.constant 0 : i32
    %c0_i32_0 = arith.constant 0 : i32
    %c0_i32_1 = arith.constant 0 : i32
    return %c0_i32, %c0_i32_0 : i32, i32
  }
  func.func @transform_22(%arg0: i32) -> (i32, i32) {
    %c0_i32 = arith.constant 0 : i32
    %c0_i32_0 = arith.constant 0 : i32
    %c0_i32_1 = arith.constant 0 : i32
    return %c0_i32, %c0_i32_0 : i32, i32
  }
  func.func @transform_23(%arg0: i32) -> (i32, i32) {
    %c0_i32 = arith.constant 0 : i32
    %c0_i32_0 = arith.constant 0 : i32
    %c0_i32_1 = arith.constant 0 : i32
    return %c0_i32, %c0_i32_0 : i32, i32
  }
  func.func @transform_24(%arg0: i32) -> (i32, i32) {
    %c0_i32 = arith.constant 0 : i32
    %c0_i32_0 = arith.constant 0 : i32
    %c0_i32_1 = arith.constant 0 : i32
    return %c0_i32, %c0_i32_0 : i32, i32
  }
  func.func @transform_25(%arg0: i32) -> (i32, i32) {
    %c0_i32 = arith.constant 0 : i32
    %c0_i32_0 = arith.constant 0 : i32
    %c0_i32_1 = arith.constant 0 : i32
    return %c0_i32, %c0_i32_0 : i32, i32
  }
  func.func @transform_26(%arg0: i32) -> (i32, i32) {
    %c0_i32 = arith.constant 0 : i32
    %c0_i32_0 = arith.constant 0 : i32
    %c0_i32_1 = arith.constant 0 : i32
    return %c0_i32, %c0_i32_0 : i32, i32
  }
  func.func @transform_27(%arg0: i32) -> (i32, i32, i32) {
    %c0_i32 = arith.constant 0 : i32
    %c0_i32_0 = arith.constant 0 : i32
    %c0_i32_1 = arith.constant 0 : i32
    return %arg0, %c0_i32, %c0_i32_0 : i32, i32, i32
  }
}

</mosaic_0001>

<llo_original>
// kernel: aoa_forward.1
$region0: #{aoa_forward.1}
  #allocation0 [shape = 'u32[]', space=smem, size = 0x4, offset = 0x4, fixed_abs, tag = 'smem constant byte address 0x4 - core index']
  #allocation1 [shape = 'u32[144,128]{1,0:T(1,128)}', space=vmem, size = 0x12000, scoped, tag = 'internal scratch']
  %s0 = inlined_call_operand.vmem [shape: f32[2,8,32], index: 0, kind: input, shape index: {}]
  %s1 = inlined_call_operand.vmem [shape: bf16[32,32], index: 1, kind: input, shape index: {}]
  %s2 = inlined_call_operand.vmem [shape: f32[1,32], index: 2, kind: input, shape index: {}]
  %s3 = inlined_call_operand.vmem [shape: bf16[32,32], index: 3, kind: input, shape index: {}]
  %s4 = inlined_call_operand.vmem [shape: f32[1,32], index: 4, kind: input, shape index: {}]
  %s5 = inlined_call_operand.vmem [shape: bf16[32,32], index: 5, kind: input, shape index: {}]
  %s6 = inlined_call_operand.vmem [shape: f32[1,32], index: 6, kind: input, shape index: {}]
  %s7 = inlined_call_operand.vmem [shape: bf16[4,32,8], index: 7, kind: input, shape index: {}]
  %s8 = inlined_call_operand.vmem [shape: f32[4,1,8], index: 8, kind: input, shape index: {}]
  %s9 = inlined_call_operand.vmem [shape: bf16[4,32,8], index: 9, kind: input, shape index: {}]
  %s10 = inlined_call_operand.vmem [shape: f32[4,1,8], index: 10, kind: input, shape index: {}]
  %s11 = inlined_call_operand.vmem [shape: bf16[4,32,8], index: 11, kind: input, shape index: {}]
  %s12 = inlined_call_operand.vmem [shape: f32[4,1,8], index: 12, kind: input, shape index: {}]
  %s13 = inlined_call_operand.vmem [shape: bf16[4,8,32], index: 13, kind: input, shape index: {}]
  %s14 = inlined_call_operand.vmem [shape: f32[1,32], index: 14, kind: input, shape index: {}]
  %s15 = inlined_call_operand.vmem [shape: bf16[32,32], index: 15, kind: input, shape index: {}]
  %s16 = inlined_call_operand.vmem [shape: bf16[32,32], index: 16, kind: input, shape index: {}]
  %s17 = inlined_call_operand.vmem [shape: f32[1,32], index: 17, kind: input, shape index: {}]
  %s18 = inlined_call_operand.vmem [shape: bf16[32,32], index: 18, kind: input, shape index: {}]
  %s19 = inlined_call_operand.vmem [shape: bf16[32,32], index: 19, kind: input, shape index: {}]
  %s20 = inlined_call_operand.vmem [shape: f32[1,32], index: 20, kind: input, shape index: {}]
  %s21 = inlined_call_operand.vmem [shape: f32[1,32], index: 21, kind: input, shape index: {}]
  %s22 = inlined_call_operand.vmem [shape: f32[1,32], index: 22, kind: input, shape index: {}]
  %s23 = inlined_call_operand.vmem [shape: bf16[32,128], index: 23, kind: input, shape index: {}]
  %s24 = inlined_call_operand.vmem [shape: f32[1,128], index: 24, kind: input, shape index: {}]
  %s25 = inlined_call_operand.vmem [shape: bf16[128,32], index: 25, kind: input, shape index: {}]
  %s26 = inlined_call_operand.vmem [shape: f32[1,32], index: 26, kind: input, shape index: {}]
  %s27 = inlined_call_operand.vmem [shape: f32[2,8,32], index: 27, kind: output, shape index: {}]
  %s28 = sld [smem:[#allocation0]]
  $region141: #{aoa_forward.1} parent=0
    _
  %s30 = ssub.s32 1, %s28
  %s31 = scalar_select 0, %s30, %s28
  loop: start=0, step=1, limit=4
  $region2: #{aoa_forward.1} parent=0 // loop_pre_header
    _
  $region3: #{aoa_forward.1} parent=0 // loop_header
    %s33 = sphi 0, %s37
    %p34 = scmp.ge.s32.totalorder %s33, 4
    %s43 = sphi 0, %s45
    %s46 = sphi 0, %s43
    %s47 = sphi 0, %s46
    %s63 = sphi 0, %s47
    %s67 = sphi 0, %s67
    %s69 = sphi 0, %s67
    %s70 = sphi 0, %s69
    %s84 = sphi 0, %s70
    %s88 = sphi 0, %s88
    %s90 = sphi 0, %s88
    %s91 = sphi 0, %s90
    %s105 = sphi 0, %s91
    %s109 = sphi 0, %s109
    %s111 = sphi 0, %s109
    %s112 = sphi 0, %s111
    %s126 = sphi 0, %s112
    %s130 = sphi 0, %s130
    %s132 = sphi 0, %s130
    %s133 = sphi 0, %s132
    %s147 = sphi 0, %s133
    %s151 = sphi 0, %s151
    %s153 = sphi 0, %s151
    %s154 = sphi 0, %s153
    %s168 = sphi 0, %s154
    %s172 = sphi 0, %s172
    %s174 = sphi 0, %s172
    %s175 = sphi 0, %s174
    %s189 = sphi 0, %s175
    %s193 = sphi 0, %s193
    %s195 = sphi 0, %s193
    %s196 = sphi 0, %s195
    %s210 = sphi 0, %s196
    %s214 = sphi 0, %s214
    %s216 = sphi 0, %s214
    %s217 = sphi 0, %s216
    %s231 = sphi 0, %s217
    %s235 = sphi 0, %s235
    %s237 = sphi 0, %s235
    %s238 = sphi 0, %s237
    %s252 = sphi 0, %s238
    %s256 = sphi 0, %s256
    %s258 = sphi 0, %s256
    %s259 = sphi 0, %s258
    %s273 = sphi 0, %s259
    %s277 = sphi 0, %s277
    %s279 = sphi 0, %s277
    %s280 = sphi 0, %s279
    %s294 = sphi 0, %s280
    %s298 = sphi 0, %s298
    %s300 = sphi 0, %s298
    %s301 = sphi 0, %s300
    %s315 = sphi 0, %s301
    %s319 = sphi 0, %s319
    %s321 = sphi 0, %s319
    %s322 = sphi 0, %s321
    %s336 = sphi 0, %s322
    %s340 = sphi 0, %s340
    %s342 = sphi 0, %s340
    %s343 = sphi 0, %s342
    %s357 = sphi 0, %s343
    %s361 = sphi 0, %s361
    %s363 = sphi 0, %s361
    %s364 = sphi 0, %s363
    %s378 = sphi 0, %s364
    %s382 = sphi 0, %s382
    %s384 = sphi 0, %s382
    %s385 = sphi 0, %s384
    %s399 = sphi 0, %s385
    %s403 = sphi 0, %s403
    %s405 = sphi 0, %s403
    %s406 = sphi 0, %s405
    %s420 = sphi 0, %s406
    %s424 = sphi 0, %s424
    %s426 = sphi 0, %s424
    %s427 = sphi 0, %s426
    %s441 = sphi 0, %s427
    %s445 = sphi 0, %s445
    %s447 = sphi 0, %s445
    %s448 = sphi 0, %s447
    %s462 = sphi 0, %s448
    %s466 = sphi 0, %s466
    %s468 = sphi 0, %s466
    %s469 = sphi 0, %s468
    %s483 = sphi 0, %s469
    %s487 = sphi 0, %s487
    %s489 = sphi 0, %s487
    %s490 = sphi 0, %s489
    %s504 = sphi 0, %s490
    %s508 = sphi 0, %s508
    %s510 = sphi 0, %s508
    %s511 = sphi 0, %s510
    %s525 = sphi 0, %s511
    %s529 = sphi 0, %s529
    %s531 = sphi 0, %s529
    %s532 = sphi 0, %s531
    %s546 = sphi 0, %s532
    %s550 = sphi 0, %s550
    %s552 = sphi 0, %s550
    %s553 = sphi 0, %s552
    %s567 = sphi 0, %s553
    %s571 = sphi 0, %s571
    %s573 = sphi 0, %s571
    %s574 = sphi 0, %s573
    %s588 = sphi 0, %s574
    %s592 = sphi 0, %s592
    %s594 = sphi 0, %s592
    %s595 = sphi 0, %s594
    %s609 = sphi 0, %s595
    %s615 = sphi 0, %s617
    %s618 = sphi 0, %s615
    %s619 = sphi 0, %s618
    %s635 = sphi 0, %s619
  $region4: #{aoa_forward.1} parent=0 // loop_header_branch
    %36 = sbr.rel (%p34) target = $region8
  $region5: #{aoa_forward.1} parent=0 // loop_body
    %s38 = ssub.s32 %s33, 1
    %s39 = ssub.s32 %s33, 2
    %s40 = sadd.s32 %s33, 1
    %s41 = ssub.s32 %s33, %s40
    %p42 = scmp.eq.s32.totalorder %s41, 0
    %s44 = sadd.s32 %s43, 1
    %s45 = scalar_select %p42, %s43, %s44
    %p48 = pneg %p42
    %p49 = scmp.eq.s32.totalorder %s33, 1
    %p50 = por %p48, %p49
    %p51 = scmp.ne.s32.totalorder %s43, %s46
    %p52 = scmp.eq.s32.totalorder %s33, 0
    %p53 = por %p51, %p52
    %p54 = scmp.ne.s32.totalorder %s43, %s46
    %p55 = scmp.eq.s32.totalorder %s38, 1
    %p56 = por %p54, %p55
    %p57 = scmp.ne.s32.totalorder %s46, %s47
    %p58 = scmp.eq.s32.totalorder %s38, 0
    %p59 = por %p57, %p58
    %p60 = scmp.ne.s32.totalorder %s46, %s47
    %p61 = scmp.eq.s32.totalorder %s39, 1
    %p62 = por %p60, %p61
    %p64 = scmp.ne.s32.totalorder %s47, %s63
    %p65 = scmp.eq.s32.totalorder %s39, 0
    %p66 = por %p64, %p65
    %s68 = sadd.s32 %s67, 1
    %p71 = scmp.eq.s32.totalorder %s33, 1
    %p72 = scmp.ne.s32.totalorder %s67, %s69
    %p73 = scmp.eq.s32.totalorder %s33, 0
    %p74 = por %p72, %p73
    %p75 = scmp.ne.s32.totalorder %s67, %s69
    %p76 = scmp.eq.s32.totalorder %s38, 1
    %p77 = por %p75, %p76
    %p78 = scmp.ne.s32.totalorder %s69, %s70
    %p79 = scmp.eq.s32.totalorder %s38, 0
    %p80 = por %p78, %p79
    %p81 = scmp.ne.s32.totalorder %s69, %s70
    %p82 = scmp.eq.s32.totalorder %s39, 1
    %p83 = por %p81, %p82
    %p85 = scmp.ne.s32.totalorder %s70, %s84
    %p86 = scmp.eq.s32.totalorder %s39, 0
    %p87 = por %p85, %p86
    %s89 = sadd.s32 %s88, 1
    %p92 = scmp.eq.s32.totalorder %s33, 1
    %p93 = scmp.ne.s32.totalorder %s88, %s90
    %p94 = scmp.eq.s32.totalorder %s33, 0
    %p95 = por %p93, %p94
    %p96 = scmp.ne.s32.totalorder %s88, %s90
    %p97 = scmp.eq.s32.totalorder %s38, 1
    %p98 = por %p96, %p97
    %p99 = scmp.ne.s32.totalorder %s90, %s91
    %p100 = scmp.eq.s32.totalorder %s38, 0
    %p101 = por %p99, %p100
    %p102 = scmp.ne.s32.totalorder %s90, %s91
    %p103 = scmp.eq.s32.totalorder %s39, 1
    %p104 = por %p102, %p103
    %p106 = scmp.ne.s32.totalorder %s91, %s105
    %p107 = scmp.eq.s32.totalorder %s39, 0
    %p108 = por %p106, %p107
    %s110 = sadd.s32 %s109, 1
    %p113 = scmp.eq.s32.totalorder %s33, 1
    %p114 = scmp.ne.s32.totalorder %s109, %s111
    %p115 = scmp.eq.s32.totalorder %s33, 0
    %p116 = por %p114, %p115
    %p117 = scmp.ne.s32.totalorder %s109, %s111
    %p118 = scmp.eq.s32.totalorder %s38, 1
    %p119 = por %p117, %p118
    %p120 = scmp.ne.s32.totalorder %s111, %s112
    %p121 = scmp.eq.s32.totalorder %s38, 0
    %p122 = por %p120, %p121
    %p123 = scmp.ne.s32.totalorder %s111, %s112
    %p124 = scmp.eq.s32.totalorder %s39, 1
    %p125 = por %p123, %p124
    %p127 = scmp.ne.s32.totalorder %s112, %s126
    %p128 = scmp.eq.s32.totalorder %s39, 0
    %p129 = por %p127, %p128
    %s131 = sadd.s32 %s130, 1
    %p134 = scmp.eq.s32.totalorder %s33, 1
    %p135 = scmp.ne.s32.totalorder %s130, %s132
    %p136 = scmp.eq.s32.totalorder %s33, 0
    %p137 = por %p135, %p136
    %p138 = scmp.ne.s32.totalorder %s130, %s132
    %p139 = scmp.eq.s32.totalorder %s38, 1
    %p140 = por %p138, %p139
    %p141 = scmp.ne.s32.totalorder %s132, %s133
    %p142 = scmp.eq.s32.totalorder %s38, 0
    %p143 = por %p141, %p142
    %p144 = scmp.ne.s32.totalorder %s132, %s133
    %p145 = scmp.eq.s32.totalorder %s39, 1
    %p146 = por %p144, %p145
    %p148 = scmp.ne.s32.totalorder %s133, %s147
    %p149 = scmp.eq.s32.totalorder %s39, 0
    %p150 = por %p148, %p149
    %s152 = sadd.s32 %s151, 1
    %p155 = scmp.eq.s32.totalorder %s33, 1
    %p156 = scmp.ne.s32.totalorder %s151, %s153
    %p157 = scmp.eq.s32.totalorder %s33, 0
    %p158 = por %p156, %p157
    %p159 = scmp.ne.s32.totalorder %s151, %s153
    %p160 = scmp.eq.s32.totalorder %s38, 1
    %p161 = por %p159, %p160
    %p162 = scmp.ne.s32.totalorder %s153, %s154
    %p163 = scmp.eq.s32.totalorder %s38, 0
    %p164 = por %p162, %p163
    %p165 = scmp.ne.s32.totalorder %s153, %s154
    %p166 = scmp.eq.s32.totalorder %s39, 1
    %p167 = por %p165, %p166
    %p169 = scmp.ne.s32.totalorder %s154, %s168
    %p170 = scmp.eq.s32.totalorder %s39, 0
    %p171 = por %p169, %p170
    %s173 = sadd.s32 %s172, 1
    %p176 = scmp.eq.s32.totalorder %s33, 1
    %p177 = scmp.ne.s32.totalorder %s172, %s174
    %p178 = scmp.eq.s32.totalorder %s33, 0
    %p179 = por %p177, %p178
    %p180 = scmp.ne.s32.totalorder %s172, %s174
    %p181 = scmp.eq.s32.totalorder %s38, 1
    %p182 = por %p180, %p181
    %p183 = scmp.ne.s32.totalorder %s174, %s175
    %p184 = scmp.eq.s32.totalorder %s38, 0
    %p185 = por %p183, %p184
    %p186 = scmp.ne.s32.totalorder %s174, %s175
    %p187 = scmp.eq.s32.totalorder %s39, 1
    %p188 = por %p186, %p187
    %p190 = scmp.ne.s32.totalorder %s175, %s189
    %p191 = scmp.eq.s32.totalorder %s39, 0
    %p192 = por %p190, %p191
    %s194 = sadd.s32 %s193, 1
    %p197 = scmp.eq.s32.totalorder %s33, 1
    %p198 = scmp.ne.s32.totalorder %s193, %s195
    %p199 = scmp.eq.s32.totalorder %s33, 0
    %p200 = por %p198, %p199
    %p201 = scmp.ne.s32.totalorder %s193, %s195
    %p202 = scmp.eq.s32.totalorder %s38, 1
    %p203 = por %p201, %p202
    %p204 = scmp.ne.s32.totalorder %s195, %s196
    %p205 = scmp.eq.s32.totalorder %s38, 0
    %p206 = por %p204, %p205
    %p207 = scmp.ne.s32.totalorder %s195, %s196
    %p208 = scmp.eq.s32.totalorder %s39, 1
    %p209 = por %p207, %p208
    %p211 = scmp.ne.s32.totalorder %s196, %s210
    %p212 = scmp.eq.s32.totalorder %s39, 0
    %p213 = por %p211, %p212
    %s215 = sadd.s32 %s214, 1
    %p218 = scmp.eq.s32.totalorder %s33, 1
    %p219 = scmp.ne.s32.totalorder %s214, %s216
    %p220 = scmp.eq.s32.totalorder %s33, 0
    %p221 = por %p219, %p220
    %p222 = scmp.ne.s32.totalorder %s214, %s216
    %p223 = scmp.eq.s32.totalorder %s38, 1
    %p224 = por %p222, %p223
    %p225 = scmp.ne.s32.totalorder %s216, %s217
    %p226 = scmp.eq.s32.totalorder %s38, 0
    %p227 = por %p225, %p226
    %p228 = scmp.ne.s32.totalorder %s216, %s217
    %p229 = scmp.eq.s32.totalorder %s39, 1
    %p230 = por %p228, %p229
    %p232 = scmp.ne.s32.totalorder %s217, %s231
    %p233 = scmp.eq.s32.totalorder %s39, 0
    %p234 = por %p232, %p233
    %s236 = sadd.s32 %s235, 1
    %p239 = scmp.eq.s32.totalorder %s33, 1
    %p240 = scmp.ne.s32.totalorder %s235, %s237
    %p241 = scmp.eq.s32.totalorder %s33, 0
    %p242 = por %p240, %p241
    %p243 = scmp.ne.s32.totalorder %s235, %s237
    %p244 = scmp.eq.s32.totalorder %s38, 1
    %p245 = por %p243, %p244
    %p246 = scmp.ne.s32.totalorder %s237, %s238
    %p247 = scmp.eq.s32.totalorder %s38, 0
    %p248 = por %p246, %p247
    %p249 = scmp.ne.s32.totalorder %s237, %s238
    %p250 = scmp.eq.s32.totalorder %s39, 1
    %p251 = por %p249, %p250
    %p253 = scmp.ne.s32.totalorder %s238, %s252
    %p254 = scmp.eq.s32.totalorder %s39, 0
    %p255 = por %p253, %p254
    %s257 = sadd.s32 %s256, 1
    %p260 = scmp.eq.s32.totalorder %s33, 1
    %p261 = scmp.ne.s32.totalorder %s256, %s258
    %p262 = scmp.eq.s32.totalorder %s33, 0
    %p263 = por %p261, %p262
    %p264 = scmp.ne.s32.totalorder %s256, %s258
    %p265 = scmp.eq.s32.totalorder %s38, 1
    %p266 = por %p264, %p265
    %p267 = scmp.ne.s32.totalorder %s258, %s259
    %p268 = scmp.eq.s32.totalorder %s38, 0
    %p269 = por %p267, %p268
    %p270 = scmp.ne.s32.totalorder %s258, %s259
    %p271 = scmp.eq.s32.totalorder %s39, 1
    %p272 = por %p270, %p271
    %p274 = scmp.ne.s32.totalorder %s259, %s273
    %p275 = scmp.eq.s32.totalorder %s39, 0
    %p276 = por %p274, %p275
    %s278 = sadd.s32 %s277, 1
    %p281 = scmp.eq.s32.totalorder %s33, 1
    %p282 = scmp.ne.s32.totalorder %s277, %s279
    %p283 = scmp.eq.s32.totalorder %s33, 0
    %p284 = por %p282, %p283
    %p285 = scmp.ne.s32.totalorder %s277, %s279
    %p286 = scmp.eq.s32.totalorder %s38, 1
    %p287 = por %p285, %p286
    %p288 = scmp.ne.s32.totalorder %s279, %s280
    %p289 = scmp.eq.s32.totalorder %s38, 0
    %p290 = por %p288, %p289
    %p291 = scmp.ne.s32.totalorder %s279, %s280
    %p292 = scmp.eq.s32.totalorder %s39, 1
    %p293 = por %p291, %p292
    %p295 = scmp.ne.s32.totalorder %s280, %s294
    %p296 = scmp.eq.s32.totalorder %s39, 0
    %p297 = por %p295, %p296
    %s299 = sadd.s32 %s298, 1
    %p302 = scmp.eq.s32.totalorder %s33, 1
    %p303 = scmp.ne.s32.totalorder %s298, %s300
    %p304 = scmp.eq.s32.totalorder %s33, 0
    %p305 = por %p303, %p304
    %p306 = scmp.ne.s32.totalorder %s298, %s300
    %p307 = scmp.eq.s32.totalorder %s38, 1
    %p308 = por %p306, %p307
    %p309 = scmp.ne.s32.totalorder %s300, %s301
    %p310 = scmp.eq.s32.totalorder %s38, 0
    %p311 = por %p309, %p310
    %p312 = scmp.ne.s32.totalorder %s300, %s301
    %p313 = scmp.eq.s32.totalorder %s39, 1
    %p314 = por %p312, %p313
    %p316 = scmp.ne.s32.totalorder %s301, %s315
    %p317 = scmp.eq.s32.totalorder %s39, 0
    %p318 = por %p316, %p317
    %s320 = sadd.s32 %s319, 1
    %p323 = scmp.eq.s32.totalorder %s33, 1
    %p324 = scmp.ne.s32.totalorder %s319, %s321
    %p325 = scmp.eq.s32.totalorder %s33, 0
    %p326 = por %p324, %p325
    %p327 = scmp.ne.s32.totalorder %s319, %s321
    %p328 = scmp.eq.s32.totalorder %s38, 1
    %p329 = por %p327, %p328
    %p330 = scmp.ne.s32.totalorder %s321, %s322
    %p331 = scmp.eq.s32.totalorder %s38, 0
    %p332 = por %p330, %p331
    %p333 = scmp.ne.s32.totalorder %s321, %s322
    %p334 = scmp.eq.s32.totalorder %s39, 1
    %p335 = por %p333, %p334
    %p337 = scmp.ne.s32.totalorder %s322, %s336
    %p338 = scmp.eq.s32.totalorder %s39, 0
    %p339 = por %p337, %p338
    %s341 = sadd.s32 %s340, 1
    %p344 = scmp.eq.s32.totalorder %s33, 1
    %p345 = scmp.ne.s32.totalorder %s340, %s342
    %p346 = scmp.eq.s32.totalorder %s33, 0
    %p347 = por %p345, %p346
    %p348 = scmp.ne.s32.totalorder %s340, %s342
    %p349 = scmp.eq.s32.totalorder %s38, 1
    %p350 = por %p348, %p349
    %p351 = scmp.ne.s32.totalorder %s342, %s343
    %p352 = scmp.eq.s32.totalorder %s38, 0
    %p353 = por %p351, %p352
    %p354 = scmp.ne.s32.totalorder %s342, %s343
    %p355 = scmp.eq.s32.totalorder %s39, 1
    %p356 = por %p354, %p355
    %p358 = scmp.ne.s32.totalorder %s343, %s357
    %p359 = scmp.eq.s32.totalorder %s39, 0
    %p360 = por %p358, %p359
    %s362 = sadd.s32 %s361, 1
    %p365 = scmp.eq.s32.totalorder %s33, 1
    %p366 = scmp.ne.s32.totalorder %s361, %s363
    %p367 = scmp.eq.s32.totalorder %s33, 0
    %p368 = por %p366, %p367
    %p369 = scmp.ne.s32.totalorder %s361, %s363
    %p370 = scmp.eq.s32.totalorder %s38, 1
    %p371 = por %p369, %p370
    %p372 = scmp.ne.s32.totalorder %s363, %s364
    %p373 = scmp.eq.s32.totalorder %s38, 0
    %p374 = por %p372, %p373
    %p375 = scmp.ne.s32.totalorder %s363, %s364
    %p376 = scmp.eq.s32.totalorder %s39, 1
    %p377 = por %p375, %p376
    %p379 = scmp.ne.s32.totalorder %s364, %s378
    %p380 = scmp.eq.s32.totalorder %s39, 0
    %p381 = por %p379, %p380
    %s383 = sadd.s32 %s382, 1
    %p386 = scmp.eq.s32.totalorder %s33, 1
    %p387 = scmp.ne.s32.totalorder %s382, %s384
    %p388 = scmp.eq.s32.totalorder %s33, 0
    %p389 = por %p387, %p388
    %p390 = scmp.ne.s32.totalorder %s382, %s384
    %p391 = scmp.eq.s32.totalorder %s38, 1
    %p392 = por %p390, %p391
    %p393 = scmp.ne.s32.totalorder %s384, %s385
    %p394 = scmp.eq.s32.totalorder %s38, 0
    %p395 = por %p393, %p394
    %p396 = scmp.ne.s32.totalorder %s384, %s385
    %p397 = scmp.eq.s32.totalorder %s39, 1
    %p398 = por %p396, %p397
    %p400 = scmp.ne.s32.totalorder %s385, %s399
    %p401 = scmp.eq.s32.totalorder %s39, 0
    %p402 = por %p400, %p401
    %s404 = sadd.s32 %s403, 1
    %p407 = scmp.eq.s32.totalorder %s33, 1
    %p408 = scmp.ne.s32.totalorder %s403, %s405
    %p409 = scmp.eq.s32.totalorder %s33, 0
    %p410 = por %p408, %p409
    %p411 = scmp.ne.s32.totalorder %s403, %s405
    %p412 = scmp.eq.s32.totalorder %s38, 1
    %p413 = por %p411, %p412
    %p414 = scmp.ne.s32.totalorder %s405, %s406
    %p415 = scmp.eq.s32.totalorder %s38, 0
    %p416 = por %p414, %p415
    %p417 = scmp.ne.s32.totalorder %s405, %s406
    %p418 = scmp.eq.s32.totalorder %s39, 1
    %p419 = por %p417, %p418
    %p421 = scmp.ne.s32.totalorder %s406, %s420
    %p422 = scmp.eq.s32.totalorder %s39, 0
    %p423 = por %p421, %p422
    %s425 = sadd.s32 %s424, 1
    %p428 = scmp.eq.s32.totalorder %s33, 1
    %p429 = scmp.ne.s32.totalorder %s424, %s426
    %p430 = scmp.eq.s32.totalorder %s33, 0
    %p431 = por %p429, %p430
    %p432 = scmp.ne.s32.totalorder %s424, %s426
    %p433 = scmp.eq.s32.totalorder %s38, 1
    %p434 = por %p432, %p433
    %p435 = scmp.ne.s32.totalorder %s426, %s427
    %p436 = scmp.eq.s32.totalorder %s38, 0
    %p437 = por %p435, %p436
    %p438 = scmp.ne.s32.totalorder %s426, %s427
    %p439 = scmp.eq.s32.totalorder %s39, 1
    %p440 = por %p438, %p439
    %p442 = scmp.ne.s32.totalorder %s427, %s441
    %p443 = scmp.eq.s32.totalorder %s39, 0
    %p444 = por %p442, %p443
    %s446 = sadd.s32 %s445, 1
    %p449 = scmp.eq.s32.totalorder %s33, 1
    %p450 = scmp.ne.s32.totalorder %s445, %s447
    %p451 = scmp.eq.s32.totalorder %s33, 0
    %p452 = por %p450, %p451
    %p453 = scmp.ne.s32.totalorder %s445, %s447
    %p454 = scmp.eq.s32.totalorder %s38, 1
    %p455 = por %p453, %p454
    %p456 = scmp.ne.s32.totalorder %s447, %s448
    %p457 = scmp.eq.s32.totalorder %s38, 0
    %p458 = por %p456, %p457
    %p459 = scmp.ne.s32.totalorder %s447, %s448
    %p460 = scmp.eq.s32.totalorder %s39, 1
    %p461 = por %p459, %p460
    %p463 = scmp.ne.s32.totalorder %s448, %s462
    %p464 = scmp.eq.s32.totalorder %s39, 0
    %p465 = por %p463, %p464
    %s467 = sadd.s32 %s466, 1
    %p470 = scmp.eq.s32.totalorder %s33, 1
    %p471 = scmp.ne.s32.totalorder %s466, %s468
    %p472 = scmp.eq.s32.totalorder %s33, 0
    %p473 = por %p471, %p472
    %p474 = scmp.ne.s32.totalorder %s466, %s468
    %p475 = scmp.eq.s32.totalorder %s38, 1
    %p476 = por %p474, %p475
    %p477 = scmp.ne.s32.totalorder %s468, %s469
    %p478 = scmp.eq.s32.totalorder %s38, 0
    %p479 = por %p477, %p478
    %p480 = scmp.ne.s32.totalorder %s468, %s469
    %p481 = scmp.eq.s32.totalorder %s39, 1
    %p482 = por %p480, %p481
    %p484 = scmp.ne.s32.totalorder %s469, %s483
    %p485 = scmp.eq.s32.totalorder %s39, 0
    %p486 = por %p484, %p485
    %s488 = sadd.s32 %s487, 1
    %p491 = scmp.eq.s32.totalorder %s33, 1
    %p492 = scmp.ne.s32.totalorder %s487, %s489
    %p493 = scmp.eq.s32.totalorder %s33, 0
    %p494 = por %p492, %p493
    %p495 = scmp.ne.s32.totalorder %s487, %s489
    %p496 = scmp.eq.s32.totalorder %s38, 1
    %p497 = por %p495, %p496
    %p498 = scmp.ne.s32.totalorder %s489, %s490
    %p499 = scmp.eq.s32.totalorder %s38, 0
    %p500 = por %p498, %p499
    %p501 = scmp.ne.s32.totalorder %s489, %s490
    %p502 = scmp.eq.s32.totalorder %s39, 1
    %p503 = por %p501, %p502
    %p505 = scmp.ne.s32.totalorder %s490, %s504
    %p506 = scmp.eq.s32.totalorder %s39, 0
    %p507 = por %p505, %p506
    %s509 = sadd.s32 %s508, 1
    %p512 = scmp.eq.s32.totalorder %s33, 1
    %p513 = scmp.ne.s32.totalorder %s508, %s510
    %p514 = scmp.eq.s32.totalorder %s33, 0
    %p515 = por %p513, %p514
    %p516 = scmp.ne.s32.totalorder %s508, %s510
    %p517 = scmp.eq.s32.totalorder %s38, 1
    %p518 = por %p516, %p517
    %p519 = scmp.ne.s32.totalorder %s510, %s511
    %p520 = scmp.eq.s32.totalorder %s38, 0
    %p521 = por %p519, %p520
    %p522 = scmp.ne.s32.totalorder %s510, %s511
    %p523 = scmp.eq.s32.totalorder %s39, 1
    %p524 = por %p522, %p523
    %p526 = scmp.ne.s32.totalorder %s511, %s525
    %p527 = scmp.eq.s32.totalorder %s39, 0
    %p528 = por %p526, %p527
    %s530 = sadd.s32 %s529, 1
    %p533 = scmp.eq.s32.totalorder %s33, 1
    %p534 = scmp.ne.s32.totalorder %s529, %s531
    %p535 = scmp.eq.s32.totalorder %s33, 0
    %p536 = por %p534, %p535
    %p537 = scmp.ne.s32.totalorder %s529, %s531
    %p538 = scmp.eq.s32.totalorder %s38, 1
    %p539 = por %p537, %p538
    %p540 = scmp.ne.s32.totalorder %s531, %s532
    %p541 = scmp.eq.s32.totalorder %s38, 0
    %p542 = por %p540, %p541
    %p543 = scmp.ne.s32.totalorder %s531, %s532
    %p544 = scmp.eq.s32.totalorder %s39, 1
    %p545 = por %p543, %p544
    %p547 = scmp.ne.s32.totalorder %s532, %s546
    %p548 = scmp.eq.s32.totalorder %s39, 0
    %p549 = por %p547, %p548
    %s551 = sadd.s32 %s550, 1
    %p554 = scmp.eq.s32.totalorder %s33, 1
    %p555 = scmp.ne.s32.totalorder %s550, %s552
    %p556 = scmp.eq.s32.totalorder %s33, 0
    %p557 = por %p555, %p556
    %p558 = scmp.ne.s32.totalorder %s550, %s552
    %p559 = scmp.eq.s32.totalorder %s38, 1
    %p560 = por %p558, %p559
    %p561 = scmp.ne.s32.totalorder %s552, %s553
    %p562 = scmp.eq.s32.totalorder %s38, 0
    %p563 = por %p561, %p562
    %p564 = scmp.ne.s32.totalorder %s552, %s553
    %p565 = scmp.eq.s32.totalorder %s39, 1
    %p566 = por %p564, %p565
    %p568 = scmp.ne.s32.totalorder %s553, %s567
    %p569 = scmp.eq.s32.totalorder %s39, 0
    %p570 = por %p568, %p569
    %s572 = sadd.s32 %s571, 1
    %p575 = scmp.eq.s32.totalorder %s33, 1
    %p576 = scmp.ne.s32.totalorder %s571, %s573
    %p577 = scmp.eq.s32.totalorder %s33, 0
    %p578 = por %p576, %p577
    %p579 = scmp.ne.s32.totalorder %s571, %s573
    %p580 = scmp.eq.s32.totalorder %s38, 1
    %p581 = por %p579, %p580
    %p582 = scmp.ne.s32.totalorder %s573, %s574
    %p583 = scmp.eq.s32.totalorder %s38, 0
    %p584 = por %p582, %p583
    %p585 = scmp.ne.s32.totalorder %s573, %s574
    %p586 = scmp.eq.s32.totalorder %s39, 1
    %p587 = por %p585, %p586
    %p589 = scmp.ne.s32.totalorder %s574, %s588
    %p590 = scmp.eq.s32.totalorder %s39, 0
    %p591 = por %p589, %p590
    %s593 = sadd.s32 %s592, 1
    %p596 = scmp.eq.s32.totalorder %s33, 1
    %p597 = scmp.ne.s32.totalorder %s592, %s594
    %p598 = scmp.eq.s32.totalorder %s33, 0
    %p599 = por %p597, %p598
    %p600 = scmp.ne.s32.totalorder %s592, %s594
    %p601 = scmp.eq.s32.totalorder %s38, 1
    %p602 = por %p600, %p601
    %p603 = scmp.ne.s32.totalorder %s594, %s595
    %p604 = scmp.eq.s32.totalorder %s38, 0
    %p605 = por %p603, %p604
    %p606 = scmp.ne.s32.totalorder %s594, %s595
    %p607 = scmp.eq.s32.totalorder %s39, 1
    %p608 = por %p606, %p607
    %p610 = scmp.ne.s32.totalorder %s595, %s609
    %p611 = scmp.eq.s32.totalorder %s39, 0
    %p612 = por %p610, %p611
    %s613 = ssub.s32 %s33, %s40
    %p614 = scmp.eq.s32.totalorder %s613, 0
    %s616 = sadd.s32 %s615, 1
    %s617 = scalar_select %p614, %s615, %s616
    %p620 = pneg %p614
    %p621 = scmp.eq.s32.totalorder %s33, 1
    %p622 = por %p620, %p621
    %p623 = scmp.ne.s32.totalorder %s615, %s618
    %p624 = scmp.eq.s32.totalorder %s33, 0
    %p625 = por %p623, %p624
    %p626 = scmp.ne.s32.totalorder %s615, %s618
    %p627 = scmp.eq.s32.totalorder %s38, 1
    %p628 = por %p626, %p627
    %p629 = scmp.ne.s32.totalorder %s618, %s619
    %p630 = scmp.eq.s32.totalorder %s38, 0
    %p631 = por %p629, %p630
    %p632 = scmp.ne.s32.totalorder %s618, %s619
    %p633 = scmp.eq.s32.totalorder %s39, 1
    %p634 = por %p632, %p633
    %p636 = scmp.ne.s32.totalorder %s619, %s635
    %p637 = scmp.eq.s32.totalorder %s39, 0
    %p638 = por %p636, %p637
    %p639 = scmp.le.s32.totalorder 1, %s33
    %p640 = scmp.lt.s32.totalorder %s33, 3
    %p641 = pnand %p639, %p640
    %p642 = pneg %p641
    // Predicated region
    $region9: #{aoa_forward.1} parent=5 // pred_check
      _
    $region10: #{aoa_forward.1} parent=5 // pred_check_branch
      %644 = sbr.rel (%p641) target = $region12
    $region11: #{aoa_forward.1} parent=5 // pred_region
      %s645 = ssub.s32 %s33, 1
      // Predicated region
      $region13: #{aoa_forward.1} parent=11 // pred_check
        %p646 = pneg %p80
      $region14: #{aoa_forward.1} parent=11 // pred_check_branch
        %648 = sbr.rel (%p646) target = $region16
      $region15: #{aoa_forward.1} parent=11 // pred_region
        _
      $region16: #{aoa_forward.1} parent=11 // pred_fallthru
        _
      // Predicated region
      $region17: #{aoa_forward.1} parent=11 // pred_check
        %p649 = pneg %p101
      $region18: #{aoa_forward.1} parent=11 // pred_check_branch
        %651 = sbr.rel (%p649) target = $region20
      $region19: #{aoa_forward.1} parent=11 // pred_region
        _
      $region20: #{aoa_forward.1} parent=11 // pred_fallthru
        _
      // Predicated region
      $region21: #{aoa_forward.1} parent=11 // pred_check
        %p652 = pneg %p122
      $region22: #{aoa_forward.1} parent=11 // pred_check_branch
        %654 = sbr.rel (%p652) target = $region24
      $region23: #{aoa_forward.1} parent=11 // pred_region
        _
      $region24: #{aoa_forward.1} parent=11 // pred_fallthru
        _
      // Predicated region
      $region25: #{aoa_forward.1} parent=11 // pred_check
        %p655 = pneg %p143
      $region26: #{aoa_forward.1} parent=11 // pred_check_branch
        %657 = sbr.rel (%p655) target = $region28
      $region27: #{aoa_forward.1} parent=11 // pred_region
        _
      $region28: #{aoa_forward.1} parent=11 // pred_fallthru
        _
      // Predicated region
      $region29: #{aoa_forward.1} parent=11 // pred_check
        %p658 = pneg %p164
      $region30: #{aoa_forward.1} parent=11 // pred_check_branch
        %660 = sbr.rel (%p658) target = $region32
      $region31: #{aoa_forward.1} parent=11 // pred_region
        _
      $region32: #{aoa_forward.1} parent=11 // pred_fallthru
        _
      // Predicated region
      $region33: #{aoa_forward.1} parent=11 // pred_check
        %p661 = pneg %p185
      $region34: #{aoa_forward.1} parent=11 // pred_check_branch
        %663 = sbr.rel (%p661) target = $region36
      $region35: #{aoa_forward.1} parent=11 // pred_region
        _
      $region36: #{aoa_forward.1} parent=11 // pred_fallthru
        _
      // Predicated region
      $region37: #{aoa_forward.1} parent=11 // pred_check
        %p664 = pneg %p206
      $region38: #{aoa_forward.1} parent=11 // pred_check_branch
        %666 = sbr.rel (%p664) target = $region40
      $region39: #{aoa_forward.1} parent=11 // pred_region
        _
      $region40: #{aoa_forward.1} parent=11 // pred_fallthru
        _
      // Predicated region
      $region41: #{aoa_forward.1} parent=11 // pred_check
        %p667 = pneg %p227
      $region42: #{aoa_forward.1} parent=11 // pred_check_branch
        %669 = sbr.rel (%p667) target = $region44
      $region43: #{aoa_forward.1} parent=11 // pred_region
        _
      $region44: #{aoa_forward.1} parent=11 // pred_fallthru
        _
      // Predicated region
      $region45: #{aoa_forward.1} parent=11 // pred_check
        %p670 = pneg %p248
      $region46: #{aoa_forward.1} parent=11 // pred_check_branch
        %672 = sbr.rel (%p670) target = $region48
      $region47: #{aoa_forward.1} parent=11 // pred_region
        _
      $region48: #{aoa_forward.1} parent=11 // pred_fallthru
        _
      // Predicated region
      $region49: #{aoa_forward.1} parent=11 // pred_check
        %p673 = pneg %p269
      $region50: #{aoa_forward.1} parent=11 // pred_check_branch
        %675 = sbr.rel (%p673) target = $region52
      $region51: #{aoa_forward.1} parent=11 // pred_region
        _
      $region52: #{aoa_forward.1} parent=11 // pred_fallthru
        _
      // Predicated region
      $region53: #{aoa_forward.1} parent=11 // pred_check
        %p676 = pneg %p290
      $region54: #{aoa_forward.1} parent=11 // pred_check_branch
        %678 = sbr.rel (%p676) target = $region56
      $region55: #{aoa_forward.1} parent=11 // pred_region
        _
      $region56: #{aoa_forward.1} parent=11 // pred_fallthru
        _
      // Predicated region
      $region57: #{aoa_forward.1} parent=11 // pred_check
        %p679 = pneg %p311
      $region58: #{aoa_forward.1} parent=11 // pred_check_branch
        %681 = sbr.rel (%p679) target = $region60
      $region59: #{aoa_forward.1} parent=11 // pred_region
        _
      $region60: #{aoa_forward.1} parent=11 // pred_fallthru
        _
      // Predicated region
      $region61: #{aoa_forward.1} parent=11 // pred_check
        %p682 = pneg %p332
      $region62: #{aoa_forward.1} parent=11 // pred_check_branch
        %684 = sbr.rel (%p682) target = $region64
      $region63: #{aoa_forward.1} parent=11 // pred_region
        _
      $region64: #{aoa_forward.1} parent=11 // pred_fallthru
        _
      // Predicated region
      $region65: #{aoa_forward.1} parent=11 // pred_check
        %p685 = pneg %p353
      $region66: #{aoa_forward.1} parent=11 // pred_check_branch
        %687 = sbr.rel (%p685) target = $region68
      $region67: #{aoa_forward.1} parent=11 // pred_region
        _
      $region68: #{aoa_forward.1} parent=11 // pred_fallthru
        _
      // Predicated region
      $region69: #{aoa_forward.1} parent=11 // pred_check
        %p688 = pneg %p374
      $region70: #{aoa_forward.1} parent=11 // pred_check_branch
        %690 = sbr.rel (%p688) target = $region72
      $region71: #{aoa_forward.1} parent=11 // pred_region
        _
      $region72: #{aoa_forward.1} parent=11 // pred_fallthru
        _
      // Predicated region
      $region73: #{aoa_forward.1} parent=11 // pred_check
        %p691 = pneg %p395
      $region74: #{aoa_forward.1} parent=11 // pred_check_branch
        %693 = sbr.rel (%p691) target = $region76
      $region75: #{aoa_forward.1} parent=11 // pred_region
        _
      $region76: #{aoa_forward.1} parent=11 // pred_fallthru
        _
      // Predicated region
      $region77: #{aoa_forward.1} parent=11 // pred_check
        %p694 = pneg %p416
      $region78: #{aoa_forward.1} parent=11 // pred_check_branch
        %696 = sbr.rel (%p694) target = $region80
      $region79: #{aoa_forward.1} parent=11 // pred_region
        _
      $region80: #{aoa_forward.1} parent=11 // pred_fallthru
        _
      // Predicated region
      $region81: #{aoa_forward.1} parent=11 // pred_check
        %p697 = pneg %p437
      $region82: #{aoa_forward.1} parent=11 // pred_check_branch
        %699 = sbr.rel (%p697) target = $region84
      $region83: #{aoa_forward.1} parent=11 // pred_region
        _
      $region84: #{aoa_forward.1} parent=11 // pred_fallthru
        _
      // Predicated region
      $region85: #{aoa_forward.1} parent=11 // pred_check
        %p700 = pneg %p458
      $region86: #{aoa_forward.1} parent=11 // pred_check_branch
        %702 = sbr.rel (%p700) target = $region88
      $region87: #{aoa_forward.1} parent=11 // pred_region
        _
      $region88: #{aoa_forward.1} parent=11 // pred_fallthru
        _
      // Predicated region
      $region89: #{aoa_forward.1} parent=11 // pred_check
        %p703 = pneg %p479
      $region90: #{aoa_forward.1} parent=11 // pred_check_branch
        %705 = sbr.rel (%p703) target = $region92
      $region91: #{aoa_forward.1} parent=11 // pred_region
        _
      $region92: #{aoa_forward.1} parent=11 // pred_fallthru
        _
      // Predicated region
      $region93: #{aoa_forward.1} parent=11 // pred_check
        %p706 = pneg %p500
      $region94: #{aoa_forward.1} parent=11 // pred_check_branch
        %708 = sbr.rel (%p706) target = $region96
      $region95: #{aoa_forward.1} parent=11 // pred_region
        _
      $region96: #{aoa_forward.1} parent=11 // pred_fallthru
        _
      // Predicated region
      $region97: #{aoa_forward.1} parent=11 // pred_check
        %p709 = pneg %p521
      $region98: #{aoa_forward.1} parent=11 // pred_check_branch
        %711 = sbr.rel (%p709) target = $region100
      $region99: #{aoa_forward.1} parent=11 // pred_region
        _
      $region100: #{aoa_forward.1} parent=11 // pred_fallthru
        _
      // Predicated region
      $region101: #{aoa_forward.1} parent=11 // pred_check
        %p712 = pneg %p542
      $region102: #{aoa_forward.1} parent=11 // pred_check_branch
        %714 = sbr.rel (%p712) target = $region104
      $region103: #{aoa_forward.1} parent=11 // pred_region
        _
      $region104: #{aoa_forward.1} parent=11 // pred_fallthru
        _
      // Predicated region
      $region105: #{aoa_forward.1} parent=11 // pred_check
        %p715 = pneg %p563
      $region106: #{aoa_forward.1} parent=11 // pred_check_branch
        %717 = sbr.rel (%p715) target = $region108
      $region107: #{aoa_forward.1} parent=11 // pred_region
        _
      $region108: #{aoa_forward.1} parent=11 // pred_fallthru
        _
      // Predicated region
      $region109: #{aoa_forward.1} parent=11 // pred_check
        %p718 = pneg %p584
      $region110: #{aoa_forward.1} parent=11 // pred_check_branch
        %720 = sbr.rel (%p718) target = $region112
      $region111: #{aoa_forward.1} parent=11 // pred_region
        _
      $region112: #{aoa_forward.1} parent=11 // pred_fallthru
        _
      // Predicated region
      $region113: #{aoa_forward.1} parent=11 // pred_check
        %p721 = pneg %p605
      $region114: #{aoa_forward.1} parent=11 // pred_check_branch
        %723 = sbr.rel (%p721) target = $region116
      $region115: #{aoa_forward.1} parent=11 // pred_region
        _
      $region116: #{aoa_forward.1} parent=11 // pred_fallthru
        _
    $region12: #{aoa_forward.1} parent=5 // pred_fallthru
      _
    %p724 = scmp.lt.s32.totalorder %s33, 2
    // Predicated region
    $region117: #{aoa_forward.1} parent=5 // pred_check
      %p725 = pneg %p724
    $region118: #{aoa_forward.1} parent=5 // pred_check_branch
      %727 = sbr.rel (%p725) target = $region120
    $region119: #{aoa_forward.1} parent=5 // pred_region
      // Predicated region
      $region121: #{aoa_forward.1} parent=119 // pred_check
        %p728 = pneg %p53
      $region122: #{aoa_forward.1} parent=119 // pred_check_branch
        %730 = sbr.rel (%p728) target = $region124
      $region123: #{aoa_forward.1} parent=119 // pred_region
        %p731 = scmp.lt.s32.totalorder %s33, 1
        %s732 = scalar_select %p731, %s33, 1
        %s733 = smul.addr %s732, 8
        %s734 = scalar_lea.vmem %s0, %s733
      $region124: #{aoa_forward.1} parent=119 // pred_fallthru
        _
    $region120: #{aoa_forward.1} parent=5 // pred_fallthru
      _
    %p735 = scmp.le.s32.totalorder 1, %s33
    %p736 = scmp.lt.s32.totalorder %s33, 3
    %p737 = pnand %p735, %p736
    %p738 = pneg %p737
    // Predicated region
    $region125: #{aoa_forward.1} parent=5 // pred_check
      _
    $region126: #{aoa_forward.1} parent=5 // pred_check_branch
      %740 = sbr.rel (%p737) target = $region128
    $region127: #{aoa_forward.1} parent=5 // pred_region
      %s741 = ssub.s32 %s33, 1
      %p742 = scmp.lt.s32.totalorder %s38, 1
      %s743 = scalar_select %p742, %s38, 1
      %s744 = smul.addr %s743, 8
      %s745 = scalar_lea.vmem %s0, %s744
      %p746 = pneg %p59
      %p747 = pneg %p56
      %p748 = pneg %p80
      %p749 = pneg %p77
      %p750 = pneg %p101
      %p751 = pneg %p98
      %p752 = pneg %p122
      %p753 = pneg %p119
      %p754 = pneg %p143
      %p755 = pneg %p140
      %p756 = pneg %p164
      %p757 = pneg %p161
      %p758 = pneg %p185
      %p759 = pneg %p182
      %p760 = pneg %p206
      %p761 = pneg %p203
      %p762 = pneg %p227
      %p763 = pneg %p224
      %p764 = pneg %p248
      %p765 = pneg %p245
      %p766 = pneg %p269
      %p767 = pneg %p266
      %p768 = pneg %p290
      %p769 = pneg %p287
      %p770 = pneg %p311
      %p771 = pneg %p308
      %p772 = pneg %p332
      %p773 = pneg %p329
      %p774 = pneg %p353
      %p775 = pneg %p350
      %p776 = pneg %p374
      %p777 = pneg %p371
      %p778 = pneg %p395
      %p779 = pneg %p392
      %p780 = pneg %p416
      %p781 = pneg %p413
      %p782 = pneg %p437
      %p783 = pneg %p434
      %p784 = pneg %p458
      %p785 = pneg %p455
      %p786 = pneg %p479
      %p787 = pneg %p476
      %p788 = pneg %p500
      %p789 = pneg %p497
      %p790 = pneg %p521
      %p791 = pneg %p518
      %p792 = pneg %p542
      %p793 = pneg %p539
      %p794 = pneg %p563
      %p795 = pneg %p560
      %p796 = pneg %p584
      %p797 = pneg %p581
      %p798 = pneg %p605
      %p799 = pneg %p602
      %p800 = pneg %p631
      %p801 = pneg %p628
      %p802 = scmp.lt.s32.totalorder %s38, 1
      %s803 = scalar_select %p802, %s38, 1
      %s804 = smul.addr %s803, 8
      %s805 = scalar_lea.vmem %s27, %s804
      %p806 = scmp.lt.s32.totalorder %s38, 1
      %s807 = scalar_select %p806, %s38, 1
      %s808 = smul.addr %s807, 8
      %s809 = scalar_lea.vmem %s0, %s808
      %p810 = scmp.lt.s32.totalorder %s38, 1
      %s811 = scalar_select %p810, %s38, 1
      %s812 = smul.addr %s811, 8
      %s813 = scalar_lea.vmem %s27, %s812
      %v815 = vld [vmem:[%s809] sm:$0xff]
      %v816 = vpack.c.bf16 %v815, %v815
      %v817 = vld [vmem:[%s1] sm:$0xf]
      %v818 = vld [vmem:[%s1 + $0x4] sm:$0xf]
      %v819 = vld [vmem:[%s1 + $0x8] sm:$0xf]
      %v820 = vld [vmem:[%s1 + $0xc] sm:$0xf]
      %v821 = vld [vmem:[%s2] sm:$0x1]
      %v823 = vlaneseq
      %v824 = vshrl.u32 %v823, 7
      %v825 = vsub.s32 0, %v824
      %v826 = vrot.slane %v821, %v825
      %v832 = vunpack.c.l.b16 %v817
      %v833 = vunpack.c.l.b16 %v818
      %v834 = vunpack.c.l.b16 %v819
      %v835 = vunpack.c.l.b16 %v820
      %v836 = vpack.c.b16 %v833, %v832
      %v837 = vpack.c.b16 %v835, %v834
      %vm840 = vcmask 261120
      %v842 = vsel %vm840, %v816, 0
      %844 = vmatprep.subr.bf16.mxu0 0
      %845 = vmatpush1.bf16.msra.mxu0 %v836
      %846 = vmatprep.subr.bf16.mxu0 0
      %847 = vmatpush1.bf16.msra.mxu0 %v837
      %848 = vmatprep.subr.bf16.mxu0 0
      %849 = vmatpush1.bf16.msra.mxu0 0
      %850 = vmatprep.subr.bf16.mxu0 0
      %851 = vmatpush1.bf16.msra.mxu0 0
      %852 = vmatprep.subr.bf16.mxu0 0
      %853 = vmatpush1.bf16.msra.mxu0 0
      %854 = vmatprep.subr.bf16.mxu0 0
      %855 = vmatpush1.bf16.msra.mxu0 0
      %856 = vmatprep.subr.bf16.mxu0 0
      %857 = vmatpush1.bf16.msra.mxu0 0
      %858 = vmatprep.subr.bf16.mxu0 0
      %859 = vmatpush1.bf16.msra.mxu0 0
      %860 = vmatprep.subr.bf16.mxu0 0
      %861 = vmatpush1.bf16.msra.mxu0 0
      %862 = vmatprep.subr.bf16.mxu0 0
      %863 = vmatpush1.bf16.msra.mxu0 0
      %864 = vmatprep.subr.bf16.mxu0 0
      %865 = vmatpush1.bf16.msra.mxu0 0
      %866 = vmatprep.subr.bf16.mxu0 0
      %867 = vmatpush1.bf16.msra.mxu0 0
      %868 = vmatprep.subr.bf16.mxu0 0
      %869 = vmatpush1.bf16.msra.mxu0 0
      %870 = vmatprep.subr.bf16.mxu0 0
      %871 = vmatpush1.bf16.msra.mxu0 0
      %872 = vmatprep.subr.bf16.mxu0 0
      %873 = vmatpush1.bf16.msra.mxu0 0
      %874 = vmatprep.subr.bf16.mxu0 0
      %875 = vmatpush1.bf16.msra.mxu0 0
      %876 = vmatprep.mubr.bf16.mxu0 0
      %877 = vmatmul.mubr.bf16.gmra.mrb[0].mxu0 %v842
      %v878 = vpop.f32.mrb[0].mxu0
      %v879 = vadd.f32 %v826, %v878
      %v880 = vpop.f32.mrb[0].mxu0
      %v881 = vpop.f32.mrb[0].mxu0
      %v882 = vpop.f32.mrb[0].mxu0
      %883 = vdwg.mxu0
      %v884 = vld [vmem:[%s3] sm:$0xf]
      %v885 = vld [vmem:[%s3 + $0x4] sm:$0xf]
      %v886 = vld [vmem:[%s3 + $0x8] sm:$0xf]
      %v887 = vld [vmem:[%s3 + $0xc] sm:$0xf]
      %v888 = vld [vmem:[%s4] sm:$0x1]
      %v890 = vlaneseq
      %v891 = vshrl.u32 %v890, 7
      %v892 = vsub.s32 0, %v891
      %v893 = vrot.slane %v888, %v892
      %v899 = vunpack.c.l.b16 %v884
      %v900 = vunpack.c.l.b16 %v885
      %v901 = vunpack.c.l.b16 %v886
      %v902 = vunpack.c.l.b16 %v887
      %v903 = vpack.c.b16 %v900, %v899
      %v904 = vpack.c.b16 %v902, %v901
      %907 = vmatprep.subr.bf16.mxu0 0
      %908 = vmatpush1.bf16.msra.mxu0 %v903
      %909 = vmatprep.subr.bf16.mxu0 0
      %910 = vmatpush1.bf16.msra.mxu0 %v904
      %911 = vmatprep.subr.bf16.mxu0 0
      %912 = vmatpush1.bf16.msra.mxu0 0
      %913 = vmatprep.subr.bf16.mxu0 0
      %914 = vmatpush1.bf16.msra.mxu0 0
      %915 = vmatprep.subr.bf16.mxu0 0
      %916 = vmatpush1.bf16.msra.mxu0 0
      %917 = vmatprep.subr.bf16.mxu0 0
      %918 = vmatpush1.bf16.msra.mxu0 0
      %919 = vmatprep.subr.bf16.mxu0 0
      %920 = vmatpush1.bf16.msra.mxu0 0
      %921 = vmatprep.subr.bf16.mxu0 0
      %922 = vmatpush1.bf16.msra.mxu0 0
      %923 = vmatprep.subr.bf16.mxu0 0
      %924 = vmatpush1.bf16.msra.mxu0 0
      %925 = vmatprep.subr.bf16.mxu0 0
      %926 = vmatpush1.bf16.msra.mxu0 0
      %927 = vmatprep.subr.bf16.mxu0 0
      %928 = vmatpush1.bf16.msra.mxu0 0
      %929 = vmatprep.subr.bf16.mxu0 0
      %930 = vmatpush1.bf16.msra.mxu0 0
      %931 = vmatprep.subr.bf16.mxu0 0
      %932 = vmatpush1.bf16.msra.mxu0 0
      %933 = vmatprep.subr.bf16.mxu0 0
      %934 = vmatpush1.bf16.msra.mxu0 0
      %935 = vmatprep.subr.bf16.mxu0 0
      %936 = vmatpush1.bf16.msra.mxu0 0
      %937 = vmatprep.subr.bf16.mxu0 0
      %938 = vmatpush1.bf16.msra.mxu0 0
      %939 = vmatprep.mubr.bf16.mxu0 0
      %940 = vmatmul.mubr.bf16.gmra.mrb[0].mxu0 %v842
      %v941 = vpop.f32.mrb[0].mxu0
      %v942 = vadd.f32 %v893, %v941
      %v943 = vpop.f32.mrb[0].mxu0
      %v944 = vpop.f32.mrb[0].mxu0
      %v945 = vpop.f32.mrb[0].mxu0
      %946 = vdwg.mxu0
      %v947 = vld [vmem:[%s5] sm:$0xf]
      %v948 = vld [vmem:[%s5 + $0x4] sm:$0xf]
      %v949 = vld [vmem:[%s5 + $0x8] sm:$0xf]
      %v950 = vld [vmem:[%s5 + $0xc] sm:$0xf]
      %v951 = vld [vmem:[%s6] sm:$0x1]
      %v953 = vlaneseq
      %v954 = vshrl.u32 %v953, 7
      %v955 = vsub.s32 0, %v954
      %v956 = vrot.slane %v951, %v955
      %v962 = vunpack.c.l.b16 %v947
      %v963 = vunpack.c.l.b16 %v948
      %v964 = vunpack.c.l.b16 %v949
      %v965 = vunpack.c.l.b16 %v950
      %v966 = vpack.c.b16 %v963, %v962
      %v967 = vpack.c.b16 %v965, %v964
      %970 = vmatprep.subr.bf16.mxu0 0
      %971 = vmatpush1.bf16.msra.mxu0 %v966
      %972 = vmatprep.subr.bf16.mxu0 0
      %973 = vmatpush1.bf16.msra.mxu0 %v967
      %974 = vmatprep.subr.bf16.mxu0 0
      %975 = vmatpush1.bf16.msra.mxu0 0
      %976 = vmatprep.subr.bf16.mxu0 0
      %977 = vmatpush1.bf16.msra.mxu0 0
      %978 = vmatprep.subr.bf16.mxu0 0
      %979 = vmatpush1.bf16.msra.mxu0 0
      %980 = vmatprep.subr.bf16.mxu0 0
      %981 = vmatpush1.bf16.msra.mxu0 0
      %982 = vmatprep.subr.bf16.mxu0 0
      %983 = vmatpush1.bf16.msra.mxu0 0
      %984 = vmatprep.subr.bf16.mxu0 0
      %985 = vmatpush1.bf16.msra.mxu0 0
      %986 = vmatprep.subr.bf16.mxu0 0
      %987 = vmatpush1.bf16.msra.mxu0 0
      %988 = vmatprep.subr.bf16.mxu0 0
      %989 = vmatpush1.bf16.msra.mxu0 0
      %990 = vmatprep.subr.bf16.mxu0 0
      %991 = vmatpush1.bf16.msra.mxu0 0
      %992 = vmatprep.subr.bf16.mxu0 0
      %993 = vmatpush1.bf16.msra.mxu0 0
      %994 = vmatprep.subr.bf16.mxu0 0
      %995 = vmatpush1.bf16.msra.mxu0 0
      %996 = vmatprep.subr.bf16.mxu0 0
      %997 = vmatpush1.bf16.msra.mxu0 0
      %998 = vmatprep.subr.bf16.mxu0 0
      %999 = vmatpush1.bf16.msra.mxu0 0
      %1000 = vmatprep.subr.bf16.mxu0 0
      %1001 = vmatpush1.bf16.msra.mxu0 0
      %1002 = vmatprep.mubr.bf16.mxu0 0
      %1003 = vmatmul.mubr.bf16.gmra.mrb[0].mxu0 %v842
      %v1004 = vpop.f32.mrb[0].mxu0
      %v1005 = vadd.f32 %v956, %v1004
      %v1006 = vpop.f32.mrb[0].mxu0
      %v1007 = vpop.f32.mrb[0].mxu0
      %v1008 = vpop.f32.mrb[0].mxu0
      %1009 = vdwg.mxu0
      %v1010 = vpack.c.bf16 %v879, %v879
      %v1011 = vpack.c.bf16 %v942, %v942
      %v1012 = vpack.c.bf16 %v1005, %v1005
      %v1013 = vld [vmem:[%s7] sm:$0xf]
      %v1014 = vld [vmem:[%s7 + $0x4] sm:$0xf]
      %v1015 = vld [vmem:[%s7 + $0x8] sm:$0xf]
      %v1016 = vld [vmem:[%s7 + $0xc] sm:$0xf]
      %v1017 = vld [vmem:[%s7 + $0x10] sm:$0xf]
      %v1018 = vld [vmem:[%s7 + $0x14] sm:$0xf]
      %v1019 = vld [vmem:[%s7 + $0x18] sm:$0xf]
      %v1020 = vld [vmem:[%s7 + $0x1c] sm:$0xf]
      %v1021 = vld [vmem:[%s7 + $0x20] sm:$0xf]
      %v1022 = vld [vmem:[%s7 + $0x24] sm:$0xf]
      %v1023 = vld [vmem:[%s7 + $0x28] sm:$0xf]
      %v1024 = vld [vmem:[%s7 + $0x2c] sm:$0xf]
      %v1025 = vld [vmem:[%s7 + $0x30] sm:$0xf]
      %v1026 = vld [vmem:[%s7 + $0x34] sm:$0xf]
      %v1027 = vld [vmem:[%s7 + $0x38] sm:$0xf]
      %v1028 = vld [vmem:[%s7 + $0x3c] sm:$0xf]
      %v1029 = vld [vmem:[%s8] sm:$0x1]
      %v1030 = vld [vmem:[%s8 + $0x1] sm:$0x1]
      %v1031 = vld [vmem:[%s8 + $0x2] sm:$0x1]
      %v1032 = vld [vmem:[%s8 + $0x3] sm:$0x1]
      %v1037 = vlaneseq
      %v1038 = vshrl.u32 %v1037, 7
      %v1039 = vsub.s32 0, %v1038
      %v1040 = vrot.slane %v1029, %v1039
      %v1041 = vlaneseq
      %v1042 = vshrl.u32 %v1041, 7
      %v1043 = vsub.s32 0, %v1042
      %v1044 = vrot.slane %v1030, %v1043
      %v1045 = vlaneseq
      %v1046 = vshrl.u32 %v1045, 7
      %v1047 = vsub.s32 0, %v1046
      %v1048 = vrot.slane %v1031, %v1047
      %v1049 = vlaneseq
      %v1050 = vshrl.u32 %v1049, 7
      %v1051 = vsub.s32 0, %v1050
      %v1052 = vrot.slane %v1032, %v1051
      %v1061 = vunpack.c.l.b16 %v1013
      %v1062 = vunpack.c.l.b16 %v1014
      %v1063 = vunpack.c.l.b16 %v1015
      %v1064 = vunpack.c.l.b16 %v1016
      %v1065 = vpack.c.b16 %v1062, %v1061
      %v1066 = vpack.c.b16 %v1064, %v1063
      %v1070 = vsel %vm840, %v1010, 0
      %1072 = vmatprep.subr.bf16.mxu0 0
      %1073 = vmatpush1.bf16.msra.mxu0 %v1065
      %1074 = vmatprep.subr.bf16.mxu0 0
      %1075 = vmatpush1.bf16.msra.mxu0 %v1066
      %1076 = vmatprep.subr.bf16.mxu0 0
      %1077 = vmatpush1.bf16.msra.mxu0 0
      %1078 = vmatprep.subr.bf16.mxu0 0
      %1079 = vmatpush1.bf16.msra.mxu0 0
      %1080 = vmatprep.subr.bf16.mxu0 0
      %1081 = vmatpush1.bf16.msra.mxu0 0
      %1082 = vmatprep.subr.bf16.mxu0 0
      %1083 = vmatpush1.bf16.msra.mxu0 0
      %1084 = vmatprep.subr.bf16.mxu0 0
      %1085 = vmatpush1.bf16.msra.mxu0 0
      %1086 = vmatprep.subr.bf16.mxu0 0
      %1087 = vmatpush1.bf16.msra.mxu0 0
      %1088 = vmatprep.subr.bf16.mxu0 0
      %1089 = vmatpush1.bf16.msra.mxu0 0
      %1090 = vmatprep.subr.bf16.mxu0 0
      %1091 = vmatpush1.bf16.msra.mxu0 0
      %1092 = vmatprep.subr.bf16.mxu0 0
      %1093 = vmatpush1.bf16.msra.mxu0 0
      %1094 = vmatprep.subr.bf16.mxu0 0
      %1095 = vmatpush1.bf16.msra.mxu0 0
      %1096 = vmatprep.subr.bf16.mxu0 0
      %1097 = vmatpush1.bf16.msra.mxu0 0
      %1098 = vmatprep.subr.bf16.mxu0 0
      %1099 = vmatpush1.bf16.msra.mxu0 0
      %1100 = vmatprep.subr.bf16.mxu0 0
      %1101 = vmatpush1.bf16.msra.mxu0 0
      %1102 = vmatprep.subr.bf16.mxu0 0
      %1103 = vmatpush1.bf16.msra.mxu0 0
      %1104 = vmatprep.mubr.bf16.mxu0 0
      %1105 = vmatmul.mubr.bf16.gmra.mrb[0].mxu0 %v1070
      %v1106 = vpop.f32.mrb[0].mxu0
      %v1107 = vadd.f32 %v1040, %v1106
      %v1108 = vpop.f32.mrb[0].mxu0
      %v1109 = vpop.f32.mrb[0].mxu0
      %v1110 = vpop.f32.mrb[0].mxu0
      %1111 = vdwg.mxu0
      %v1116 = vunpack.c.l.b16 %v1017
      %v1117 = vunpack.c.l.b16 %v1018
      %v1118 = vunpack.c.l.b16 %v1019
      %v1119 = vunpack.c.l.b16 %v1020
      %v1120 = vpack.c.b16 %v1117, %v1116
      %v1121 = vpack.c.b16 %v1119, %v1118
      %1124 = vmatprep.subr.bf16.mxu0 0
      %1125 = vmatpush1.bf16.msra.mxu0 %v1120
      %1126 = vmatprep.subr.bf16.mxu0 0
      %1127 = vmatpush1.bf16.msra.mxu0 %v1121
      %1128 = vmatprep.subr.bf16.mxu0 0
      %1129 = vmatpush1.bf16.msra.mxu0 0
      %1130 = vmatprep.subr.bf16.mxu0 0
      %1131 = vmatpush1.bf16.msra.mxu0 0
      %1132 = vmatprep.subr.bf16.mxu0 0
      %1133 = vmatpush1.bf16.msra.mxu0 0
      %1134 = vmatprep.subr.bf16.mxu0 0
      %1135 = vmatpush1.bf16.msra.mxu0 0
      %1136 = vmatprep.subr.bf16.mxu0 0
      %1137 = vmatpush1.bf16.msra.mxu0 0
      %1138 = vmatprep.subr.bf16.mxu0 0
      %1139 = vmatpush1.bf16.msra.mxu0 0
      %1140 = vmatprep.subr.bf16.mxu0 0
      %1141 = vmatpush1.bf16.msra.mxu0 0
      %1142 = vmatprep.subr.bf16.mxu0 0
      %1143 = vmatpush1.bf16.msra.mxu0 0
      %1144 = vmatprep.subr.bf16.mxu0 0
      %1145 = vmatpush1.bf16.msra.mxu0 0
      %1146 = vmatprep.subr.bf16.mxu0 0
      %1147 = vmatpush1.bf16.msra.mxu0 0
      %1148 = vmatprep.subr.bf16.mxu0 0
      %1149 = vmatpush1.bf16.msra.mxu0 0
      %1150 = vmatprep.subr.bf16.mxu0 0
      %1151 = vmatpush1.bf16.msra.mxu0 0
      %1152 = vmatprep.subr.bf16.mxu0 0
      %1153 = vmatpush1.bf16.msra.mxu0 0
      %1154 = vmatprep.subr.bf16.mxu0 0
      %1155 = vmatpush1.bf16.msra.mxu0 0
      %1156 = vmatprep.mubr.bf16.mxu0 0
      %1157 = vmatmul.mubr.bf16.gmra.mrb[0].mxu0 %v1070
      %v1158 = vpop.f32.mrb[0].mxu0
      %v1159 = vadd.f32 %v1044, %v1158
      %v1160 = vpop.f32.mrb[0].mxu0
      %v1161 = vpop.f32.mrb[0].mxu0
      %v1162 = vpop.f32.mrb[0].mxu0
      %1163 = vdwg.mxu0
      %v1168 = vunpack.c.l.b16 %v1021
      %v1169 = vunpack.c.l.b16 %v1022
      %v1170 = vunpack.c.l.b16 %v1023
      %v1171 = vunpack.c.l.b16 %v1024
      %v1172 = vpack.c.b16 %v1169, %v1168
      %v1173 = vpack.c.b16 %v1171, %v1170
      %1176 = vmatprep.subr.bf16.mxu0 0
      %1177 = vmatpush1.bf16.msra.mxu0 %v1172
      %1178 = vmatprep.subr.bf16.mxu0 0
      %1179 = vmatpush1.bf16.msra.mxu0 %v1173
      %1180 = vmatprep.subr.bf16.mxu0 0
      %1181 = vmatpush1.bf16.msra.mxu0 0
      %1182 = vmatprep.subr.bf16.mxu0 0
      %1183 = vmatpush1.bf16.msra.mxu0 0
      %1184 = vmatprep.subr.bf16.mxu0 0
      %1185 = vmatpush1.bf16.msra.mxu0 0
      %1186 = vmatprep.subr.bf16.mxu0 0
      %1187 = vmatpush1.bf16.msra.mxu0 0
      %1188 = vmatprep.subr.bf16.mxu0 0
      %1189 = vmatpush1.bf16.msra.mxu0 0
      %1190 = vmatprep.subr.bf16.mxu0 0
      %1191 = vmatpush1.bf16.msra.mxu0 0
      %1192 = vmatprep.subr.bf16.mxu0 0
      %1193 = vmatpush1.bf16.msra.mxu0 0
      %1194 = vmatprep.subr.bf16.mxu0 0
      %1195 = vmatpush1.bf16.msra.mxu0 0
      %1196 = vmatprep.subr.bf16.mxu0 0
      %1197 = vmatpush1.bf16.msra.mxu0 0
      %1198 = vmatprep.subr.bf16.mxu0 0
      %1199 = vmatpush1.bf16.msra.mxu0 0
      %1200 = vmatprep.subr.bf16.mxu0 0
      %1201 = vmatpush1.bf16.msra.mxu0 0
      %1202 = vmatprep.subr.bf16.mxu0 0
      %1203 = vmatpush1.bf16.msra.mxu0 0
      %1204 = vmatprep.subr.bf16.mxu0 0
      %1205 = vmatpush1.bf16.msra.mxu0 0
      %1206 = vmatprep.subr.bf16.mxu0 0
      %1207 = vmatpush1.bf16.msra.mxu0 0
      %1208 = vmatprep.mubr.bf16.mxu0 0
      %1209 = vmatmul.mubr.bf16.gmra.mrb[0].mxu0 %v1070
      %v1210 = vpop.f32.mrb[0].mxu0
      %v1211 = vadd.f32 %v1048, %v1210
      %v1212 = vpop.f32.mrb[0].mxu0
      %v1213 = vpop.f32.mrb[0].mxu0
      %v1214 = vpop.f32.mrb[0].mxu0
      %1215 = vdwg.mxu0
      %v1220 = vunpack.c.l.b16 %v1025
      %v1221 = vunpack.c.l.b16 %v1026
      %v1222 = vunpack.c.l.b16 %v1027
      %v1223 = vunpack.c.l.b16 %v1028
      %v1224 = vpack.c.b16 %v1221, %v1220
      %v1225 = vpack.c.b16 %v1223, %v1222
      %1228 = vmatprep.subr.bf16.mxu0 0
      %1229 = vmatpush1.bf16.msra.mxu0 %v1224
      %1230 = vmatprep.subr.bf16.mxu0 0
      %1231 = vmatpush1.bf16.msra.mxu0 %v1225
      %1232 = vmatprep.subr.bf16.mxu0 0
      %1233 = vmatpush1.bf16.msra.mxu0 0
      %1234 = vmatprep.subr.bf16.mxu0 0
      %1235 = vmatpush1.bf16.msra.mxu0 0
      %1236 = vmatprep.subr.bf16.mxu0 0
      %1237 = vmatpush1.bf16.msra.mxu0 0
      %1238 = vmatprep.subr.bf16.mxu0 0
      %1239 = vmatpush1.bf16.msra.mxu0 0
      %1240 = vmatprep.subr.bf16.mxu0 0
      %1241 = vmatpush1.bf16.msra.mxu0 0
      %1242 = vmatprep.subr.bf16.mxu0 0
      %1243 = vmatpush1.bf16.msra.mxu0 0
      %1244 = vmatprep.subr.bf16.mxu0 0
      %1245 = vmatpush1.bf16.msra.mxu0 0
      %1246 = vmatprep.subr.bf16.mxu0 0
      %1247 = vmatpush1.bf16.msra.mxu0 0
      %1248 = vmatprep.subr.bf16.mxu0 0
      %1249 = vmatpush1.bf16.msra.mxu0 0
      %1250 = vmatprep.subr.bf16.mxu0 0
      %1251 = vmatpush1.bf16.msra.mxu0 0
      %1252 = vmatprep.subr.bf16.mxu0 0
      %1253 = vmatpush1.bf16.msra.mxu0 0
      %1254 = vmatprep.subr.bf16.mxu0 0
      %1255 = vmatpush1.bf16.msra.mxu0 0
      %1256 = vmatprep.subr.bf16.mxu0 0
      %1257 = vmatpush1.bf16.msra.mxu0 0
      %1258 = vmatprep.subr.bf16.mxu0 0
      %1259 = vmatpush1.bf16.msra.mxu0 0
      %1260 = vmatprep.mubr.bf16.mxu0 0
      %1261 = vmatmul.mubr.bf16.gmra.mrb[0].mxu0 %v1070
      %v1262 = vpop.f32.mrb[0].mxu0
      %v1263 = vadd.f32 %v1052, %v1262
      %v1264 = vpop.f32.mrb[0].mxu0
      %v1265 = vpop.f32.mrb[0].mxu0
      %v1266 = vpop.f32.mrb[0].mxu0
      %1267 = vdwg.mxu0
      %v1268 = vld [vmem:[%s9] sm:$0xf]
      %v1269 = vld [vmem:[%s9 + $0x4] sm:$0xf]
      %v1270 = vld [vmem:[%s9 + $0x8] sm:$0xf]
      %v1271 = vld [vmem:[%s9 + $0xc] sm:$0xf]
      %v1272 = vld [vmem:[%s9 + $0x10] sm:$0xf]
      %v1273 = vld [vmem:[%s9 + $0x14] sm:$0xf]
      %v1274 = vld [vmem:[%s9 + $0x18] sm:$0xf]
      %v1275 = vld [vmem:[%s9 + $0x1c] sm:$0xf]
      %v1276 = vld [vmem:[%s9 + $0x20] sm:$0xf]
      %v1277 = vld [vmem:[%s9 + $0x24] sm:$0xf]
      %v1278 = vld [vmem:[%s9 + $0x28] sm:$0xf]
      %v1279 = vld [vmem:[%s9 + $0x2c] sm:$0xf]
      %v1280 = vld [vmem:[%s9 + $0x30] sm:$0xf]
      %v1281 = vld [vmem:[%s9 + $0x34] sm:$0xf]
      %v1282 = vld [vmem:[%s9 + $0x38] sm:$0xf]
      %v1283 = vld [vmem:[%s9 + $0x3c] sm:$0xf]
      %v1284 = vld [vmem:[%s10] sm:$0x1]
      %v1285 = vld [vmem:[%s10 + $0x1] sm:$0x1]
      %v1286 = vld [vmem:[%s10 + $0x2] sm:$0x1]
      %v1287 = vld [vmem:[%s10 + $0x3] sm:$0x1]
      %v1292 = vlaneseq
      %v1293 = vshrl.u32 %v1292, 7
      %v1294 = vsub.s32 0, %v1293
      %v1295 = vrot.slane %v1284, %v1294
      %v1296 = vlaneseq
      %v1297 = vshrl.u32 %v1296, 7
      %v1298 = vsub.s32 0, %v1297
      %v1299 = vrot.slane %v1285, %v1298
      %v1300 = vlaneseq
      %v1301 = vshrl.u32 %v1300, 7
      %v1302 = vsub.s32 0, %v1301
      %v1303 = vrot.slane %v1286, %v1302
      %v1304 = vlaneseq
      %v1305 = vshrl.u32 %v1304, 7
      %v1306 = vsub.s32 0, %v1305
      %v1307 = vrot.slane %v1287, %v1306
      %v1316 = vunpack.c.l.b16 %v1268
      %v1317 = vunpack.c.l.b16 %v1269
      %v1318 = vunpack.c.l.b16 %v1270
      %v1319 = vunpack.c.l.b16 %v1271
      %v1320 = vpack.c.b16 %v1317, %v1316
      %v1321 = vpack.c.b16 %v1319, %v1318
      %v1325 = vsel %vm840, %v1011, 0
      %1327 = vmatprep.subr.bf16.mxu0 0
      %1328 = vmatpush1.bf16.msra.mxu0 %v1320
      %1329 = vmatprep.subr.bf16.mxu0 0
      %1330 = vmatpush1.bf16.msra.mxu0 %v1321
      %1331 = vmatprep.subr.bf16.mxu0 0
      %1332 = vmatpush1.bf16.msra.mxu0 0
      %1333 = vmatprep.subr.bf16.mxu0 0
      %1334 = vmatpush1.bf16.msra.mxu0 0
      %1335 = vmatprep.subr.bf16.mxu0 0
      %1336 = vmatpush1.bf16.msra.mxu0 0
      %1337 = vmatprep.subr.bf16.mxu0 0
      %1338 = vmatpush1.bf16.msra.mxu0 0
      %1339 = vmatprep.subr.bf16.mxu0 0
      %1340 = vmatpush1.bf16.msra.mxu0 0
      %1341 = vmatprep.subr.bf16.mxu0 0
      %1342 = vmatpush1.bf16.msra.mxu0 0
      %1343 = vmatprep.subr.bf16.mxu0 0
      %1344 = vmatpush1.bf16.msra.mxu0 0
      %1345 = vmatprep.subr.bf16.mxu0 0
      %1346 = vmatpush1.bf16.msra.mxu0 0
      %1347 = vmatprep.subr.bf16.mxu0 0
      %1348 = vmatpush1.bf16.msra.mxu0 0
      %1349 = vmatprep.subr.bf16.mxu0 0
      %1350 = vmatpush1.bf16.msra.mxu0 0
      %1351 = vmatprep.subr.bf16.mxu0 0
      %1352 = vmatpush1.bf16.msra.mxu0 0
      %1353 = vmatprep.subr.bf16.mxu0 0
      %1354 = vmatpush1.bf16.msra.mxu0 0
      %1355 = vmatprep.subr.bf16.mxu0 0
      %1356 = vmatpush1.bf16.msra.mxu0 0
      %1357 = vmatprep.subr.bf16.mxu0 0
      %1358 = vmatpush1.bf16.msra.mxu0 0
      %1359 = vmatprep.mubr.bf16.mxu0 0
      %1360 = vmatmul.mubr.bf16.gmra.mrb[0].mxu0 %v1325
      %v1361 = vpop.f32.mrb[0].mxu0
      %v1362 = vadd.f32 %v1295, %v1361
      %v1363 = vpop.f32.mrb[0].mxu0
      %v1364 = vpop.f32.mrb[0].mxu0
      %v1365 = vpop.f32.mrb[0].mxu0
      %1366 = vdwg.mxu0
      %v1371 = vunpack.c.l.b16 %v1272
      %v1372 = vunpack.c.l.b16 %v1273
      %v1373 = vunpack.c.l.b16 %v1274
      %v1374 = vunpack.c.l.b16 %v1275
      %v1375 = vpack.c.b16 %v1372, %v1371
      %v1376 = vpack.c.b16 %v1374, %v1373
      %1379 = vmatprep.subr.bf16.mxu0 0
      %1380 = vmatpush1.bf16.msra.mxu0 %v1375
      %1381 = vmatprep.subr.bf16.mxu0 0
      %1382 = vmatpush1.bf16.msra.mxu0 %v1376
      %1383 = vmatprep.subr.bf16.mxu0 0
      %1384 = vmatpush1.bf16.msra.mxu0 0
      %1385 = vmatprep.subr.bf16.mxu0 0
      %1386 = vmatpush1.bf16.msra.mxu0 0
      %1387 = vmatprep.subr.bf16.mxu0 0
      %1388 = vmatpush1.bf16.msra.mxu0 0
      %1389 = vmatprep.subr.bf16.mxu0 0
      %1390 = vmatpush1.bf16.msra.mxu0 0
      %1391 = vmatprep.subr.bf16.mxu0 0
      %1392 = vmatpush1.bf16.msra.mxu0 0
      %1393 = vmatprep.subr.bf16.mxu0 0
      %1394 = vmatpush1.bf16.msra.mxu0 0
      %1395 = vmatprep.subr.bf16.mxu0 0
      %1396 = vmatpush1.bf16.msra.mxu0 0
      %1397 = vmatprep.subr.bf16.mxu0 0
      %1398 = vmatpush1.bf16.msra.mxu0 0
      %1399 = vmatprep.subr.bf16.mxu0 0
      %1400 = vmatpush1.bf16.msra.mxu0 0
      %1401 = vmatprep.subr.bf16.mxu0 0
      %1402 = vmatpush1.bf16.msra.mxu0 0
      %1403 = vmatprep.subr.bf16.mxu0 0
      %1404 = vmatpush1.bf16.msra.mxu0 0
      %1405 = vmatprep.subr.bf16.mxu0 0
      %1406 = vmatpush1.bf16.msra.mxu0 0
      %1407 = vmatprep.subr.bf16.mxu0 0
      %1408 = vmatpush1.bf16.msra.mxu0 0
      %1409 = vmatprep.subr.bf16.mxu0 0
      %1410 = vmatpush1.bf16.msra.mxu0 0
      %1411 = vmatprep.mubr.bf16.mxu0 0
      %1412 = vmatmul.mubr.bf16.gmra.mrb[0].mxu0 %v1325
      %v1413 = vpop.f32.mrb[0].mxu0
      %v1414 = vadd.f32 %v1299, %v1413
      %v1415 = vpop.f32.mrb[0].mxu0
      %v1416 = vpop.f32.mrb[0].mxu0
      %v1417 = vpop.f32.mrb[0].mxu0
      %1418 = vdwg.mxu0
      %v1423 = vunpack.c.l.b16 %v1276
      %v1424 = vunpack.c.l.b16 %v1277
      %v1425 = vunpack.c.l.b16 %v1278
      %v1426 = vunpack.c.l.b16 %v1279
      %v1427 = vpack.c.b16 %v1424, %v1423
      %v1428 = vpack.c.b16 %v1426, %v1425
      %1431 = vmatprep.subr.bf16.mxu0 0
      %1432 = vmatpush1.bf16.msra.mxu0 %v1427
      %1433 = vmatprep.subr.bf16.mxu0 0
      %1434 = vmatpush1.bf16.msra.mxu0 %v1428
      %1435 = vmatprep.subr.bf16.mxu0 0
      %1436 = vmatpush1.bf16.msra.mxu0 0
      %1437 = vmatprep.subr.bf16.mxu0 0
      %1438 = vmatpush1.bf16.msra.mxu0 0
      %1439 = vmatprep.subr.bf16.mxu0 0
      %1440 = vmatpush1.bf16.msra.mxu0 0
      %1441 = vmatprep.subr.bf16.mxu0 0
      %1442 = vmatpush1.bf16.msra.mxu0 0
      %1443 = vmatprep.subr.bf16.mxu0 0
      %1444 = vmatpush1.bf16.msra.mxu0 0
      %1445 = vmatprep.subr.bf16.mxu0 0
      %1446 = vmatpush1.bf16.msra.mxu0 0
      %1447 = vmatprep.subr.bf16.mxu0 0
      %1448 = vmatpush1.bf16.msra.mxu0 0
      %1449 = vmatprep.subr.bf16.mxu0 0
      %1450 = vmatpush1.bf16.msra.mxu0 0
      %1451 = vmatprep.subr.bf16.mxu0 0
      %1452 = vmatpush1.bf16.msra.mxu0 0
      %1453 = vmatprep.subr.bf16.mxu0 0
      %1454 = vmatpush1.bf16.msra.mxu0 0
      %1455 = vmatprep.subr.bf16.mxu0 0
      %1456 = vmatpush1.bf16.msra.mxu0 0
      %1457 = vmatprep.subr.bf16.mxu0 0
      %1458 = vmatpush1.bf16.msra.mxu0 0
      %1459 = vmatprep.subr.bf16.mxu0 0
      %1460 = vmatpush1.bf16.msra.mxu0 0
      %1461 = vmatprep.subr.bf16.mxu0 0
      %1462 = vmatpush1.bf16.msra.mxu0 0
      %1463 = vmatprep.mubr.bf16.mxu0 0
      %1464 = vmatmul.mubr.bf16.gmra.mrb[0].mxu0 %v1325
      %v1465 = vpop.f32.mrb[0].mxu0
      %v1466 = vadd.f32 %v1303, %v1465
      %v1467 = vpop.f32.mrb[0].mxu0
      %v1468 = vpop.f32.mrb[0].mxu0
      %v1469 = vpop.f32.mrb[0].mxu0
      %1470 = vdwg.mxu0
      %v1475 = vunpack.c.l.b16 %v1280
      %v1476 = vunpack.c.l.b16 %v1281
      %v1477 = vunpack.c.l.b16 %v1282
      %v1478 = vunpack.c.l.b16 %v1283
      %v1479 = vpack.c.b16 %v1476, %v1475
      %v1480 = vpack.c.b16 %v1478, %v1477
      %1483 = vmatprep.subr.bf16.mxu0 0
      %1484 = vmatpush1.bf16.msra.mxu0 %v1479
      %1485 = vmatprep.subr.bf16.mxu0 0
      %1486 = vmatpush1.bf16.msra.mxu0 %v1480
      %1487 = vmatprep.subr.bf16.mxu0 0
      %1488 = vmatpush1.bf16.msra.mxu0 0
      %1489 = vmatprep.subr.bf16.mxu0 0
      %1490 = vmatpush1.bf16.msra.mxu0 0
      %1491 = vmatprep.subr.bf16.mxu0 0
      %1492 = vmatpush1.bf16.msra.mxu0 0
      %1493 = vmatprep.subr.bf16.mxu0 0
      %1494 = vmatpush1.bf16.msra.mxu0 0
      %1495 = vmatprep.subr.bf16.mxu0 0
      %1496 = vmatpush1.bf16.msra.mxu0 0
      %1497 = vmatprep.subr.bf16.mxu0 0
      %1498 = vmatpush1.bf16.msra.mxu0 0
      %1499 = vmatprep.subr.bf16.mxu0 0
      %1500 = vmatpush1.bf16.msra.mxu0 0
      %1501 = vmatprep.subr.bf16.mxu0 0
      %1502 = vmatpush1.bf16.msra.mxu0 0
      %1503 = vmatprep.subr.bf16.mxu0 0
      %1504 = vmatpush1.bf16.msra.mxu0 0
      %1505 = vmatprep.subr.bf16.mxu0 0
      %1506 = vmatpush1.bf16.msra.mxu0 0
      %1507 = vmatprep.subr.bf16.mxu0 0
      %1508 = vmatpush1.bf16.msra.mxu0 0
      %1509 = vmatprep.subr.bf16.mxu0 0
      %1510 = vmatpush1.bf16.msra.mxu0 0
      %1511 = vmatprep.subr.bf16.mxu0 0
      %1512 = vmatpush1.bf16.msra.mxu0 0
      %1513 = vmatprep.subr.bf16.mxu0 0
      %1514 = vmatpush1.bf16.msra.mxu0 0
      %1515 = vmatprep.mubr.bf16.mxu0 0
      %1516 = vmatmul.mubr.bf16.gmra.mrb[0].mxu0 %v1325
      %v1517 = vpop.f32.mrb[0].mxu0
      %v1518 = vadd.f32 %v1307, %v1517
      %v1519 = vpop.f32.mrb[0].mxu0
      %v1520 = vpop.f32.mrb[0].mxu0
      %v1521 = vpop.f32.mrb[0].mxu0
      %1522 = vdwg.mxu0
      %v1523 = vld [vmem:[%s11] sm:$0xf]
      %v1524 = vld [vmem:[%s11 + $0x4] sm:$0xf]
      %v1525 = vld [vmem:[%s11 + $0x8] sm:$0xf]
      %v1526 = vld [vmem:[%s11 + $0xc] sm:$0xf]
      %v1527 = vld [vmem:[%s11 + $0x10] sm:$0xf]
      %v1528 = vld [vmem:[%s11 + $0x14] sm:$0xf]
      %v1529 = vld [vmem:[%s11 + $0x18] sm:$0xf]
      %v1530 = vld [vmem:[%s11 + $0x1c] sm:$0xf]
      %v1531 = vld [vmem:[%s11 + $0x20] sm:$0xf]
      %v1532 = vld [vmem:[%s11 + $0x24] sm:$0xf]
      %v1533 = vld [vmem:[%s11 + $0x28] sm:$0xf]
      %v1534 = vld [vmem:[%s11 + $0x2c] sm:$0xf]
      %v1535 = vld [vmem:[%s11 + $0x30] sm:$0xf]
      %v1536 = vld [vmem:[%s11 + $0x34] sm:$0xf]
      %v1537 = vld [vmem:[%s11 + $0x38] sm:$0xf]
      %v1538 = vld [vmem:[%s11 + $0x3c] sm:$0xf]
      %v1539 = vld [vmem:[%s12] sm:$0x1]
      %v1540 = vld [vmem:[%s12 + $0x1] sm:$0x1]
      %v1541 = vld [vmem:[%s12 + $0x2] sm:$0x1]
      %v1542 = vld [vmem:[%s12 + $0x3] sm:$0x1]
      %v1547 = vlaneseq
      %v1548 = vshrl.u32 %v1547, 7
      %v1549 = vsub.s32 0, %v1548
      %v1550 = vrot.slane %v1539, %v1549
      %v1551 = vlaneseq
      %v1552 = vshrl.u32 %v1551, 7
      %v1553 = vsub.s32 0, %v1552
      %v1554 = vrot.slane %v1540, %v1553
      %v1555 = vlaneseq
      %v1556 = vshrl.u32 %v1555, 7
      %v1557 = vsub.s32 0, %v1556
      %v1558 = vrot.slane %v1541, %v1557
      %v1559 = vlaneseq
      %v1560 = vshrl.u32 %v1559, 7
      %v1561 = vsub.s32 0, %v1560
      %v1562 = vrot.slane %v1542, %v1561
      %v1571 = vunpack.c.l.b16 %v1523
      %v1572 = vunpack.c.l.b16 %v1524
      %v1573 = vunpack.c.l.b16 %v1525
      %v1574 = vunpack.c.l.b16 %v1526
      %v1575 = vpack.c.b16 %v1572, %v1571
      %v1576 = vpack.c.b16 %v1574, %v1573
      %v1580 = vsel %vm840, %v1012, 0
      %1582 = vmatprep.subr.bf16.mxu0 0
      %1583 = vmatpush1.bf16.msra.mxu0 %v1575
      %1584 = vmatprep.subr.bf16.mxu0 0
      %1585 = vmatpush1.bf16.msra.mxu0 %v1576
      %1586 = vmatprep.subr.bf16.mxu0 0
      %1587 = vmatpush1.bf16.msra.mxu0 0
      %1588 = vmatprep.subr.bf16.mxu0 0
      %1589 = vmatpush1.bf16.msra.mxu0 0
      %1590 = vmatprep.subr.bf16.mxu0 0
      %1591 = vmatpush1.bf16.msra.mxu0 0
      %1592 = vmatprep.subr.bf16.mxu0 0
      %1593 = vmatpush1.bf16.msra.mxu0 0
      %1594 = vmatprep.subr.bf16.mxu0 0
      %1595 = vmatpush1.bf16.msra.mxu0 0
      %1596 = vmatprep.subr.bf16.mxu0 0
      %1597 = vmatpush1.bf16.msra.mxu0 0
      %1598 = vmatprep.subr.bf16.mxu0 0
      %1599 = vmatpush1.bf16.msra.mxu0 0
      %1600 = vmatprep.subr.bf16.mxu0 0
      %1601 = vmatpush1.bf16.msra.mxu0 0
      %1602 = vmatprep.subr.bf16.mxu0 0
      %1603 = vmatpush1.bf16.msra.mxu0 0
      %1604 = vmatprep.subr.bf16.mxu0 0
      %1605 = vmatpush1.bf16.msra.mxu0 0
      %1606 = vmatprep.subr.bf16.mxu0 0
      %1607 = vmatpush1.bf16.msra.mxu0 0
      %1608 = vmatprep.subr.bf16.mxu0 0
      %1609 = vmatpush1.bf16.msra.mxu0 0
      %1610 = vmatprep.subr.bf16.mxu0 0
      %1611 = vmatpush1.bf16.msra.mxu0 0
      %1612 = vmatprep.subr.bf16.mxu0 0
      %1613 = vmatpush1.bf16.msra.mxu0 0
      %1614 = vmatprep.mubr.bf16.mxu0 0
      %1615 = vmatmul.mubr.bf16.gmra.mrb[0].mxu0 %v1580
      %v1616 = vpop.f32.mrb[0].mxu0
      %v1617 = vadd.f32 %v1550, %v1616
      %v1618 = vpop.f32.mrb[0].mxu0
      %v1619 = vpop.f32.mrb[0].mxu0
      %v1620 = vpop.f32.mrb[0].mxu0
      %1621 = vdwg.mxu0
      %v1626 = vunpack.c.l.b16 %v1527
      %v1627 = vunpack.c.l.b16 %v1528
      %v1628 = vunpack.c.l.b16 %v1529
      %v1629 = vunpack.c.l.b16 %v1530
      %v1630 = vpack.c.b16 %v1627, %v1626
      %v1631 = vpack.c.b16 %v1629, %v1628
      %1634 = vmatprep.subr.bf16.mxu0 0
      %1635 = vmatpush1.bf16.msra.mxu0 %v1630
      %1636 = vmatprep.subr.bf16.mxu0 0
      %1637 = vmatpush1.bf16.msra.mxu0 %v1631
      %1638 = vmatprep.subr.bf16.mxu0 0
      %1639 = vmatpush1.bf16.msra.mxu0 0
      %1640 = vmatprep.subr.bf16.mxu0 0
      %1641 = vmatpush1.bf16.msra.mxu0 0
      %1642 = vmatprep.subr.bf16.mxu0 0
      %1643 = vmatpush1.bf16.msra.mxu0 0
      %1644 = vmatprep.subr.bf16.mxu0 0
      %1645 = vmatpush1.bf16.msra.mxu0 0
      %1646 = vmatprep.subr.bf16.mxu0 0
      %1647 = vmatpush1.bf16.msra.mxu0 0
      %1648 = vmatprep.subr.bf16.mxu0 0
      %1649 = vmatpush1.bf16.msra.mxu0 0
      %1650 = vmatprep.subr.bf16.mxu0 0
      %1651 = vmatpush1.bf16.msra.mxu0 0
      %1652 = vmatprep.subr.bf16.mxu0 0
      %1653 = vmatpush1.bf16.msra.mxu0 0
      %1654 = vmatprep.subr.bf16.mxu0 0
      %1655 = vmatpush1.bf16.msra.mxu0 0
      %1656 = vmatprep.subr.bf16.mxu0 0
      %1657 = vmatpush1.bf16.msra.mxu0 0
      %1658 = vmatprep.subr.bf16.mxu0 0
      %1659 = vmatpush1.bf16.msra.mxu0 0
      %1660 = vmatprep.subr.bf16.mxu0 0
      %1661 = vmatpush1.bf16.msra.mxu0 0
      %1662 = vmatprep.subr.bf16.mxu0 0
      %1663 = vmatpush1.bf16.msra.mxu0 0
      %1664 = vmatprep.subr.bf16.mxu0 0
      %1665 = vmatpush1.bf16.msra.mxu0 0
      %1666 = vmatprep.mubr.bf16.mxu0 0
      %1667 = vmatmul.mubr.bf16.gmra.mrb[0].mxu0 %v1580
      %v1668 = vpop.f32.mrb[0].mxu0
      %v1669 = vadd.f32 %v1554, %v1668
      %v1670 = vpop.f32.mrb[0].mxu0
      %v1671 = vpop.f32.mrb[0].mxu0
      %v1672 = vpop.f32.mrb[0].mxu0
      %1673 = vdwg.mxu0
      %v1678 = vunpack.c.l.b16 %v1531
      %v1679 = vunpack.c.l.b16 %v1532
      %v1680 = vunpack.c.l.b16 %v1533
      %v1681 = vunpack.c.l.b16 %v1534
      %v1682 = vpack.c.b16 %v1679, %v1678
      %v1683 = vpack.c.b16 %v1681, %v1680
      %1686 = vmatprep.subr.bf16.mxu0 0
      %1687 = vmatpush1.bf16.msra.mxu0 %v1682
      %1688 = vmatprep.subr.bf16.mxu0 0
      %1689 = vmatpush1.bf16.msra.mxu0 %v1683
      %1690 = vmatprep.subr.bf16.mxu0 0
      %1691 = vmatpush1.bf16.msra.mxu0 0
      %1692 = vmatprep.subr.bf16.mxu0 0
      %1693 = vmatpush1.bf16.msra.mxu0 0
      %1694 = vmatprep.subr.bf16.mxu0 0
      %1695 = vmatpush1.bf16.msra.mxu0 0
      %1696 = vmatprep.subr.bf16.mxu0 0
      %1697 = vmatpush1.bf16.msra.mxu0 0
      %1698 = vmatprep.subr.bf16.mxu0 0
      %1699 = vmatpush1.bf16.msra.mxu0 0
      %1700 = vmatprep.subr.bf16.mxu0 0
      %1701 = vmatpush1.bf16.msra.mxu0 0
      %1702 = vmatprep.subr.bf16.mxu0 0
      %1703 = vmatpush1.bf16.msra.mxu0 0
      %1704 = vmatprep.subr.bf16.mxu0 0
      %1705 = vmatpush1.bf16.msra.mxu0 0
      %1706 = vmatprep.subr.bf16.mxu0 0
      %1707 = vmatpush1.bf16.msra.mxu0 0
      %1708 = vmatprep.subr.bf16.mxu0 0
      %1709 = vmatpush1.bf16.msra.mxu0 0
      %1710 = vmatprep.subr.bf16.mxu0 0
      %1711 = vmatpush1.bf16.msra.mxu0 0
      %1712 = vmatprep.subr.bf16.mxu0 0
      %1713 = vmatpush1.bf16.msra.mxu0 0
      %1714 = vmatprep.subr.bf16.mxu0 0
      %1715 = vmatpush1.bf16.msra.mxu0 0
      %1716 = vmatprep.subr.bf16.mxu0 0
      %1717 = vmatpush1.bf16.msra.mxu0 0
      %1718 = vmatprep.mubr.bf16.mxu0 0
      %1719 = vmatmul.mubr.bf16.gmra.mrb[0].mxu0 %v1580
      %v1720 = vpop.f32.mrb[0].mxu0
      %v1721 = vadd.f32 %v1558, %v1720
      %v1722 = vpop.f32.mrb[0].mxu0
      %v1723 = vpop.f32.mrb[0].mxu0
      %v1724 = vpop.f32.mrb[0].mxu0
      %1725 = vdwg.mxu0
      %v1730 = vunpack.c.l.b16 %v1535
      %v1731 = vunpack.c.l.b16 %v1536
      %v1732 = vunpack.c.l.b16 %v1537
      %v1733 = vunpack.c.l.b16 %v1538
      %v1734 = vpack.c.b16 %v1731, %v1730
      %v1735 = vpack.c.b16 %v1733, %v1732
      %1738 = vmatprep.subr.bf16.mxu0 0
      %1739 = vmatpush1.bf16.msra.mxu0 %v1734
      %1740 = vmatprep.subr.bf16.mxu0 0
      %1741 = vmatpush1.bf16.msra.mxu0 %v1735
      %1742 = vmatprep.subr.bf16.mxu0 0
      %1743 = vmatpush1.bf16.msra.mxu0 0
      %1744 = vmatprep.subr.bf16.mxu0 0
      %1745 = vmatpush1.bf16.msra.mxu0 0
      %1746 = vmatprep.subr.bf16.mxu0 0
      %1747 = vmatpush1.bf16.msra.mxu0 0
      %1748 = vmatprep.subr.bf16.mxu0 0
      %1749 = vmatpush1.bf16.msra.mxu0 0
      %1750 = vmatprep.subr.bf16.mxu0 0
      %1751 = vmatpush1.bf16.msra.mxu0 0
      %1752 = vmatprep.subr.bf16.mxu0 0
      %1753 = vmatpush1.bf16.msra.mxu0 0
      %1754 = vmatprep.subr.bf16.mxu0 0
      %1755 = vmatpush1.bf16.msra.mxu0 0
      %1756 = vmatprep.subr.bf16.mxu0 0
      %1757 = vmatpush1.bf16.msra.mxu0 0
      %1758 = vmatprep.subr.bf16.mxu0 0
      %1759 = vmatpush1.bf16.msra.mxu0 0
      %1760 = vmatprep.subr.bf16.mxu0 0
      %1761 = vmatpush1.bf16.msra.mxu0 0
      %1762 = vmatprep.subr.bf16.mxu0 0
      %1763 = vmatpush1.bf16.msra.mxu0 0
      %1764 = vmatprep.subr.bf16.mxu0 0
      %1765 = vmatpush1.bf16.msra.mxu0 0
      %1766 = vmatprep.subr.bf16.mxu0 0
      %1767 = vmatpush1.bf16.msra.mxu0 0
      %1768 = vmatprep.subr.bf16.mxu0 0
      %1769 = vmatpush1.bf16.msra.mxu0 0
      %1770 = vmatprep.mubr.bf16.mxu0 0
      %1771 = vmatmul.mubr.bf16.gmra.mrb[0].mxu0 %v1580
      %v1772 = vpop.f32.mrb[0].mxu0
      %v1773 = vadd.f32 %v1562, %v1772
      %v1774 = vpop.f32.mrb[0].mxu0
      %v1775 = vpop.f32.mrb[0].mxu0
      %v1776 = vpop.f32.mrb[0].mxu0
      %1777 = vdwg.mxu0
      %v1778 = vpack.c.bf16 %v1107, %v1107
      %v1779 = vpack.c.bf16 %v1159, %v1159
      %v1780 = vpack.c.bf16 %v1211, %v1211
      %v1781 = vpack.c.bf16 %v1263, %v1263
      %v1782 = vpack.c.bf16 %v1362, %v1362
      %v1783 = vpack.c.bf16 %v1414, %v1414
      %v1784 = vpack.c.bf16 %v1466, %v1466
      %v1785 = vpack.c.bf16 %v1518, %v1518
      %vm1786 = vcmask 64512
      %v1788 = vsel %vm1786, %v1778, 0
      %v1791 = vsel %vm1786, %v1782, 0
      %1793 = vmatprep.subr.bf16.mxu0 0
      %1794 = vmatpush1.bf16.xpose.msra.mxu0 %v1791
      %1795 = vmatprep.subr.bf16.mxu0 0
      %1796 = vmatpush1.bf16.xpose.msra.mxu0 0
      %1797 = vmatprep.subr.bf16.mxu0 0
      %1798 = vmatpush1.bf16.xpose.msra.mxu0 0
      %1799 = vmatprep.subr.bf16.mxu0 0
      %1800 = vmatpush1.bf16.xpose.msra.mxu0 0
      %1801 = vmatprep.subr.bf16.mxu0 0
      %1802 = vmatpush1.bf16.xpose.msra.mxu0 0
      %1803 = vmatprep.subr.bf16.mxu0 0
      %1804 = vmatpush1.bf16.xpose.msra.mxu0 0
      %1805 = vmatprep.subr.bf16.mxu0 0
      %1806 = vmatpush1.bf16.xpose.msra.mxu0 0
      %1807 = vmatprep.subr.bf16.mxu0 0
      %1808 = vmatpush1.bf16.xpose.msra.mxu0 0
      %1809 = vmatprep.subr.bf16.mxu0 0
      %1810 = vmatpush1.bf16.xpose.msra.mxu0 0
      %1811 = vmatprep.subr.bf16.mxu0 0
      %1812 = vmatpush1.bf16.xpose.msra.mxu0 0
      %1813 = vmatprep.subr.bf16.mxu0 0
      %1814 = vmatpush1.bf16.xpose.msra.mxu0 0
      %1815 = vmatprep.subr.bf16.mxu0 0
      %1816 = vmatpush1.bf16.xpose.msra.mxu0 0
      %1817 = vmatprep.subr.bf16.mxu0 0
      %1818 = vmatpush1.bf16.xpose.msra.mxu0 0
      %1819 = vmatprep.subr.bf16.mxu0 0
      %1820 = vmatpush1.bf16.xpose.msra.mxu0 0
      %1821 = vmatprep.subr.bf16.mxu0 0
      %1822 = vmatpush1.bf16.xpose.msra.mxu0 0
      %1823 = vmatprep.subr.bf16.mxu0 0
      %1824 = vmatpush1.bf16.xpose.msra.mxu0 0
      %1825 = vmatprep.mubr.bf16.mxu0 0
      %1826 = vmatmul.mubr.bf16.gmra.mrb[0].mxu0 %v1788
      %v1827 = vpop.f32.mrb[0].mxu0
      %v1828 = vadd.f32 0.0, %v1827
      %v1829 = vpop.f32.mrb[0].mxu0
      %v1830 = vpop.f32.mrb[0].mxu0
      %v1831 = vpop.f32.mrb[0].mxu0
      %1832 = vdwg.mxu0
      %v1834 = vsel %vm1786, %v1779, 0
      %v1837 = vsel %vm1786, %v1783, 0
      %1839 = vmatprep.subr.bf16.mxu0 0
      %1840 = vmatpush1.bf16.xpose.msra.mxu0 %v1837
      %1841 = vmatprep.subr.bf16.mxu0 0
      %1842 = vmatpush1.bf16.xpose.msra.mxu0 0
      %1843 = vmatprep.subr.bf16.mxu0 0
      %1844 = vmatpush1.bf16.xpose.msra.mxu0 0
      %1845 = vmatprep.subr.bf16.mxu0 0
      %1846 = vmatpush1.bf16.xpose.msra.mxu0 0
      %1847 = vmatprep.subr.bf16.mxu0 0
      %1848 = vmatpush1.bf16.xpose.msra.mxu0 0
      %1849 = vmatprep.subr.bf16.mxu0 0
      %1850 = vmatpush1.bf16.xpose.msra.mxu0 0
      %1851 = vmatprep.subr.bf16.mxu0 0
      %1852 = vmatpush1.bf16.xpose.msra.mxu0 0
      %1853 = vmatprep.subr.bf16.mxu0 0
      %1854 = vmatpush1.bf16.xpose.msra.mxu0 0
      %1855 = vmatprep.subr.bf16.mxu0 0
      %1856 = vmatpush1.bf16.xpose.msra.mxu0 0
      %1857 = vmatprep.subr.bf16.mxu0 0
      %1858 = vmatpush1.bf16.xpose.msra.mxu0 0
      %1859 = vmatprep.subr.bf16.mxu0 0
      %1860 = vmatpush1.bf16.xpose.msra.mxu0 0
      %1861 = vmatprep.subr.bf16.mxu0 0
      %1862 = vmatpush1.bf16.xpose.msra.mxu0 0
      %1863 = vmatprep.subr.bf16.mxu0 0
      %1864 = vmatpush1.bf16.xpose.msra.mxu0 0
      %1865 = vmatprep.subr.bf16.mxu0 0
      %1866 = vmatpush1.bf16.xpose.msra.mxu0 0
      %1867 = vmatprep.subr.bf16.mxu0 0
      %1868 = vmatpush1.bf16.xpose.msra.mxu0 0
      %1869 = vmatprep.subr.bf16.mxu0 0
      %1870 = vmatpush1.bf16.xpose.msra.mxu0 0
      %1871 = vmatprep.mubr.bf16.mxu0 0
      %1872 = vmatmul.mubr.bf16.gmra.mrb[0].mxu0 %v1834
      %v1873 = vpop.f32.mrb[0].mxu0
      %v1874 = vadd.f32 0.0, %v1873
      %v1875 = vpop.f32.mrb[0].mxu0
      %v1876 = vpop.f32.mrb[0].mxu0
      %v1877 = vpop.f32.mrb[0].mxu0
      %1878 = vdwg.mxu0
      %v1880 = vsel %vm1786, %v1780, 0
      %v1883 = vsel %vm1786, %v1784, 0
      %1885 = vmatprep.subr.bf16.mxu0 0
      %1886 = vmatpush1.bf16.xpose.msra.mxu0 %v1883
      %1887 = vmatprep.subr.bf16.mxu0 0
      %1888 = vmatpush1.bf16.xpose.msra.mxu0 0
      %1889 = vmatprep.subr.bf16.mxu0 0
      %1890 = vmatpush1.bf16.xpose.msra.mxu0 0
      %1891 = vmatprep.subr.bf16.mxu0 0
      %1892 = vmatpush1.bf16.xpose.msra.mxu0 0
      %1893 = vmatprep.subr.bf16.mxu0 0
      %1894 = vmatpush1.bf16.xpose.msra.mxu0 0
      %1895 = vmatprep.subr.bf16.mxu0 0
      %1896 = vmatpush1.bf16.xpose.msra.mxu0 0
      %1897 = vmatprep.subr.bf16.mxu0 0
      %1898 = vmatpush1.bf16.xpose.msra.mxu0 0
      %1899 = vmatprep.subr.bf16.mxu0 0
      %1900 = vmatpush1.bf16.xpose.msra.mxu0 0
      %1901 = vmatprep.subr.bf16.mxu0 0
      %1902 = vmatpush1.bf16.xpose.msra.mxu0 0
      %1903 = vmatprep.subr.bf16.mxu0 0
      %1904 = vmatpush1.bf16.xpose.msra.mxu0 0
      %1905 = vmatprep.subr.bf16.mxu0 0
      %1906 = vmatpush1.bf16.xpose.msra.mxu0 0
      %1907 = vmatprep.subr.bf16.mxu0 0
      %1908 = vmatpush1.bf16.xpose.msra.mxu0 0
      %1909 = vmatprep.subr.bf16.mxu0 0
      %1910 = vmatpush1.bf16.xpose.msra.mxu0 0
      %1911 = vmatprep.subr.bf16.mxu0 0
      %1912 = vmatpush1.bf16.xpose.msra.mxu0 0
      %1913 = vmatprep.subr.bf16.mxu0 0
      %1914 = vmatpush1.bf16.xpose.msra.mxu0 0
      %1915 = vmatprep.subr.bf16.mxu0 0
      %1916 = vmatpush1.bf16.xpose.msra.mxu0 0
      %1917 = vmatprep.mubr.bf16.mxu0 0
      %1918 = vmatmul.mubr.bf16.gmra.mrb[0].mxu0 %v1880
      %v1919 = vpop.f32.mrb[0].mxu0
      %v1920 = vadd.f32 0.0, %v1919
      %v1921 = vpop.f32.mrb[0].mxu0
      %v1922 = vpop.f32.mrb[0].mxu0
      %v1923 = vpop.f32.mrb[0].mxu0
      %1924 = vdwg.mxu0
      %v1926 = vsel %vm1786, %v1781, 0
      %v1929 = vsel %vm1786, %v1785, 0
      %1931 = vmatprep.subr.bf16.mxu0 0
      %1932 = vmatpush1.bf16.xpose.msra.mxu0 %v1929
      %1933 = vmatprep.subr.bf16.mxu0 0
      %1934 = vmatpush1.bf16.xpose.msra.mxu0 0
      %1935 = vmatprep.subr.bf16.mxu0 0
      %1936 = vmatpush1.bf16.xpose.msra.mxu0 0
      %1937 = vmatprep.subr.bf16.mxu0 0
      %1938 = vmatpush1.bf16.xpose.msra.mxu0 0
      %1939 = vmatprep.subr.bf16.mxu0 0
      %1940 = vmatpush1.bf16.xpose.msra.mxu0 0
      %1941 = vmatprep.subr.bf16.mxu0 0
      %1942 = vmatpush1.bf16.xpose.msra.mxu0 0
      %1943 = vmatprep.subr.bf16.mxu0 0
      %1944 = vmatpush1.bf16.xpose.msra.mxu0 0
      %1945 = vmatprep.subr.bf16.mxu0 0
      %1946 = vmatpush1.bf16.xpose.msra.mxu0 0
      %1947 = vmatprep.subr.bf16.mxu0 0
      %1948 = vmatpush1.bf16.xpose.msra.mxu0 0
      %1949 = vmatprep.subr.bf16.mxu0 0
      %1950 = vmatpush1.bf16.xpose.msra.mxu0 0
      %1951 = vmatprep.subr.bf16.mxu0 0
      %1952 = vmatpush1.bf16.xpose.msra.mxu0 0
      %1953 = vmatprep.subr.bf16.mxu0 0
      %1954 = vmatpush1.bf16.xpose.msra.mxu0 0
      %1955 = vmatprep.subr.bf16.mxu0 0
      %1956 = vmatpush1.bf16.xpose.msra.mxu0 0
      %1957 = vmatprep.subr.bf16.mxu0 0
      %1958 = vmatpush1.bf16.xpose.msra.mxu0 0
      %1959 = vmatprep.subr.bf16.mxu0 0
      %1960 = vmatpush1.bf16.xpose.msra.mxu0 0
      %1961 = vmatprep.subr.bf16.mxu0 0
      %1962 = vmatpush1.bf16.xpose.msra.mxu0 0
      %1963 = vmatprep.mubr.bf16.mxu0 0
      %1964 = vmatmul.mubr.bf16.gmra.mrb[0].mxu0 %v1926
      %v1965 = vpop.f32.mrb[0].mxu0
      %v1966 = vadd.f32 0.0, %v1965
      %v1967 = vpop.f32.mrb[0].mxu0
      %v1968 = vpop.f32.mrb[0].mxu0
      %v1969 = vpop.f32.mrb[0].mxu0
      %1970 = vdwg.mxu0
      %v1971 = vsel %vm1786, %v1828, -inf
      %1972 = vmax.xlane.f32.xlu0 %v1971
      %v1973 = vpop.xlane.xlu0 %1972
      %v1974 = vsel %vm1786, %v1874, -inf
      %1975 = vmax.xlane.f32.xlu0 %v1974
      %v1976 = vpop.xlane.xlu0 %1975
      %v1977 = vsel %vm1786, %v1920, -inf
      %1978 = vmax.xlane.f32.xlu0 %v1977
      %v1979 = vpop.xlane.xlu0 %1978
      %v1980 = vsel %vm1786, %v1966, -inf
      %1981 = vmax.xlane.f32.xlu0 %v1980
      %v1982 = vpop.xlane.xlu0 %1981
      %v1983 = vsub.f32 %v1828, %v1973
      %v1984 = vsub.f32 %v1874, %v1976
      %v1985 = vsub.f32 %v1920, %v1979
      %v1986 = vsub.f32 %v1966, %v1982
      %v1987 = vmul.f32 %v1983, 1.442695
      %v1988 = vpow.pop %v1987
      %v1989 = vmul.f32 %v1984, 1.442695
      %v1990 = vpow.pop %v1989
      %v1991 = vmul.f32 %v1985, 1.442695
      %v1992 = vpow.pop %v1991
      %v1993 = vmul.f32 %v1986, 1.442695
      %v1994 = vpow.pop %v1993
      %v1995 = vsel %vm1786, %v1988, 0.0
      %1996 = vadd.xlane.f32.xlu0 %v1995
      %v1997 = vpop.xlane.xlu0 %1996
      %v1998 = vsel %vm1786, %v1990, 0.0
      %1999 = vadd.xlane.f32.xlu0 %v1998
      %v2000 = vpop.xlane.xlu0 %1999
      %v2001 = vsel %vm1786, %v1992, 0.0
      %2002 = vadd.xlane.f32.xlu0 %v2001
      %v2003 = vpop.xlane.xlu0 %2002
      %v2004 = vsel %vm1786, %v1994, 0.0
      %2005 = vadd.xlane.f32.xlu0 %v2004
      %v2006 = vpop.xlane.xlu0 %2005
      %v2007 = vrcp.pop %v1997
      %v2008 = vmul.f32 %v1988, %v2007
      %v2009 = vrcp.pop %v2000
      %v2010 = vmul.f32 %v1990, %v2009
      %v2011 = vrcp.pop %v2003
      %v2012 = vmul.f32 %v1992, %v2011
      %v2013 = vrcp.pop %v2006
      %v2014 = vmul.f32 %v1994, %v2013
      %v2015 = vpack.c.bf16 %v2008, %v2008
      %v2016 = vpack.c.bf16 %v2010, %v2010
      %v2017 = vpack.c.bf16 %v2012, %v2012
      %v2018 = vpack.c.bf16 %v2014, %v2014
      %v2019 = vpack.c.bf16 %v1617, %v1617
      %v2020 = vpack.c.bf16 %v1669, %v1669
      %v2021 = vpack.c.bf16 %v1721, %v1721
      %v2022 = vpack.c.bf16 %v1773, %v1773
      %v2024 = vsel %vm1786, %v2015, 0
      %vm2026 = vcmask 1043456
      %v2028 = vsel %vm2026, %v2019, 0
      %2030 = vmatprep.subr.bf16.mxu0 0
      %2031 = vmatpush1.bf16.msra.mxu0 %v2028
      %2032 = vmatprep.subr.bf16.mxu0 0
      %2033 = vmatpush1.bf16.msra.mxu0 0
      %2034 = vmatprep.subr.bf16.mxu0 0
      %2035 = vmatpush1.bf16.msra.mxu0 0
      %2036 = vmatprep.subr.bf16.mxu0 0
      %2037 = vmatpush1.bf16.msra.mxu0 0
      %2038 = vmatprep.subr.bf16.mxu0 0
      %2039 = vmatpush1.bf16.msra.mxu0 0
      %2040 = vmatprep.subr.bf16.mxu0 0
      %2041 = vmatpush1.bf16.msra.mxu0 0
      %2042 = vmatprep.subr.bf16.mxu0 0
      %2043 = vmatpush1.bf16.msra.mxu0 0
      %2044 = vmatprep.subr.bf16.mxu0 0
      %2045 = vmatpush1.bf16.msra.mxu0 0
      %2046 = vmatprep.subr.bf16.mxu0 0
      %2047 = vmatpush1.bf16.msra.mxu0 0
      %2048 = vmatprep.subr.bf16.mxu0 0
      %2049 = vmatpush1.bf16.msra.mxu0 0
      %2050 = vmatprep.subr.bf16.mxu0 0
      %2051 = vmatpush1.bf16.msra.mxu0 0
      %2052 = vmatprep.subr.bf16.mxu0 0
      %2053 = vmatpush1.bf16.msra.mxu0 0
      %2054 = vmatprep.subr.bf16.mxu0 0
      %2055 = vmatpush1.bf16.msra.mxu0 0
      %2056 = vmatprep.subr.bf16.mxu0 0
      %2057 = vmatpush1.bf16.msra.mxu0 0
      %2058 = vmatprep.subr.bf16.mxu0 0
      %2059 = vmatpush1.bf16.msra.mxu0 0
      %2060 = vmatprep.subr.bf16.mxu0 0
      %2061 = vmatpush1.bf16.msra.mxu0 0
      %2062 = vmatprep.mubr.bf16.mxu0 0
      %2063 = vmatmul.mubr.bf16.gmra.mrb[0].mxu0 %v2024
      %v2064 = vpop.f32.mrb[0].mxu0
      %v2065 = vadd.f32 0.0, %v2064
      %v2066 = vpop.f32.mrb[0].mxu0
      %v2067 = vpop.f32.mrb[0].mxu0
      %v2068 = vpop.f32.mrb[0].mxu0
      %2069 = vdwg.mxu0
      %v2071 = vsel %vm1786, %v2016, 0
      %v2074 = vsel %vm2026, %v2020, 0
      %2076 = vmatprep.subr.bf16.mxu0 0
      %2077 = vmatpush1.bf16.msra.mxu0 %v2074
      %2078 = vmatprep.subr.bf16.mxu0 0
      %2079 = vmatpush1.bf16.msra.mxu0 0
      %2080 = vmatprep.subr.bf16.mxu0 0
      %2081 = vmatpush1.bf16.msra.mxu0 0
      %2082 = vmatprep.subr.bf16.mxu0 0
      %2083 = vmatpush1.bf16.msra.mxu0 0
      %2084 = vmatprep.subr.bf16.mxu0 0
      %2085 = vmatpush1.bf16.msra.mxu0 0
      %2086 = vmatprep.subr.bf16.mxu0 0
      %2087 = vmatpush1.bf16.msra.mxu0 0
      %2088 = vmatprep.subr.bf16.mxu0 0
      %2089 = vmatpush1.bf16.msra.mxu0 0
      %2090 = vmatprep.subr.bf16.mxu0 0
      %2091 = vmatpush1.bf16.msra.mxu0 0
      %2092 = vmatprep.subr.bf16.mxu0 0
      %2093 = vmatpush1.bf16.msra.mxu0 0
      %2094 = vmatprep.subr.bf16.mxu0 0
      %2095 = vmatpush1.bf16.msra.mxu0 0
      %2096 = vmatprep.subr.bf16.mxu0 0
      %2097 = vmatpush1.bf16.msra.mxu0 0
      %2098 = vmatprep.subr.bf16.mxu0 0
      %2099 = vmatpush1.bf16.msra.mxu0 0
      %2100 = vmatprep.subr.bf16.mxu0 0
      %2101 = vmatpush1.bf16.msra.mxu0 0
      %2102 = vmatprep.subr.bf16.mxu0 0
      %2103 = vmatpush1.bf16.msra.mxu0 0
      %2104 = vmatprep.subr.bf16.mxu0 0
      %2105 = vmatpush1.bf16.msra.mxu0 0
      %2106 = vmatprep.subr.bf16.mxu0 0
      %2107 = vmatpush1.bf16.msra.mxu0 0
      %2108 = vmatprep.mubr.bf16.mxu0 0
      %2109 = vmatmul.mubr.bf16.gmra.mrb[0].mxu0 %v2071
      %v2110 = vpop.f32.mrb[0].mxu0
      %v2111 = vadd.f32 0.0, %v2110
      %v2112 = vpop.f32.mrb[0].mxu0
      %v2113 = vpop.f32.mrb[0].mxu0
      %v2114 = vpop.f32.mrb[0].mxu0
      %2115 = vdwg.mxu0
      %v2117 = vsel %vm1786, %v2017, 0
      %v2120 = vsel %vm2026, %v2021, 0
      %2122 = vmatprep.subr.bf16.mxu0 0
      %2123 = vmatpush1.bf16.msra.mxu0 %v2120
      %2124 = vmatprep.subr.bf16.mxu0 0
      %2125 = vmatpush1.bf16.msra.mxu0 0
      %2126 = vmatprep.subr.bf16.mxu0 0
      %2127 = vmatpush1.bf16.msra.mxu0 0
      %2128 = vmatprep.subr.bf16.mxu0 0
      %2129 = vmatpush1.bf16.msra.mxu0 0
      %2130 = vmatprep.subr.bf16.mxu0 0
      %2131 = vmatpush1.bf16.msra.mxu0 0
      %2132 = vmatprep.subr.bf16.mxu0 0
      %2133 = vmatpush1.bf16.msra.mxu0 0
      %2134 = vmatprep.subr.bf16.mxu0 0
      %2135 = vmatpush1.bf16.msra.mxu0 0
      %2136 = vmatprep.subr.bf16.mxu0 0
      %2137 = vmatpush1.bf16.msra.mxu0 0
      %2138 = vmatprep.subr.bf16.mxu0 0
      %2139 = vmatpush1.bf16.msra.mxu0 0
      %2140 = vmatprep.subr.bf16.mxu0 0
      %2141 = vmatpush1.bf16.msra.mxu0 0
      %2142 = vmatprep.subr.bf16.mxu0 0
      %2143 = vmatpush1.bf16.msra.mxu0 0
      %2144 = vmatprep.subr.bf16.mxu0 0
      %2145 = vmatpush1.bf16.msra.mxu0 0
      %2146 = vmatprep.subr.bf16.mxu0 0
      %2147 = vmatpush1.bf16.msra.mxu0 0
      %2148 = vmatprep.subr.bf16.mxu0 0
      %2149 = vmatpush1.bf16.msra.mxu0 0
      %2150 = vmatprep.subr.bf16.mxu0 0
      %2151 = vmatpush1.bf16.msra.mxu0 0
      %2152 = vmatprep.subr.bf16.mxu0 0
      %2153 = vmatpush1.bf16.msra.mxu0 0
      %2154 = vmatprep.mubr.bf16.mxu0 0
      %2155 = vmatmul.mubr.bf16.gmra.mrb[0].mxu0 %v2117
      %v2156 = vpop.f32.mrb[0].mxu0
      %v2157 = vadd.f32 0.0, %v2156
      %v2158 = vpop.f32.mrb[0].mxu0
      %v2159 = vpop.f32.mrb[0].mxu0
      %v2160 = vpop.f32.mrb[0].mxu0
      %2161 = vdwg.mxu0
      %v2163 = vsel %vm1786, %v2018, 0
      %v2166 = vsel %vm2026, %v2022, 0
      %2168 = vmatprep.subr.bf16.mxu0 0
      %2169 = vmatpush1.bf16.msra.mxu0 %v2166
      %2170 = vmatprep.subr.bf16.mxu0 0
      %2171 = vmatpush1.bf16.msra.mxu0 0
      %2172 = vmatprep.subr.bf16.mxu0 0
      %2173 = vmatpush1.bf16.msra.mxu0 0
      %2174 = vmatprep.subr.bf16.mxu0 0
      %2175 = vmatpush1.bf16.msra.mxu0 0
      %2176 = vmatprep.subr.bf16.mxu0 0
      %2177 = vmatpush1.bf16.msra.mxu0 0
      %2178 = vmatprep.subr.bf16.mxu0 0
      %2179 = vmatpush1.bf16.msra.mxu0 0
      %2180 = vmatprep.subr.bf16.mxu0 0
      %2181 = vmatpush1.bf16.msra.mxu0 0
      %2182 = vmatprep.subr.bf16.mxu0 0
      %2183 = vmatpush1.bf16.msra.mxu0 0
      %2184 = vmatprep.subr.bf16.mxu0 0
      %2185 = vmatpush1.bf16.msra.mxu0 0
      %2186 = vmatprep.subr.bf16.mxu0 0
      %2187 = vmatpush1.bf16.msra.mxu0 0
      %2188 = vmatprep.subr.bf16.mxu0 0
      %2189 = vmatpush1.bf16.msra.mxu0 0
      %2190 = vmatprep.subr.bf16.mxu0 0
      %2191 = vmatpush1.bf16.msra.mxu0 0
      %2192 = vmatprep.subr.bf16.mxu0 0
      %2193 = vmatpush1.bf16.msra.mxu0 0
      %2194 = vmatprep.subr.bf16.mxu0 0
      %2195 = vmatpush1.bf16.msra.mxu0 0
      %2196 = vmatprep.subr.bf16.mxu0 0
      %2197 = vmatpush1.bf16.msra.mxu0 0
      %2198 = vmatprep.subr.bf16.mxu0 0
      %2199 = vmatpush1.bf16.msra.mxu0 0
      %2200 = vmatprep.mubr.bf16.mxu0 0
      %2201 = vmatmul.mubr.bf16.gmra.mrb[0].mxu0 %v2163
      %v2202 = vpop.f32.mrb[0].mxu0
      %v2203 = vadd.f32 0.0, %v2202
      %v2204 = vpop.f32.mrb[0].mxu0
      %v2205 = vpop.f32.mrb[0].mxu0
      %v2206 = vpop.f32.mrb[0].mxu0
      %2207 = vdwg.mxu0
      %v2208 = vpack.c.bf16 %v2065, %v2065
      %v2209 = vpack.c.bf16 %v2111, %v2111
      %v2210 = vpack.c.bf16 %v2157, %v2157
      %v2211 = vpack.c.bf16 %v2203, %v2203
      %v2212 = vld [vmem:[%s13] sm:$0xf]
      %v2213 = vld [vmem:[%s13 + $0x4] sm:$0xf]
      %v2214 = vld [vmem:[%s13 + $0x8] sm:$0xf]
      %v2215 = vld [vmem:[%s13 + $0xc] sm:$0xf]
      %v2217 = vsel %vm1786, %v2208, 0
      %v2220 = vsel %vm2026, %v2212, 0
      %2222 = vmatprep.subr.bf16.mxu0 0
      %2223 = vmatpush1.bf16.msra.mxu0 %v2220
      %2224 = vmatprep.subr.bf16.mxu0 0
      %2225 = vmatpush1.bf16.msra.mxu0 0
      %2226 = vmatprep.subr.bf16.mxu0 0
      %2227 = vmatpush1.bf16.msra.mxu0 0
      %2228 = vmatprep.subr.bf16.mxu0 0
      %2229 = vmatpush1.bf16.msra.mxu0 0
      %2230 = vmatprep.subr.bf16.mxu0 0
      %2231 = vmatpush1.bf16.msra.mxu0 0
      %2232 = vmatprep.subr.bf16.mxu0 0
      %2233 = vmatpush1.bf16.msra.mxu0 0
      %2234 = vmatprep.subr.bf16.mxu0 0
      %2235 = vmatpush1.bf16.msra.mxu0 0
      %2236 = vmatprep.subr.bf16.mxu0 0
      %2237 = vmatpush1.bf16.msra.mxu0 0
      %2238 = vmatprep.subr.bf16.mxu0 0
      %2239 = vmatpush1.bf16.msra.mxu0 0
      %2240 = vmatprep.subr.bf16.mxu0 0
      %2241 = vmatpush1.bf16.msra.mxu0 0
      %2242 = vmatprep.subr.bf16.mxu0 0
      %2243 = vmatpush1.bf16.msra.mxu0 0
      %2244 = vmatprep.subr.bf16.mxu0 0
      %2245 = vmatpush1.bf16.msra.mxu0 0
      %2246 = vmatprep.subr.bf16.mxu0 0
      %2247 = vmatpush1.bf16.msra.mxu0 0
      %2248 = vmatprep.subr.bf16.mxu0 0
      %2249 = vmatpush1.bf16.msra.mxu0 0
      %2250 = vmatprep.subr.bf16.mxu0 0
      %2251 = vmatpush1.bf16.msra.mxu0 0
      %2252 = vmatprep.subr.bf16.mxu0 0
      %2253 = vmatpush1.bf16.msra.mxu0 0
      %2254 = vmatprep.mubr.bf16.mxu0 0
      %2255 = vmatmul.mubr.bf16.gmra.mrb[0].mxu0 %v2217
      %v2256 = vpop.f32.mrb[0].mxu0
      %v2257 = vadd.f32 0.0, %v2256
      %v2258 = vpop.f32.mrb[0].mxu0
      %v2259 = vpop.f32.mrb[0].mxu0
      %v2260 = vpop.f32.mrb[0].mxu0
      %2261 = vdwg.mxu0
      %v2263 = vsel %vm1786, %v2209, 0
      %v2266 = vsel %vm2026, %v2213, 0
      %2268 = vmatprep.subr.bf16.mxu0 0
      %2269 = vmatpush1.bf16.msra.mxu0 %v2266
      %2270 = vmatprep.subr.bf16.mxu0 0
      %2271 = vmatpush1.bf16.msra.mxu0 0
      %2272 = vmatprep.subr.bf16.mxu0 0
      %2273 = vmatpush1.bf16.msra.mxu0 0
      %2274 = vmatprep.subr.bf16.mxu0 0
      %2275 = vmatpush1.bf16.msra.mxu0 0
      %2276 = vmatprep.subr.bf16.mxu0 0
      %2277 = vmatpush1.bf16.msra.mxu0 0
      %2278 = vmatprep.subr.bf16.mxu0 0
      %2279 = vmatpush1.bf16.msra.mxu0 0
      %2280 = vmatprep.subr.bf16.mxu0 0
      %2281 = vmatpush1.bf16.msra.mxu0 0
      %2282 = vmatprep.subr.bf16.mxu0 0
      %2283 = vmatpush1.bf16.msra.mxu0 0
      %2284 = vmatprep.subr.bf16.mxu0 0
      %2285 = vmatpush1.bf16.msra.mxu0 0
      %2286 = vmatprep.subr.bf16.mxu0 0
      %2287 = vmatpush1.bf16.msra.mxu0 0
      %2288 = vmatprep.subr.bf16.mxu0 0
      %2289 = vmatpush1.bf16.msra.mxu0 0
      %2290 = vmatprep.subr.bf16.mxu0 0
      %2291 = vmatpush1.bf16.msra.mxu0 0
      %2292 = vmatprep.subr.bf16.mxu0 0
      %2293 = vmatpush1.bf16.msra.mxu0 0
      %2294 = vmatprep.subr.bf16.mxu0 0
      %2295 = vmatpush1.bf16.msra.mxu0 0
      %2296 = vmatprep.subr.bf16.mxu0 0
      %2297 = vmatpush1.bf16.msra.mxu0 0
      %2298 = vmatprep.subr.bf16.mxu0 0
      %2299 = vmatpush1.bf16.msra.mxu0 0
      %2300 = vmatprep.mubr.bf16.mxu0 0
      %2301 = vmatmul.mubr.bf16.gmra.mrb[0].mxu0 %v2263
      %v2302 = vpop.f32.mrb[0].mxu0
      %v2303 = vadd.f32 0.0, %v2302
      %v2304 = vpop.f32.mrb[0].mxu0
      %v2305 = vpop.f32.mrb[0].mxu0
      %v2306 = vpop.f32.mrb[0].mxu0
      %2307 = vdwg.mxu0
      %v2309 = vsel %vm1786, %v2210, 0
      %v2312 = vsel %vm2026, %v2214, 0
      %2314 = vmatprep.subr.bf16.mxu0 0
      %2315 = vmatpush1.bf16.msra.mxu0 %v2312
      %2316 = vmatprep.subr.bf16.mxu0 0
      %2317 = vmatpush1.bf16.msra.mxu0 0
      %2318 = vmatprep.subr.bf16.mxu0 0
      %2319 = vmatpush1.bf16.msra.mxu0 0
      %2320 = vmatprep.subr.bf16.mxu0 0
      %2321 = vmatpush1.bf16.msra.mxu0 0
      %2322 = vmatprep.subr.bf16.mxu0 0
      %2323 = vmatpush1.bf16.msra.mxu0 0
      %2324 = vmatprep.subr.bf16.mxu0 0
      %2325 = vmatpush1.bf16.msra.mxu0 0
      %2326 = vmatprep.subr.bf16.mxu0 0
      %2327 = vmatpush1.bf16.msra.mxu0 0
      %2328 = vmatprep.subr.bf16.mxu0 0
      %2329 = vmatpush1.bf16.msra.mxu0 0
      %2330 = vmatprep.subr.bf16.mxu0 0
      %2331 = vmatpush1.bf16.msra.mxu0 0
      %2332 = vmatprep.subr.bf16.mxu0 0
      %2333 = vmatpush1.bf16.msra.mxu0 0
      %2334 = vmatprep.subr.bf16.mxu0 0
      %2335 = vmatpush1.bf16.msra.mxu0 0
      %2336 = vmatprep.subr.bf16.mxu0 0
      %2337 = vmatpush1.bf16.msra.mxu0 0
      %2338 = vmatprep.subr.bf16.mxu0 0
      %2339 = vmatpush1.bf16.msra.mxu0 0
      %2340 = vmatprep.subr.bf16.mxu0 0
      %2341 = vmatpush1.bf16.msra.mxu0 0
      %2342 = vmatprep.subr.bf16.mxu0 0
      %2343 = vmatpush1.bf16.msra.mxu0 0
      %2344 = vmatprep.subr.bf16.mxu0 0
      %2345 = vmatpush1.bf16.msra.mxu0 0
      %2346 = vmatprep.mubr.bf16.mxu0 0
      %2347 = vmatmul.mubr.bf16.gmra.mrb[0].mxu0 %v2309
      %v2348 = vpop.f32.mrb[0].mxu0
      %v2349 = vadd.f32 0.0, %v2348
      %v2350 = vpop.f32.mrb[0].mxu0
      %v2351 = vpop.f32.mrb[0].mxu0
      %v2352 = vpop.f32.mrb[0].mxu0
      %2353 = vdwg.mxu0
      %v2355 = vsel %vm1786, %v2211, 0
      %v2358 = vsel %vm2026, %v2215, 0
      %2360 = vmatprep.subr.bf16.mxu0 0
      %2361 = vmatpush1.bf16.msra.mxu0 %v2358
      %2362 = vmatprep.subr.bf16.mxu0 0
      %2363 = vmatpush1.bf16.msra.mxu0 0
      %2364 = vmatprep.subr.bf16.mxu0 0
      %2365 = vmatpush1.bf16.msra.mxu0 0
      %2366 = vmatprep.subr.bf16.mxu0 0
      %2367 = vmatpush1.bf16.msra.mxu0 0
      %2368 = vmatprep.subr.bf16.mxu0 0
      %2369 = vmatpush1.bf16.msra.mxu0 0
      %2370 = vmatprep.subr.bf16.mxu0 0
      %2371 = vmatpush1.bf16.msra.mxu0 0
      %2372 = vmatprep.subr.bf16.mxu0 0
      %2373 = vmatpush1.bf16.msra.mxu0 0
      %2374 = vmatprep.subr.bf16.mxu0 0
      %2375 = vmatpush1.bf16.msra.mxu0 0
      %2376 = vmatprep.subr.bf16.mxu0 0
      %2377 = vmatpush1.bf16.msra.mxu0 0
      %2378 = vmatprep.subr.bf16.mxu0 0
      %2379 = vmatpush1.bf16.msra.mxu0 0
      %2380 = vmatprep.subr.bf16.mxu0 0
      %2381 = vmatpush1.bf16.msra.mxu0 0
      %2382 = vmatprep.subr.bf16.mxu0 0
      %2383 = vmatpush1.bf16.msra.mxu0 0
      %2384 = vmatprep.subr.bf16.mxu0 0
      %2385 = vmatpush1.bf16.msra.mxu0 0
      %2386 = vmatprep.subr.bf16.mxu0 0
      %2387 = vmatpush1.bf16.msra.mxu0 0
      %2388 = vmatprep.subr.bf16.mxu0 0
      %2389 = vmatpush1.bf16.msra.mxu0 0
      %2390 = vmatprep.subr.bf16.mxu0 0
      %2391 = vmatpush1.bf16.msra.mxu0 0
      %2392 = vmatprep.mubr.bf16.mxu0 0
      %2393 = vmatmul.mubr.bf16.gmra.mrb[0].mxu0 %v2355
      %v2394 = vpop.f32.mrb[0].mxu0
      %v2395 = vadd.f32 0.0, %v2394
      %v2396 = vpop.f32.mrb[0].mxu0
      %v2397 = vpop.f32.mrb[0].mxu0
      %v2398 = vpop.f32.mrb[0].mxu0
      %2399 = vdwg.mxu0
      %v2400 = vsel %vm840, %v2257, 0.0
      %v2401 = vsel %vm840, %v2303, 0.0
      %v2402 = vadd.f32 %v2400, %v2401
      %v2403 = vsel %vm840, %v2349, 0.0
      %v2404 = vadd.f32 %v2402, %v2403
      %v2405 = vsel %vm840, %v2395, 0.0
      %v2406 = vadd.f32 %v2404, %v2405
      %v2407 = vld [vmem:[%s14] sm:$0x1]
      %v2409 = vlaneseq
      %v2410 = vshrl.u32 %v2409, 7
      %v2411 = vsub.s32 0, %v2410
      %v2412 = vrot.slane %v2407, %v2411
      %v2414 = vadd.f32 %v2406, %v2412
      %v2415 = vpack.c.bf16 %v2414, %v2414
      %v2416 = vld [vmem:[%s15] sm:$0xf]
      %v2417 = vld [vmem:[%s15 + $0x4] sm:$0xf]
      %v2418 = vld [vmem:[%s15 + $0x8] sm:$0xf]
      %v2419 = vld [vmem:[%s15 + $0xc] sm:$0xf]
      %v2420 = vld [vmem:[%s16] sm:$0xf]
      %v2421 = vld [vmem:[%s16 + $0x4] sm:$0xf]
      %v2422 = vld [vmem:[%s16 + $0x8] sm:$0xf]
      %v2423 = vld [vmem:[%s16 + $0xc] sm:$0xf]
      %v2428 = vunpack.c.l.b16 %v2420
      %v2429 = vunpack.c.l.b16 %v2421
      %v2430 = vunpack.c.l.b16 %v2422
      %v2431 = vunpack.c.l.b16 %v2423
      %v2432 = vpack.c.b16 %v2429, %v2428
      %v2433 = vpack.c.b16 %v2431, %v2430
      %2436 = vmatprep.subr.bf16.mxu0 0
      %2437 = vmatpush1.bf16.msra.mxu0 %v2432
      %2438 = vmatprep.subr.bf16.mxu0 0
      %2439 = vmatpush1.bf16.msra.mxu0 %v2433
      %2440 = vmatprep.subr.bf16.mxu0 0
      %2441 = vmatpush1.bf16.msra.mxu0 0
      %2442 = vmatprep.subr.bf16.mxu0 0
      %2443 = vmatpush1.bf16.msra.mxu0 0
      %2444 = vmatprep.subr.bf16.mxu0 0
      %2445 = vmatpush1.bf16.msra.mxu0 0
      %2446 = vmatprep.subr.bf16.mxu0 0
      %2447 = vmatpush1.bf16.msra.mxu0 0
      %2448 = vmatprep.subr.bf16.mxu0 0
      %2449 = vmatpush1.bf16.msra.mxu0 0
      %2450 = vmatprep.subr.bf16.mxu0 0
      %2451 = vmatpush1.bf16.msra.mxu0 0
      %2452 = vmatprep.subr.bf16.mxu0 0
      %2453 = vmatpush1.bf16.msra.mxu0 0
      %2454 = vmatprep.subr.bf16.mxu0 0
      %2455 = vmatpush1.bf16.msra.mxu0 0
      %2456 = vmatprep.subr.bf16.mxu0 0
      %2457 = vmatpush1.bf16.msra.mxu0 0
      %2458 = vmatprep.subr.bf16.mxu0 0
      %2459 = vmatpush1.bf16.msra.mxu0 0
      %2460 = vmatprep.subr.bf16.mxu0 0
      %2461 = vmatpush1.bf16.msra.mxu0 0
      %2462 = vmatprep.subr.bf16.mxu0 0
      %2463 = vmatpush1.bf16.msra.mxu0 0
      %2464 = vmatprep.subr.bf16.mxu0 0
      %2465 = vmatpush1.bf16.msra.mxu0 0
      %2466 = vmatprep.subr.bf16.mxu0 0
      %2467 = vmatpush1.bf16.msra.mxu0 0
      %2468 = vmatprep.mubr.bf16.mxu0 0
      %2469 = vmatmul.mubr.bf16.gmra.mrb[0].mxu0 %v1070
      %v2470 = vpop.f32.mrb[0].mxu0
      %v2471 = vadd.f32 0.0, %v2470
      %v2472 = vpop.f32.mrb[0].mxu0
      %v2473 = vpop.f32.mrb[0].mxu0
      %v2474 = vpop.f32.mrb[0].mxu0
      %2475 = vdwg.mxu0
      %v2480 = vunpack.c.l.b16 %v2416
      %v2481 = vunpack.c.l.b16 %v2417
      %v2482 = vunpack.c.l.b16 %v2418
      %v2483 = vunpack.c.l.b16 %v2419
      %v2484 = vpack.c.b16 %v2481, %v2480
      %v2485 = vpack.c.b16 %v2483, %v2482
      %v2489 = vsel %vm840, %v2415, 0
      %2491 = vmatprep.subr.bf16.mxu0 0
      %2492 = vmatpush1.bf16.msra.mxu0 %v2484
      %2493 = vmatprep.subr.bf16.mxu0 0
      %2494 = vmatpush1.bf16.msra.mxu0 %v2485
      %2495 = vmatprep.subr.bf16.mxu0 0
      %2496 = vmatpush1.bf16.msra.mxu0 0
      %2497 = vmatprep.subr.bf16.mxu0 0
      %2498 = vmatpush1.bf16.msra.mxu0 0
      %2499 = vmatprep.subr.bf16.mxu0 0
      %2500 = vmatpush1.bf16.msra.mxu0 0
      %2501 = vmatprep.subr.bf16.mxu0 0
      %2502 = vmatpush1.bf16.msra.mxu0 0
      %2503 = vmatprep.subr.bf16.mxu0 0
      %2504 = vmatpush1.bf16.msra.mxu0 0
      %2505 = vmatprep.subr.bf16.mxu0 0
      %2506 = vmatpush1.bf16.msra.mxu0 0
      %2507 = vmatprep.subr.bf16.mxu0 0
      %2508 = vmatpush1.bf16.msra.mxu0 0
      %2509 = vmatprep.subr.bf16.mxu0 0
      %2510 = vmatpush1.bf16.msra.mxu0 0
      %2511 = vmatprep.subr.bf16.mxu0 0
      %2512 = vmatpush1.bf16.msra.mxu0 0
      %2513 = vmatprep.subr.bf16.mxu0 0
      %2514 = vmatpush1.bf16.msra.mxu0 0
      %2515 = vmatprep.subr.bf16.mxu0 0
      %2516 = vmatpush1.bf16.msra.mxu0 0
      %2517 = vmatprep.subr.bf16.mxu0 0
      %2518 = vmatpush1.bf16.msra.mxu0 0
      %2519 = vmatprep.subr.bf16.mxu0 0
      %2520 = vmatpush1.bf16.msra.mxu0 0
      %2521 = vmatprep.subr.bf16.mxu0 0
      %2522 = vmatpush1.bf16.msra.mxu0 0
      %2523 = vmatprep.mubr.bf16.mxu0 0
      %2524 = vmatmul.mubr.bf16.gmra.mrb[0].mxu0 %v2489
      %v2525 = vpop.f32.mrb[0].mxu0
      %v2526 = vadd.f32 %v2471, %v2525
      %v2527 = vpop.f32.mrb[0].mxu0
      %v2528 = vpop.f32.mrb[0].mxu0
      %v2529 = vpop.f32.mrb[0].mxu0
      %2530 = vdwg.mxu0
      %v2531 = vld [vmem:[%s17] sm:$0x1]
      %v2533 = vlaneseq
      %v2534 = vshrl.u32 %v2533, 7
      %v2535 = vsub.s32 0, %v2534
      %v2536 = vrot.slane %v2531, %v2535
      %v2538 = vadd.f32 %v2526, %v2536
      %v2539 = vld [vmem:[%s18] sm:$0xf]
      %v2540 = vld [vmem:[%s18 + $0x4] sm:$0xf]
      %v2541 = vld [vmem:[%s18 + $0x8] sm:$0xf]
      %v2542 = vld [vmem:[%s18 + $0xc] sm:$0xf]
      %v2543 = vld [vmem:[%s19] sm:$0xf]
      %v2544 = vld [vmem:[%s19 + $0x4] sm:$0xf]
      %v2545 = vld [vmem:[%s19 + $0x8] sm:$0xf]
      %v2546 = vld [vmem:[%s19 + $0xc] sm:$0xf]
      %v2551 = vunpack.c.l.b16 %v2543
      %v2552 = vunpack.c.l.b16 %v2544
      %v2553 = vunpack.c.l.b16 %v2545
      %v2554 = vunpack.c.l.b16 %v2546
      %v2555 = vpack.c.b16 %v2552, %v2551
      %v2556 = vpack.c.b16 %v2554, %v2553
      %2559 = vmatprep.subr.bf16.mxu0 0
      %2560 = vmatpush1.bf16.msra.mxu0 %v2555
      %2561 = vmatprep.subr.bf16.mxu0 0
      %2562 = vmatpush1.bf16.msra.mxu0 %v2556
      %2563 = vmatprep.subr.bf16.mxu0 0
      %2564 = vmatpush1.bf16.msra.mxu0 0
      %2565 = vmatprep.subr.bf16.mxu0 0
      %2566 = vmatpush1.bf16.msra.mxu0 0
      %2567 = vmatprep.subr.bf16.mxu0 0
      %2568 = vmatpush1.bf16.msra.mxu0 0
      %2569 = vmatprep.subr.bf16.mxu0 0
      %2570 = vmatpush1.bf16.msra.mxu0 0
      %2571 = vmatprep.subr.bf16.mxu0 0
      %2572 = vmatpush1.bf16.msra.mxu0 0
      %2573 = vmatprep.subr.bf16.mxu0 0
      %2574 = vmatpush1.bf16.msra.mxu0 0
      %2575 = vmatprep.subr.bf16.mxu0 0
      %2576 = vmatpush1.bf16.msra.mxu0 0
      %2577 = vmatprep.subr.bf16.mxu0 0
      %2578 = vmatpush1.bf16.msra.mxu0 0
      %2579 = vmatprep.subr.bf16.mxu0 0
      %2580 = vmatpush1.bf16.msra.mxu0 0
      %2581 = vmatprep.subr.bf16.mxu0 0
      %2582 = vmatpush1.bf16.msra.mxu0 0
      %2583 = vmatprep.subr.bf16.mxu0 0
      %2584 = vmatpush1.bf16.msra.mxu0 0
      %2585 = vmatprep.subr.bf16.mxu0 0
      %2586 = vmatpush1.bf16.msra.mxu0 0
      %2587 = vmatprep.subr.bf16.mxu0 0
      %2588 = vmatpush1.bf16.msra.mxu0 0
      %2589 = vmatprep.subr.bf16.mxu0 0
      %2590 = vmatpush1.bf16.msra.mxu0 0
      %2591 = vmatprep.mubr.bf16.mxu0 0
      %2592 = vmatmul.mubr.bf16.gmra.mrb[0].mxu0 %v1070
      %v2593 = vpop.f32.mrb[0].mxu0
      %v2594 = vadd.f32 0.0, %v2593
      %v2595 = vpop.f32.mrb[0].mxu0
      %v2596 = vpop.f32.mrb[0].mxu0
      %v2597 = vpop.f32.mrb[0].mxu0
      %2598 = vdwg.mxu0
      %v2603 = vunpack.c.l.b16 %v2539
      %v2604 = vunpack.c.l.b16 %v2540
      %v2605 = vunpack.c.l.b16 %v2541
      %v2606 = vunpack.c.l.b16 %v2542
      %v2607 = vpack.c.b16 %v2604, %v2603
      %v2608 = vpack.c.b16 %v2606, %v2605
      %2611 = vmatprep.subr.bf16.mxu0 0
      %2612 = vmatpush1.bf16.msra.mxu0 %v2607
      %2613 = vmatprep.subr.bf16.mxu0 0
      %2614 = vmatpush1.bf16.msra.mxu0 %v2608
      %2615 = vmatprep.subr.bf16.mxu0 0
      %2616 = vmatpush1.bf16.msra.mxu0 0
      %2617 = vmatprep.subr.bf16.mxu0 0
      %2618 = vmatpush1.bf16.msra.mxu0 0
      %2619 = vmatprep.subr.bf16.mxu0 0
      %2620 = vmatpush1.bf16.msra.mxu0 0
      %2621 = vmatprep.subr.bf16.mxu0 0
      %2622 = vmatpush1.bf16.msra.mxu0 0
      %2623 = vmatprep.subr.bf16.mxu0 0
      %2624 = vmatpush1.bf16.msra.mxu0 0
      %2625 = vmatprep.subr.bf16.mxu0 0
      %2626 = vmatpush1.bf16.msra.mxu0 0
      %2627 = vmatprep.subr.bf16.mxu0 0
      %2628 = vmatpush1.bf16.msra.mxu0 0
      %2629 = vmatprep.subr.bf16.mxu0 0
      %2630 = vmatpush1.bf16.msra.mxu0 0
      %2631 = vmatprep.subr.bf16.mxu0 0
      %2632 = vmatpush1.bf16.msra.mxu0 0
      %2633 = vmatprep.subr.bf16.mxu0 0
      %2634 = vmatpush1.bf16.msra.mxu0 0
      %2635 = vmatprep.subr.bf16.mxu0 0
      %2636 = vmatpush1.bf16.msra.mxu0 0
      %2637 = vmatprep.subr.bf16.mxu0 0
      %2638 = vmatpush1.bf16.msra.mxu0 0
      %2639 = vmatprep.subr.bf16.mxu0 0
      %2640 = vmatpush1.bf16.msra.mxu0 0
      %2641 = vmatprep.subr.bf16.mxu0 0
      %2642 = vmatpush1.bf16.msra.mxu0 0
      %2643 = vmatprep.mubr.bf16.mxu0 0
      %2644 = vmatmul.mubr.bf16.gmra.mrb[0].mxu0 %v2489
      %v2645 = vpop.f32.mrb[0].mxu0
      %v2646 = vadd.f32 %v2594, %v2645
      %v2647 = vpop.f32.mrb[0].mxu0
      %v2648 = vpop.f32.mrb[0].mxu0
      %v2649 = vpop.f32.mrb[0].mxu0
      %2650 = vdwg.mxu0
      %v2651 = vld [vmem:[%s20] sm:$0x1]
      %v2653 = vlaneseq
      %v2654 = vshrl.u32 %v2653, 7
      %v2655 = vsub.s32 0, %v2654
      %v2656 = vrot.slane %v2651, %v2655
      %v2658 = vadd.f32 %v2646, %v2656
      %v2659 = vxor.u32 %v2538, 2147483648
      %v2660 = vmul.f32 %v2659, 1.442695
      %v2661 = vpow.pop %v2660
      %v2662 = vadd.f32 %v2661, 1.0
      %v2663 = vrcp.pop %v2662
      %v2664 = vmul.f32 1.0, %v2663
      %v2665 = vmul.f32 %v2664, %v2658
      %v2666 = vld [vmem:[%s21] sm:$0x1]
      %v2667 = vld [vmem:[%s22] sm:$0x1]
      %v2668 = vadd.f32 %v2665, %v815
      %v2669 = vsel %vm840, %v2668, 0.0
      %2670 = vadd.xlane.f32.xlu0 %v2669
      %v2671 = vpop.xlane.xlu0 %2670
      %v2672 = vrcp.pop 32.0
      %v2673 = vmul.f32 %v2671, %v2672
      %v2674 = vsub.f32 %v2668, %v2673
      %v2675 = vmul.f32 %v2674, %v2674
      %v2676 = vsel %vm840, %v2675, 0.0
      %2677 = vadd.xlane.f32.xlu0 %v2676
      %v2678 = vpop.xlane.xlu0 %2677
      %v2679 = vmul.f32 %v2678, %v2672
      %v2680 = vadd.f32 %v2679, 1e-05
      %v2681 = vrsqrt.pop %v2680
      %v2682 = vmul.f32 %v2674, %v2681
      %v2684 = vlaneseq
      %v2685 = vshrl.u32 %v2684, 7
      %v2686 = vsub.s32 0, %v2685
      %v2687 = vrot.slane %v2666, %v2686
      %v2689 = vmul.f32 %v2682, %v2687
      %v2691 = vlaneseq
      %v2692 = vshrl.u32 %v2691, 7
      %v2693 = vsub.s32 0, %v2692
      %v2694 = vrot.slane %v2667, %v2693
      %v2696 = vadd.f32 %v2689, %v2694
      %v2697 = vpack.c.bf16 %v2696, %v2696
      %v2698 = vld [vmem:[%s23] sm:$0xf]
      %v2699 = vld [vmem:[%s23 + $0x4] sm:$0xf]
      %v2700 = vld [vmem:[%s23 + $0x8] sm:$0xf]
      %v2701 = vld [vmem:[%s23 + $0xc] sm:$0xf]
      %v2702 = vld [vmem:[%s24] sm:$0x1]
      %v2704 = vlaneseq
      %v2705 = vshrl.u32 %v2704, 7
      %v2706 = vsub.s32 0, %v2705
      %v2707 = vrot.slane %v2702, %v2706
      %v2713 = vunpack.c.l.b16 %v2698
      %v2714 = vunpack.c.l.b16 %v2699
      %v2715 = vunpack.c.l.b16 %v2700
      %v2716 = vunpack.c.l.b16 %v2701
      %v2717 = vpack.c.b16 %v2714, %v2713
      %v2718 = vpack.c.b16 %v2716, %v2715
      %v2722 = vsel %vm840, %v2697, 0
      %2724 = vmatprep.subr.bf16.mxu0 0
      %2725 = vmatpush1.bf16.msra.mxu0 %v2717
      %2726 = vmatprep.subr.bf16.mxu0 0
      %2727 = vmatpush1.bf16.msra.mxu0 %v2718
      %2728 = vmatprep.subr.bf16.mxu0 0
      %2729 = vmatpush1.bf16.msra.mxu0 0
      %2730 = vmatprep.subr.bf16.mxu0 0
      %2731 = vmatpush1.bf16.msra.mxu0 0
      %2732 = vmatprep.subr.bf16.mxu0 0
      %2733 = vmatpush1.bf16.msra.mxu0 0
      %2734 = vmatprep.subr.bf16.mxu0 0
      %2735 = vmatpush1.bf16.msra.mxu0 0
      %2736 = vmatprep.subr.bf16.mxu0 0
      %2737 = vmatpush1.bf16.msra.mxu0 0
      %2738 = vmatprep.subr.bf16.mxu0 0
      %2739 = vmatpush1.bf16.msra.mxu0 0
      %2740 = vmatprep.subr.bf16.mxu0 0
      %2741 = vmatpush1.bf16.msra.mxu0 0
      %2742 = vmatprep.subr.bf16.mxu0 0
      %2743 = vmatpush1.bf16.msra.mxu0 0
      %2744 = vmatprep.subr.bf16.mxu0 0
      %2745 = vmatpush1.bf16.msra.mxu0 0
      %2746 = vmatprep.subr.bf16.mxu0 0
      %2747 = vmatpush1.bf16.msra.mxu0 0
      %2748 = vmatprep.subr.bf16.mxu0 0
      %2749 = vmatpush1.bf16.msra.mxu0 0
      %2750 = vmatprep.subr.bf16.mxu0 0
      %2751 = vmatpush1.bf16.msra.mxu0 0
      %2752 = vmatprep.subr.bf16.mxu0 0
      %2753 = vmatpush1.bf16.msra.mxu0 0
      %2754 = vmatprep.subr.bf16.mxu0 0
      %2755 = vmatpush1.bf16.msra.mxu0 0
      %2756 = vmatprep.mubr.bf16.mxu0 0
      %2757 = vmatmul.mubr.bf16.gmra.mrb[0].mxu0 %v2722
      %v2758 = vpop.f32.mrb[0].mxu0
      %v2759 = vadd.f32 %v2707, %v2758
      %v2760 = vpop.f32.mrb[0].mxu0
      %v2761 = vpop.f32.mrb[0].mxu0
      %v2762 = vpop.f32.mrb[0].mxu0
      %2763 = vdwg.mxu0
      %v2764 = vmul.f32 %v2759, 0.70710677
      %v2765 = vand.u32 2147483647, %v2764
      %v2766 = vmul.f32 %v2765, 0.3275911
      %v2767 = vadd.f32 %v2766, 1.0
      %v2768 = vrcp.pop %v2767
      %v2769 = vmul.f32 1.0, %v2768
      %v2770 = vmul.f32 %v2769, 1.0614054
      %v2771 = vadd.f32 %v2770, -1.4531521
      %v2772 = vmul.f32 %v2769, %v2771
      %v2773 = vadd.f32 %v2772, 1.4214138
      %v2774 = vmul.f32 %v2769, %v2773
      %v2775 = vadd.f32 %v2774, -0.28449672
      %v2776 = vmul.f32 %v2769, %v2775
      %v2777 = vadd.f32 %v2776, 0.2548296
      %v2778 = vmul.f32 %v2769, %v2777
      %v2779 = vsub.f32 0.0, %v2765
      %v2780 = vmul.f32 %v2779, %v2765
      %v2781 = vmul.f32 %v2780, 1.442695
      %v2782 = vpow.pop %v2781
      %v2783 = vmul.f32 %v2778, %v2782
      %v2784 = vsub.f32 1.0, %v2783
      %vm2785 = vcmp.ge.f32.partialorder %v2764, 0.0
      %v2786 = vsub.f32 0.0, %v2784
      %v2787 = vsel %vm2785, %v2784, %v2786
      %v2788 = vmul.f32 %v2759, 0.5
      %v2789 = vadd.f32 %v2787, 1.0
      %v2790 = vmul.f32 %v2788, %v2789
      %v2791 = vpack.c.bf16 %v2790, %v2790
      %v2792 = vld [vmem:[%s25] sm:$0xf]
      %v2793 = vld [vmem:[%s25 + $0x4] sm:$0xf]
      %v2794 = vld [vmem:[%s25 + $0x8] sm:$0xf]
      %v2795 = vld [vmem:[%s25 + $0xc] sm:$0xf]
      %v2796 = vld [vmem:[%s25 + $0x10] sm:$0xf]
      %v2797 = vld [vmem:[%s25 + $0x14] sm:$0xf]
      %v2798 = vld [vmem:[%s25 + $0x18] sm:$0xf]
      %v2799 = vld [vmem:[%s25 + $0x1c] sm:$0xf]
      %v2800 = vld [vmem:[%s25 + $0x20] sm:$0xf]
      %v2801 = vld [vmem:[%s25 + $0x24] sm:$0xf]
      %v2802 = vld [vmem:[%s25 + $0x28] sm:$0xf]
      %v2803 = vld [vmem:[%s25 + $0x2c] sm:$0xf]
      %v2804 = vld [vmem:[%s25 + $0x30] sm:$0xf]
      %v2805 = vld [vmem:[%s25 + $0x34] sm:$0xf]
      %v2806 = vld [vmem:[%s25 + $0x38] sm:$0xf]
      %v2807 = vld [vmem:[%s25 + $0x3c] sm:$0xf]
      %v2808 = vld [vmem:[%s26] sm:$0x1]
      %v2810 = vlaneseq
      %v2811 = vshrl.u32 %v2810, 7
      %v2812 = vsub.s32 0, %v2811
      %v2813 = vrot.slane %v2808, %v2812
      %v2831 = vunpack.c.l.b16 %v2792
      %v2832 = vunpack.c.l.b16 %v2793
      %v2833 = vunpack.c.l.b16 %v2794
      %v2834 = vunpack.c.l.b16 %v2795
      %v2835 = vunpack.c.l.b16 %v2796
      %v2836 = vunpack.c.l.b16 %v2797
      %v2837 = vunpack.c.l.b16 %v2798
      %v2838 = vunpack.c.l.b16 %v2799
      %v2839 = vunpack.c.l.b16 %v2800
      %v2840 = vunpack.c.l.b16 %v2801
      %v2841 = vunpack.c.l.b16 %v2802
      %v2842 = vunpack.c.l.b16 %v2803
      %v2843 = vunpack.c.l.b16 %v2804
      %v2844 = vunpack.c.l.b16 %v2805
      %v2845 = vunpack.c.l.b16 %v2806
      %v2846 = vunpack.c.l.b16 %v2807
      %v2847 = vpack.c.b16 %v2832, %v2831
      %v2848 = vpack.c.b16 %v2834, %v2833
      %v2849 = vpack.c.b16 %v2836, %v2835
      %v2850 = vpack.c.b16 %v2838, %v2837
      %v2851 = vpack.c.b16 %v2840, %v2839
      %v2852 = vpack.c.b16 %v2842, %v2841
      %v2853 = vpack.c.b16 %v2844, %v2843
      %v2854 = vpack.c.b16 %v2846, %v2845
      %2863 = vmatprep.subr.bf16.mxu0 0
      %2864 = vmatpush1.bf16.msra.mxu0 %v2847
      %2865 = vmatprep.subr.bf16.mxu0 0
      %2866 = vmatpush1.bf16.msra.mxu0 %v2848
      %2867 = vmatprep.subr.bf16.mxu0 0
      %2868 = vmatpush1.bf16.msra.mxu0 %v2849
      %2869 = vmatprep.subr.bf16.mxu0 0
      %2870 = vmatpush1.bf16.msra.mxu0 %v2850
      %2871 = vmatprep.subr.bf16.mxu0 0
      %2872 = vmatpush1.bf16.msra.mxu0 %v2851
      %2873 = vmatprep.subr.bf16.mxu0 0
      %2874 = vmatpush1.bf16.msra.mxu0 %v2852
      %2875 = vmatprep.subr.bf16.mxu0 0
      %2876 = vmatpush1.bf16.msra.mxu0 %v2853
      %2877 = vmatprep.subr.bf16.mxu0 0
      %2878 = vmatpush1.bf16.msra.mxu0 %v2854
      %2879 = vmatprep.subr.bf16.mxu0 0
      %2880 = vmatpush1.bf16.msra.mxu0 0
      %2881 = vmatprep.subr.bf16.mxu0 0
      %2882 = vmatpush1.bf16.msra.mxu0 0
      %2883 = vmatprep.subr.bf16.mxu0 0
      %2884 = vmatpush1.bf16.msra.mxu0 0
      %2885 = vmatprep.subr.bf16.mxu0 0
      %2886 = vmatpush1.bf16.msra.mxu0 0
      %2887 = vmatprep.subr.bf16.mxu0 0
      %2888 = vmatpush1.bf16.msra.mxu0 0
      %2889 = vmatprep.subr.bf16.mxu0 0
      %2890 = vmatpush1.bf16.msra.mxu0 0
      %2891 = vmatprep.subr.bf16.mxu0 0
      %2892 = vmatpush1.bf16.msra.mxu0 0
      %2893 = vmatprep.subr.bf16.mxu0 0
      %2894 = vmatpush1.bf16.msra.mxu0 0
      %2895 = vmatprep.mubr.bf16.mxu0 0
      %2896 = vmatmul.mubr.bf16.gmra.mrb[0].mxu0 %v2791
      %v2897 = vpop.f32.mrb[0].mxu0
      %v2898 = vadd.f32 %v2813, %v2897
      %v2899 = vpop.f32.mrb[0].mxu0
      %v2900 = vpop.f32.mrb[0].mxu0
      %v2901 = vpop.f32.mrb[0].mxu0
      %2902 = vdwg.mxu0
      %v2903 = vadd.f32 %v2898, %v2696
      %v2904 = vsel %vm840, %v2903, 0.0
      %2905 = vadd.xlane.f32.xlu0 %v2904
      %v2906 = vpop.xlane.xlu0 %2905
      %v2907 = vmul.f32 %v2906, %v2672
      %v2908 = vsub.f32 %v2903, %v2907
      %v2909 = vmul.f32 %v2908, %v2908
      %v2910 = vsel %vm840, %v2909, 0.0
      %2911 = vadd.xlane.f32.xlu0 %v2910
      %v2912 = vpop.xlane.xlu0 %2911
      %v2913 = vmul.f32 %v2912, %v2672
      %v2914 = vadd.f32 %v2913, 1e-05
      %v2915 = vrsqrt.pop %v2914
      %v2916 = vmul.f32 %v2908, %v2915
      %v2917 = vmul.f32 %v2916, %v2687
      %v2918 = vadd.f32 %v2917, %v2694
      %2919 = vst.msk [vmem:[%s813] sm:$0xff] %vm840, %v2918
      %p2920 = scmp.lt.s32.totalorder %s38, 1
      %s2921 = scalar_select %p2920, %s38, 1
      %s2922 = smul.addr %s2921, 8
      %s2923 = scalar_lea.vmem %s27, %s2922
      // Predicated region
      $region129: #{aoa_forward.1} parent=127 // pred_check
        %p2924 = pneg %p628
      $region130: #{aoa_forward.1} parent=127 // pred_check_branch
        %2926 = sbr.rel (%p2924) target = $region132
      $region131: #{aoa_forward.1} parent=127 // pred_region
        _
      $region132: #{aoa_forward.1} parent=127 // pred_fallthru
        _
    $region128: #{aoa_forward.1} parent=5 // pred_fallthru
      _
    %p2927 = scmp.le.s32.totalorder 2, %s33
    // Predicated region
    $region133: #{aoa_forward.1} parent=5 // pred_check
      %p2928 = pneg %p2927
    $region134: #{aoa_forward.1} parent=5 // pred_check_branch
      %2930 = sbr.rel (%p2928) target = $region136
    $region135: #{aoa_forward.1} parent=5 // pred_region
      %s2931 = ssub.s32 %s33, 2
      // Predicated region
      $region137: #{aoa_forward.1} parent=135 // pred_check
        %p2932 = pneg %p634
      $region138: #{aoa_forward.1} parent=135 // pred_check_branch
        %2934 = sbr.rel (%p2932) target = $region140
      $region139: #{aoa_forward.1} parent=135 // pred_region
        %p2935 = scmp.lt.s32.totalorder %s39, 1
        %s2936 = scalar_select %p2935, %s39, 1
        %s2937 = smul.addr %s2936, 8
        %s2938 = scalar_lea.vmem %s27, %s2937
      $region140: #{aoa_forward.1} parent=135 // pred_fallthru
        _
    $region136: #{aoa_forward.1} parent=5 // pred_fallthru
      _
  $region6: #{aoa_forward.1} parent=0 // loop_footer
    %s37 = sadd.s32 1, %s33
  $region7: #{aoa_forward.1} parent=0 // loop_footer_branch
    %32 = sbr.rel target = $region3
  $region8: #{aoa_forward.1} parent=0 // loop_exit
    _

</llo_original>
